<compile_context>
chip_gen: v6e
topology: v6e:2x2x1
jax: 0.10.0
libtpu: 0.0.40
codegen_flags: <defaults>
</compile_context>

<pallas_src>
import numpy as np
import jax
import jax.numpy as jnp
from jax.experimental import pallas as pl
from jax.experimental.pallas import tpu as pltpu

HIDDEN = 512
ATTN_D = 256
NODE_PAD = 8          # node_num=7 padded to one full sublane group
NEG_SLOPE = 0.01      # PyTorch LeakyReLU default
NEG_INF = -1e30


def _leaky(x):
    return jnp.where(x > 0, x, NEG_SLOPE * x)


# ---------------------------------------------------------------------------
# Kernel 1: fused patch branch (patch_fc + gated attention + softmax pooling)
# Tiled over the patch axis with an online-softmax carry (m, l, acc) in VMEM.
# ---------------------------------------------------------------------------

def _make_patch_kernel(tm, np_actual):
    def kernel(x_ref, wp_ref, bp_ref, wa_ref, ba_ref, wb_ref, bb_ref,
               wc_ref, bc_ref, o_ref, m_sc, l_sc, acc_sc):
        i = pl.program_id(0)

        @pl.when(i == 0)
        def _():
            m_sc[...] = jnp.full_like(m_sc, NEG_INF)
            l_sc[...] = jnp.zeros_like(l_sc)
            acc_sc[...] = jnp.zeros_like(acc_sc)

        # patch_fc: leaky_relu(x @ Wp + bp)   (bf16 MXU operands, f32 accum)
        x = x_ref[...]                                              # (tm, 512) bf16
        p = jnp.dot(x, wp_ref[...], preferred_element_type=jnp.float32) + bp_ref[...]
        p = _leaky(p)                                               # (tm, 512) f32
        p_bf = p.astype(jnp.bfloat16)

        # Attn_Net_Gated: tanh / sigmoid gates -> per-node scores
        a = jnp.tanh(jnp.dot(p_bf, wa_ref[...],
                             preferred_element_type=jnp.float32) + ba_ref[...])
        g = jax.nn.sigmoid(jnp.dot(p_bf, wb_ref[...],
                                   preferred_element_type=jnp.float32) + bb_ref[...])
        scores = jnp.dot((a * g).astype(jnp.bfloat16), wc_ref[...],
                         preferred_element_type=jnp.float32) + bc_ref[...]  # (tm, 8)

        # mask padded patch rows (last tile may be partial)
        row = i * tm + jax.lax.broadcasted_iota(jnp.int32, scores.shape, 0)
        scores = jnp.where(row < np_actual, scores, NEG_INF)

        # online softmax over the patch axis, per node (rows of s_t)
        s_t = scores.T                                              # (8, tm) f32
        m_prev = m_sc[...]
        m_new = jnp.maximum(m_prev, jnp.max(s_t, axis=-1, keepdims=True))
        alpha = jnp.exp(m_prev - m_new)
        p_exp = jnp.exp(s_t - m_new)                                # (8, tm)
        l_sc[...] = alpha * l_sc[...] + jnp.sum(p_exp, axis=-1, keepdims=True)
        acc_sc[...] = alpha * acc_sc[...] + jnp.dot(
            p_exp.astype(jnp.bfloat16), p_bf, preferred_element_type=jnp.float32)
        m_sc[...] = m_new

        @pl.when(i == pl.num_programs(0) - 1)
        def _():
            o_ref[...] = acc_sc[...] / l_sc[...]                    # (8, 512) pooled

    return kernel


def patch_attn_pool(x_pad_bf16, np_actual, tm, wp, bp, wa, ba, wb, bb, wc, bc):
    np_pad, L = x_pad_bf16.shape
    D = wa.shape[1]
    node_pad = wc.shape[1]
    kernel = _make_patch_kernel(tm, np_actual)
    return pl.pallas_call(
        kernel,
        out_shape=jax.ShapeDtypeStruct((node_pad, L), jnp.float32),
        grid=(np_pad // tm,),
        in_specs=[
            pl.BlockSpec((tm, L), lambda i: (i, 0)),          # patches (streamed)
            pl.BlockSpec((L, L), lambda i: (0, 0)),           # Wp
            pl.BlockSpec((1, L), lambda i: (0, 0)),           # bp
            pl.BlockSpec((L, D), lambda i: (0, 0)),           # Wa
            pl.BlockSpec((1, D), lambda i: (0, 0)),           # ba
            pl.BlockSpec((L, D), lambda i: (0, 0)),           # Wb
            pl.BlockSpec((1, D), lambda i: (0, 0)),           # bb
            pl.BlockSpec((D, node_pad), lambda i: (0, 0)),    # Wc (padded to 8)
            pl.BlockSpec((1, node_pad), lambda i: (0, 0)),    # bc
        ],
        out_specs=pl.BlockSpec((node_pad, L), lambda i: (0, 0)),
        scratch_shapes=[
            pltpu.VMEM((node_pad, 1), jnp.float32),           # running max
            pltpu.VMEM((node_pad, 1), jnp.float32),           # running sum
            pltpu.VMEM((node_pad, L), jnp.float32),           # running pooled acc
        ],
        compiler_params=pltpu.CompilerParams(
            dimension_semantics=("arbitrary",)),              # reduction/carry axis
    )(x_pad_bf16, wp, bp, wa, ba, wb, bb, wc, bc)


# ---------------------------------------------------------------------------
# Kernel 2: fused text branch (text_fc + BiTreeGNN with stacked weights)
# ---------------------------------------------------------------------------

def _text_gnn_kernel(x_ref, wt_ref, bt_ref, au_ref, ad_ref, wg_ref, bg_ref, o_ref):
    x = x_ref[...]                                                  # (8, 512) bf16
    t = _leaky(jnp.dot(x, wt_ref[...],
                       preferred_element_type=jnp.float32) + bt_ref[...])
    t_bf = t.astype(jnp.bfloat16)
    msg_d = jnp.dot(au_ref[...], t_bf,
                    preferred_element_type=jnp.float32).astype(jnp.bfloat16)
    msg_u = jnp.dot(ad_ref[...], t_bf,
                    preferred_element_type=jnp.float32).astype(jnp.bfloat16)
    # one K=1536 matmul instead of three K=512 matmuls + adds
    cat = jnp.concatenate([t_bf, msg_d, msg_u], axis=1)             # (8, 1536) bf16
    h = jnp.dot(cat, wg_ref[...], preferred_element_type=jnp.float32) + bg_ref[...]
    o_ref[...] = _leaky(h)


def text_gnn(x_bf16, adj_u2d, adj_d2u, wt, bt, wg, bg):
    Nn, L = x_bf16.shape
    K3 = wg.shape[0]
    return pl.pallas_call(
        _text_gnn_kernel,
        out_shape=jax.ShapeDtypeStruct((Nn, L), jnp.float32),
        grid=(1,),
        in_specs=[
            pl.BlockSpec((Nn, L), lambda i: (0, 0)),
            pl.BlockSpec((L, L), lambda i: (0, 0)),
            pl.BlockSpec((1, L), lambda i: (0, 0)),
            pl.BlockSpec((Nn, Nn), lambda i: (0, 0)),
            pl.BlockSpec((Nn, Nn), lambda i: (0, 0)),
            pl.BlockSpec((K3, L), lambda i: (0, 0)),
            pl.BlockSpec((1, L), lambda i: (0, 0)),
        ],
        out_specs=pl.BlockSpec((Nn, L), lambda i: (0, 0)),
    )(x_bf16, wt, bt, adj_u2d, adj_d2u, wg, bg)


# ---------------------------------------------------------------------------
# Static tree plan (mirrors the PyTorch recursion, incl. the last-child quirk)
# ---------------------------------------------------------------------------

def find_sibling_nodes(node, target_id, parent=None):
    if node['id'] == target_id:
        if parent is not None and parent.get('children'):
            return [c['id'] for c in parent['children'] if c['id'] != target_id]
    for c in node.get('children', []):
        r = find_sibling_nodes(c, target_id, node)
        if r is not None:
            return r
    return None


def build_agg_plan(tree):
    """Post-order list of (node_id, last_child_id, sibling_of_last_child)."""
    plan, leaves = [], []

    def rec(node):
        children = node.get('children') or []
        if not children:
            leaves.append(node['id'])
            return
        for c in children:
            rec(c)
        last = children[-1]['id']                # PyTorch uses `child` after loop
        sib = find_sibling_nodes(tree, last)[0]
        plan.append((node['id'], last, sib))

    rec(tree)
    return plan, leaves, tree['id']


# ---------------------------------------------------------------------------
# Full forward (eval path), jitted; tree structure baked in as static indices
# ---------------------------------------------------------------------------

def make_pathtree_forward(tree, num_class, node_num):
    agg_plan, leaf_ids, root_id = build_agg_plan(tree)

    # padded bidirectional adjacency as compile-time constants (bf16 for MXU)
    a_u2d = np.zeros((NODE_PAD, NODE_PAD), np.float32)
    a_d2u = np.zeros((NODE_PAD, NODE_PAD), np.float32)

    def edges(node, parent=None):
        if parent is not None:
            a_u2d[node['id'], parent['id']] = 1.0
            a_d2u[parent['id'], node['id']] = 1.0
        for c in node.get('children', []):
            edges(c, node)

    edges(tree)
    a_u2d /= np.maximum(a_u2d.sum(axis=1, keepdims=True), 1.0)
    a_d2u /= np.maximum(a_d2u.sum(axis=1, keepdims=True), 1.0)
    adj_u2d = jnp.asarray(a_u2d, jnp.bfloat16)
    adj_d2u = jnp.asarray(a_d2u, jnp.bfloat16)

    def forward(params, patch_feat, text_feat):
        # --- patch branch (fused pallas kernel, tiled over patches) ---
        Np = patch_feat.shape[0]
        tm = 256 if Np >= 256 else ((Np + 15) // 16) * 16
        np_pad = ((Np + tm - 1) // tm) * tm
        x = jnp.pad(patch_feat, ((0, np_pad - Np), (0, 0))).astype(jnp.bfloat16)
        tree_slide_feat = patch_attn_pool(
            x, Np, tm,
            params['patch_fc_w'], params['patch_fc_b'],
            params['attn_a_w'], params['attn_a_b'],
            params['attn_b_w'], params['attn_b_b'],
            params['attn_c_w'], params['attn_c_b'])                 # (8, 512)

        # --- text branch (fused pallas kernel) ---
        txt = jnp.pad(text_feat,
                      ((0, NODE_PAD - text_feat.shape[0]), (0, 0))).astype(jnp.bfloat16)
        tree_text_feat = text_gnn(
            txt, adj_u2d, adj_d2u,
            params['text_fc_w'], params['text_fc_b'],
            params['gnn_w'], params['gnn_b'])                       # (8, 512)

        # --- tiny tail in plain jnp (inside this jit) ---
        cont = jnp.sum(tree_slide_feat * tree_text_feat, axis=1)    # (8,)

        feats = {lid: tree_slide_feat[lid] for lid in leaf_ids}
        for nid, lc, sib in agg_plan:                               # static unroll
            w = jax.nn.softmax(jnp.stack([cont[lc], cont[sib]]))
            agg = w[0] * feats[lc] + w[1] * feats[sib]
            feats[nid] = tree_slide_feat[nid] + agg
        slide = feats[root_id]                                      # (512,)

        slide_n = slide * jax.lax.rsqrt(jnp.sum(slide * slide) + 1e-12)
        leaf_t = tree_text_feat[:num_class]                         # leaves first
        leaf_n = leaf_t * jax.lax.rsqrt(
            jnp.sum(leaf_t * leaf_t, axis=-1, keepdims=True) + 1e-12)
        logits = jnp.exp(params['logit_scale']) * (slide_n[None, :] @ leaf_n.T)
        return logits

    return jax.jit(forward)


# ---------------------------------------------------------------------------
# Deterministic parameter init + example run
# ---------------------------------------------------------------------------

def init_params(key, hidden=HIDDEN, attn_d=ATTN_D, node_num=7):
    ks = jax.random.split(key, 10)
    sc = 0.02

    def w_bf16(k, shape):
        return (sc * jax.random.normal(k, shape, jnp.float32)).astype(jnp.bfloat16)

    wc = sc * jax.random.normal(ks[6], (attn_d, node_num), jnp.float32)
    wc = jnp.pad(wc, ((0, 0), (0, NODE_PAD - node_num))).astype(jnp.bfloat16)

    ws = sc * jax.random.normal(ks[7], (hidden, hidden), jnp.float32)
    wd = sc * jax.random.normal(ks[8], (hidden, hidden), jnp.float32)
    wu = sc * jax.random.normal(ks[9], (hidden, hidden), jnp.float32)
    gnn_w = jnp.concatenate([ws, wd, wu], axis=0).astype(jnp.bfloat16)  # (1536, 512)

    return {
        'patch_fc_w': w_bf16(ks[0], (hidden, hidden)),
        'patch_fc_b': (sc * jax.random.normal(ks[1], (hidden,), jnp.float32)).reshape(1, hidden),
        'text_fc_w':  w_bf16(ks[2], (hidden, hidden)),
        'text_fc_b':  (sc * jax.random.normal(ks[3], (hidden,), jnp.float32)).reshape(1, hidden),
        'attn_a_w':   w_bf16(ks[4], (hidden, attn_d)),
        'attn_a_b':   jnp.zeros((1, attn_d), jnp.float32),
        'attn_b_w':   w_bf16(ks[5], (hidden, attn_d)),
        'attn_b_b':   jnp.zeros((1, attn_d), jnp.float32),
        'attn_c_w':   wc,
        'attn_c_b':   jnp.zeros((1, NODE_PAD), jnp.float32),
        'gnn_w':      gnn_w,
        'gnn_b':      jnp.zeros((1, hidden), jnp.float32),
        'logit_scale': jnp.asarray(np.log(1.0 / 0.07), jnp.float32),
    }


def build_tree(num_class=4):
    # binary tree: leaves 0..3, internal 4 (0,1), 5 (2,3), root 6 (4,5)
    tree = {'id': 6, 'children': [
        {'id': 4, 'children': [{'id': 0}, {'id': 1}]},
        {'id': 5, 'children': [{'id': 2}, {'id': 3}]},
    ]}
    return tree, 2 * num_class - 1


if __name__ == "__main__":
    num_class = 4
    n_patches = 64

    tree, node_num = build_tree(num_class)

    key = jax.random.PRNGKey(0)
    k_par, k_patch, k_text = jax.random.split(key, 3)

    params = init_params(k_par, node_num=node_num)
    patch_feat = jax.random.normal(k_patch, (n_patches, HIDDEN), jnp.float32)
    text_feat = jax.random.normal(k_text, (node_num, HIDDEN), jnp.float32)

    pathtree_forward = make_pathtree_forward(tree, num_class, node_num)
    logits = pathtree_forward(params, patch_feat, text_feat)
    jax.block_until_ready(logits)

    assert logits.shape == (1, num_class)
    assert bool(jnp.all(jnp.isfinite(logits)))
    print("KERNEL_OK")
</pallas_src>

<mosaic_0001>
module attributes {stable_mosaic.version = 11 : i64} {
  func.func @_text_gnn_kernel(%arg0: i32, %arg1: memref<8x512xbf16, #tpu.memory_space<vmem>>, %arg2: memref<512x512xbf16, #tpu.memory_space<vmem>>, %arg3: memref<1x512xf32, #tpu.memory_space<vmem>>, %arg4: memref<8x8xbf16, #tpu.memory_space<vmem>>, %arg5: memref<8x8xbf16, #tpu.memory_space<vmem>>, %arg6: memref<1536x512xbf16, #tpu.memory_space<vmem>>, %arg7: memref<1x512xf32, #tpu.memory_space<vmem>>, %arg8: memref<8x512xf32, #tpu.memory_space<vmem>>) attributes {dimension_semantics = [#tpu.dimension_semantics<arbitrary>], iteration_bounds = array<i64: 1>, scalar_prefetch = 0 : i64, scratch_operands = 0 : i64, tpu.core_type = #tpu.core_type<tc>, window_params = [{pipeline_mode = #tpu.pipeline_mode<synchronous>, transform_indices = @transform_0, window_bounds = array<i64: 8, 512>}, {pipeline_mode = #tpu.pipeline_mode<synchronous>, transform_indices = @transform_1, window_bounds = array<i64: 512, 512>}, {pipeline_mode = #tpu.pipeline_mode<synchronous>, transform_indices = @transform_2, window_bounds = array<i64: 1, 512>}, {pipeline_mode = #tpu.pipeline_mode<synchronous>, transform_indices = @transform_3, window_bounds = array<i64: 8, 8>}, {pipeline_mode = #tpu.pipeline_mode<synchronous>, transform_indices = @transform_4, window_bounds = array<i64: 8, 8>}, {pipeline_mode = #tpu.pipeline_mode<synchronous>, transform_indices = @transform_5, window_bounds = array<i64: 1536, 512>}, {pipeline_mode = #tpu.pipeline_mode<synchronous>, transform_indices = @transform_6, window_bounds = array<i64: 1, 512>}, {pipeline_mode = #tpu.pipeline_mode<synchronous>, transform_indices = @transform_7, window_bounds = array<i64: 8, 512>}]} {
    %c0 = arith.constant 0 : index
    %c0_0 = arith.constant 0 : index
    %0 = vector.load %arg1[%c0, %c0_0] : memref<8x512xbf16, #tpu.memory_space<vmem>>, vector<8x512xbf16>
    %c0_1 = arith.constant 0 : index
    %c0_2 = arith.constant 0 : index
    %1 = vector.load %arg2[%c0_1, %c0_2] : memref<512x512xbf16, #tpu.memory_space<vmem>>, vector<512x512xbf16>
    %cst = arith.constant dense<0.000000e+00> : vector<8x512xf32>
    %2 = tpu.matmul %0, %1, %cst {dimension_numbers = #tpu.dot_dimension_numbers<[1], [0], [0], [1], [0, 0, 1, 1], [], []>} : vector<8x512xbf16>, vector<512x512xbf16>, vector<8x512xf32> -> vector<8x512xf32>
    %c0_3 = arith.constant 0 : index
    %c0_4 = arith.constant 0 : index
    %3 = vector.load %arg3[%c0_3, %c0_4] : memref<1x512xf32, #tpu.memory_space<vmem>>, vector<1x512xf32>
    %4 = vector.broadcast %3 : vector<1x512xf32> to vector<8x512xf32>
    %5 = arith.addf %2, %4 : vector<8x512xf32>
    %cst_5 = arith.constant 0.000000e+00 : f32
    %6 = vector.broadcast %cst_5 : f32 to vector<8x512xf32>
    %7 = arith.cmpf ogt, %5, %6 : vector<8x512xf32>
    %cst_6 = arith.constant 0.00999999977 : f32
    %8 = vector.broadcast %cst_6 : f32 to vector<8x512xf32>
    %9 = arith.mulf %8, %5 : vector<8x512xf32>
    %10 = arith.select %7, %5, %9 : vector<8x512xi1>, vector<8x512xf32>
    %11 = arith.truncf %10 : vector<8x512xf32> to vector<8x512xbf16>
    %c0_7 = arith.constant 0 : index
    %c0_8 = arith.constant 0 : index
    %12 = vector.load %arg4[%c0_7, %c0_8] : memref<8x8xbf16, #tpu.memory_space<vmem>>, vector<8x8xbf16>
    %cst_9 = arith.constant dense<0.000000e+00> : vector<8x512xf32>
    %13 = tpu.matmul %12, %11, %cst_9 {dimension_numbers = #tpu.dot_dimension_numbers<[1], [0], [0], [1], [0, 0, 1, 1], [], []>} : vector<8x8xbf16>, vector<8x512xbf16>, vector<8x512xf32> -> vector<8x512xf32>
    %14 = arith.truncf %13 : vector<8x512xf32> to vector<8x512xbf16>
    %c0_10 = arith.constant 0 : index
    %c0_11 = arith.constant 0 : index
    %15 = vector.load %arg5[%c0_10, %c0_11] : memref<8x8xbf16, #tpu.memory_space<vmem>>, vector<8x8xbf16>
    %cst_12 = arith.constant dense<0.000000e+00> : vector<8x512xf32>
    %16 = tpu.matmul %15, %11, %cst_12 {dimension_numbers = #tpu.dot_dimension_numbers<[1], [0], [0], [1], [0, 0, 1, 1], [], []>} : vector<8x8xbf16>, vector<8x512xbf16>, vector<8x512xf32> -> vector<8x512xf32>
    %17 = arith.truncf %16 : vector<8x512xf32> to vector<8x512xbf16>
    %18 = tpu.concatenate %11, %14, %17 in 1 : vector<8x512xbf16>, vector<8x512xbf16>, vector<8x512xbf16> -> vector<8x1536xbf16>
    %c0_13 = arith.constant 0 : index
    %c0_14 = arith.constant 0 : index
    %19 = vector.load %arg6[%c0_13, %c0_14] : memref<1536x512xbf16, #tpu.memory_space<vmem>>, vector<1536x512xbf16>
    %cst_15 = arith.constant dense<0.000000e+00> : vector<8x512xf32>
    %20 = tpu.matmul %18, %19, %cst_15 {dimension_numbers = #tpu.dot_dimension_numbers<[1], [0], [0], [1], [0, 0, 1, 1], [], []>} : vector<8x1536xbf16>, vector<1536x512xbf16>, vector<8x512xf32> -> vector<8x512xf32>
    %c0_16 = arith.constant 0 : index
    %c0_17 = arith.constant 0 : index
    %21 = vector.load %arg7[%c0_16, %c0_17] : memref<1x512xf32, #tpu.memory_space<vmem>>, vector<1x512xf32>
    %22 = vector.broadcast %21 : vector<1x512xf32> to vector<8x512xf32>
    %23 = arith.addf %20, %22 : vector<8x512xf32>
    %cst_18 = arith.constant 0.000000e+00 : f32
    %24 = vector.broadcast %cst_18 : f32 to vector<8x512xf32>
    %25 = arith.cmpf ogt, %23, %24 : vector<8x512xf32>
    %cst_19 = arith.constant 0.00999999977 : f32
    %26 = vector.broadcast %cst_19 : f32 to vector<8x512xf32>
    %27 = arith.mulf %26, %23 : vector<8x512xf32>
    %28 = arith.select %25, %23, %27 : vector<8x512xi1>, vector<8x512xf32>
    %c0_20 = arith.constant 0 : index
    %c0_21 = arith.constant 0 : index
    %29 = vector.load %arg8[%c0_20, %c0_21] : memref<8x512xf32, #tpu.memory_space<vmem>>, vector<8x512xf32>
    tpu.vector_store %arg8[%c0_20, %c0_21], %28 {strides = array<i32>} : memref<8x512xf32, #tpu.memory_space<vmem>>, vector<8x512xf32>,
    return
  }
  func.func @transform_0(%arg0: i32) -> (i32, i32) {
    %c0_i32 = arith.constant 0 : i32
    %c0_i32_0 = arith.constant 0 : i32
    %c0_i32_1 = arith.constant 0 : i32
    return %c0_i32, %c0_i32_0 : i32, i32
  }
  func.func @transform_1(%arg0: i32) -> (i32, i32) {
    %c0_i32 = arith.constant 0 : i32
    %c0_i32_0 = arith.constant 0 : i32
    %c0_i32_1 = arith.constant 0 : i32
    return %c0_i32, %c0_i32_0 : i32, i32
  }
  func.func @transform_2(%arg0: i32) -> (i32, i32) {
    %c0_i32 = arith.constant 0 : i32
    %c0_i32_0 = arith.constant 0 : i32
    %c0_i32_1 = arith.constant 0 : i32
    return %c0_i32, %c0_i32_0 : i32, i32
  }
  func.func @transform_3(%arg0: i32) -> (i32, i32) {
    %c0_i32 = arith.constant 0 : i32
    %c0_i32_0 = arith.constant 0 : i32
    %c0_i32_1 = arith.constant 0 : i32
    return %c0_i32, %c0_i32_0 : i32, i32
  }
  func.func @transform_4(%arg0: i32) -> (i32, i32) {
    %c0_i32 = arith.constant 0 : i32
    %c0_i32_0 = arith.constant 0 : i32
    %c0_i32_1 = arith.constant 0 : i32
    return %c0_i32, %c0_i32_0 : i32, i32
  }
  func.func @transform_5(%arg0: i32) -> (i32, i32) {
    %c0_i32 = arith.constant 0 : i32
    %c0_i32_0 = arith.constant 0 : i32
    %c0_i32_1 = arith.constant 0 : i32
    return %c0_i32, %c0_i32_0 : i32, i32
  }
  func.func @transform_6(%arg0: i32) -> (i32, i32) {
    %c0_i32 = arith.constant 0 : i32
    %c0_i32_0 = arith.constant 0 : i32
    %c0_i32_1 = arith.constant 0 : i32
    return %c0_i32, %c0_i32_0 : i32, i32
  }
  func.func @transform_7(%arg0: i32) -> (i32, i32) {
    %c0_i32 = arith.constant 0 : i32
    %c0_i32_0 = arith.constant 0 : i32
    %c0_i32_1 = arith.constant 0 : i32
    return %c0_i32, %c0_i32_0 : i32, i32
  }
}

module attributes {stable_mosaic.version = 11 : i64} {
  func.func @kernel(%arg0: i32, %arg1: memref<64x512xbf16, #tpu.memory_space<vmem>>, %arg2: memref<512x512xbf16, #tpu.memory_space<vmem>>, %arg3: memref<1x512xf32, #tpu.memory_space<vmem>>, %arg4: memref<512x256xbf16, #tpu.memory_space<vmem>>, %arg5: memref<1x256xf32, #tpu.memory_space<vmem>>, %arg6: memref<512x256xbf16, #tpu.memory_space<vmem>>, %arg7: memref<1x256xf32, #tpu.memory_space<vmem>>, %arg8: memref<256x8xbf16, #tpu.memory_space<vmem>>, %arg9: memref<1x8xf32, #tpu.memory_space<vmem>>, %arg10: memref<8x512xf32, #tpu.memory_space<vmem>>, %arg11: memref<8x1xf32, #tpu.memory_space<vmem>>, %arg12: memref<8x1xf32, #tpu.memory_space<vmem>>, %arg13: memref<8x512xf32, #tpu.memory_space<vmem>>) attributes {dimension_semantics = [#tpu.dimension_semantics<arbitrary>], iteration_bounds = array<i64: 1>, scalar_prefetch = 0 : i64, scratch_operands = 3 : i64, tpu.core_type = #tpu.core_type<tc>, window_params = [{transform_indices = @transform_0, window_bounds = array<i64: 64, 512>}, {pipeline_mode = #tpu.pipeline_mode<synchronous>, transform_indices = @transform_1, window_bounds = array<i64: 512, 512>}, {pipeline_mode = #tpu.pipeline_mode<synchronous>, transform_indices = @transform_2, window_bounds = array<i64: 1, 512>}, {pipeline_mode = #tpu.pipeline_mode<synchronous>, transform_indices = @transform_3, window_bounds = array<i64: 512, 256>}, {pipeline_mode = #tpu.pipeline_mode<synchronous>, transform_indices = @transform_4, window_bounds = array<i64: 1, 256>}, {pipeline_mode = #tpu.pipeline_mode<synchronous>, transform_indices = @transform_5, window_bounds = array<i64: 512, 256>}, {pipeline_mode = #tpu.pipeline_mode<synchronous>, transform_indices = @transform_6, window_bounds = array<i64: 1, 256>}, {pipeline_mode = #tpu.pipeline_mode<synchronous>, transform_indices = @transform_7, window_bounds = array<i64: 256, 8>}, {pipeline_mode = #tpu.pipeline_mode<synchronous>, transform_indices = @transform_8, window_bounds = array<i64: 1, 8>}, {pipeline_mode = #tpu.pipeline_mode<synchronous>, transform_indices = @transform_9, window_bounds = array<i64: 8, 512>}]} {
    %c0_i32 = arith.constant 0 : i32
    %0 = arith.cmpi eq, %arg0, %c0_i32 : i32
    %1 = arith.extui %0 : i1 to i32
    %c0_i32_0 = arith.constant 0 : i32
    %2 = arith.cmpi ne, %1, %c0_i32_0 : i32
    scf.if %2 {
      %cst_43 = arith.constant -1.000000e+30 : f32
      %73 = vector.broadcast %cst_43 : f32 to vector<8x1xf32>
      %c0_44 = arith.constant 0 : index
      %c0_45 = arith.constant 0 : index
      %74 = vector.load %arg11[%c0_44, %c0_45] : memref<8x1xf32, #tpu.memory_space<vmem>>, vector<8x1xf32>
      tpu.vector_store %arg11[%c0_44, %c0_45], %73 {strides = array<i32>} : memref<8x1xf32, #tpu.memory_space<vmem>>, vector<8x1xf32>,
      %cst_46 = arith.constant 0.000000e+00 : f32
      %75 = vector.broadcast %cst_46 : f32 to vector<8x1xf32>
      %c0_47 = arith.constant 0 : index
      %c0_48 = arith.constant 0 : index
      %76 = vector.load %arg12[%c0_47, %c0_48] : memref<8x1xf32, #tpu.memory_space<vmem>>, vector<8x1xf32>
      tpu.vector_store %arg12[%c0_47, %c0_48], %75 {strides = array<i32>} : memref<8x1xf32, #tpu.memory_space<vmem>>, vector<8x1xf32>,
      %cst_49 = arith.constant 0.000000e+00 : f32
      %77 = vector.broadcast %cst_49 : f32 to vector<8x512xf32>
      %c0_50 = arith.constant 0 : index
      %c0_51 = arith.constant 0 : index
      %78 = vector.load %arg13[%c0_50, %c0_51] : memref<8x512xf32, #tpu.memory_space<vmem>>, vector<8x512xf32>
      tpu.vector_store %arg13[%c0_50, %c0_51], %77 {strides = array<i32>} : memref<8x512xf32, #tpu.memory_space<vmem>>, vector<8x512xf32>,
    } else {
    }
    %c0 = arith.constant 0 : index
    %c0_1 = arith.constant 0 : index
    %3 = vector.load %arg1[%c0, %c0_1] : memref<64x512xbf16, #tpu.memory_space<vmem>>, vector<64x512xbf16>
    %c0_2 = arith.constant 0 : index
    %c0_3 = arith.constant 0 : index
    %4 = vector.load %arg2[%c0_2, %c0_3] : memref<512x512xbf16, #tpu.memory_space<vmem>>, vector<512x512xbf16>
    %cst = arith.constant dense<0.000000e+00> : vector<64x512xf32>
    %5 = tpu.matmul %3, %4, %cst {dimension_numbers = #tpu.dot_dimension_numbers<[1], [0], [0], [1], [0, 0, 1, 1], [], []>} : vector<64x512xbf16>, vector<512x512xbf16>, vector<64x512xf32> -> vector<64x512xf32>
    %c0_4 = arith.constant 0 : index
    %c0_5 = arith.constant 0 : index
    %6 = vector.load %arg3[%c0_4, %c0_5] : memref<1x512xf32, #tpu.memory_space<vmem>>, vector<1x512xf32>
    %7 = vector.broadcast %6 : vector<1x512xf32> to vector<64x512xf32>
    %8 = arith.addf %5, %7 : vector<64x512xf32>
    %cst_6 = arith.constant 0.000000e+00 : f32
    %9 = vector.broadcast %cst_6 : f32 to vector<64x512xf32>
    %10 = arith.cmpf ogt, %8, %9 : vector<64x512xf32>
    %cst_7 = arith.constant 0.00999999977 : f32
    %11 = vector.broadcast %cst_7 : f32 to vector<64x512xf32>
    %12 = arith.mulf %11, %8 : vector<64x512xf32>
    %13 = arith.select %10, %8, %12 : vector<64x512xi1>, vector<64x512xf32>
    %14 = arith.truncf %13 : vector<64x512xf32> to vector<64x512xbf16>
    %c0_8 = arith.constant 0 : index
    %c0_9 = arith.constant 0 : index
    %15 = vector.load %arg4[%c0_8, %c0_9] : memref<512x256xbf16, #tpu.memory_space<vmem>>, vector<512x256xbf16>
    %cst_10 = arith.constant dense<0.000000e+00> : vector<64x256xf32>
    %16 = tpu.matmul %14, %15, %cst_10 {dimension_numbers = #tpu.dot_dimension_numbers<[1], [0], [0], [1], [0, 0, 1, 1], [], []>} : vector<64x512xbf16>, vector<512x256xbf16>, vector<64x256xf32> -> vector<64x256xf32>
    %c0_11 = arith.constant 0 : index
    %c0_12 = arith.constant 0 : index
    %17 = vector.load %arg5[%c0_11, %c0_12] : memref<1x256xf32, #tpu.memory_space<vmem>>, vector<1x256xf32>
    %18 = vector.broadcast %17 : vector<1x256xf32> to vector<64x256xf32>
    %19 = arith.addf %16, %18 : vector<64x256xf32>
    %20 = math.tanh %19 : vector<64x256xf32>
    %c0_13 = arith.constant 0 : index
    %c0_14 = arith.constant 0 : index
    %21 = vector.load %arg6[%c0_13, %c0_14] : memref<512x256xbf16, #tpu.memory_space<vmem>>, vector<512x256xbf16>
    %cst_15 = arith.constant dense<0.000000e+00> : vector<64x256xf32>
    %22 = tpu.matmul %14, %21, %cst_15 {dimension_numbers = #tpu.dot_dimension_numbers<[1], [0], [0], [1], [0, 0, 1, 1], [], []>} : vector<64x512xbf16>, vector<512x256xbf16>, vector<64x256xf32> -> vector<64x256xf32>
    %c0_16 = arith.constant 0 : index
    %c0_17 = arith.constant 0 : index
    %23 = vector.load %arg7[%c0_16, %c0_17] : memref<1x256xf32, #tpu.memory_space<vmem>>, vector<1x256xf32>
    %24 = vector.broadcast %23 : vector<1x256xf32> to vector<64x256xf32>
    %25 = arith.addf %22, %24 : vector<64x256xf32>
    %26 = arith.negf %25 : vector<64x256xf32>
    %27 = math.exp %26 : vector<64x256xf32>
    %cst_18 = arith.constant 1.000000e+00 : f32
    %28 = vector.broadcast %cst_18 : f32 to vector<64x256xf32>
    %29 = arith.addf %28, %27 : vector<64x256xf32>
    %30 = arith.divf %28, %29 : vector<64x256xf32>
    %31 = arith.mulf %20, %30 : vector<64x256xf32>
    %32 = arith.truncf %31 : vector<64x256xf32> to vector<64x256xbf16>
    %c0_19 = arith.constant 0 : index
    %c0_20 = arith.constant 0 : index
    %33 = vector.load %arg8[%c0_19, %c0_20] : memref<256x8xbf16, #tpu.memory_space<vmem>>, vector<256x8xbf16>
    %cst_21 = arith.constant dense<0.000000e+00> : vector<64x8xf32>
    %34 = tpu.matmul %32, %33, %cst_21 {dimension_numbers = #tpu.dot_dimension_numbers<[1], [0], [0], [1], [0, 0, 1, 1], [], []>} : vector<64x256xbf16>, vector<256x8xbf16>, vector<64x8xf32> -> vector<64x8xf32>
    %c0_22 = arith.constant 0 : index
    %c0_23 = arith.constant 0 : index
    %35 = vector.load %arg9[%c0_22, %c0_23] : memref<1x8xf32, #tpu.memory_space<vmem>>, vector<1x8xf32>
    %36 = vector.broadcast %35 : vector<1x8xf32> to vector<64x8xf32>
    %37 = arith.addf %34, %36 : vector<64x8xf32>
    %c64_i32 = arith.constant 64 : i32
    %38 = arith.muli %arg0, %c64_i32 : i32
    %39 = tpu.iota {dimensions = array<i32: 0>} : vector<64x8xi32>
    %40 = vector.broadcast %38 : i32 to vector<64x8xi32>
    %41 = arith.addi %40, %39 : vector<64x8xi32>
    %c64_i32_24 = arith.constant 64 : i32
    %42 = vector.broadcast %c64_i32_24 : i32 to vector<64x8xi32>
    %43 = arith.cmpi slt, %41, %42 : vector<64x8xi32>
    %cst_25 = arith.constant -1.000000e+30 : f32
    %44 = vector.broadcast %cst_25 : f32 to vector<64x8xf32>
    %45 = arith.select %43, %37, %44 : vector<64x8xi1>, vector<64x8xf32>
    %46 = tpu.transpose %45, [1, 0] : vector<64x8xf32> -> vector<8x64xf32>
    %c0_26 = arith.constant 0 : index
    %c0_27 = arith.constant 0 : index
    %47 = vector.load %arg11[%c0_26, %c0_27] : memref<8x1xf32, #tpu.memory_space<vmem>>, vector<8x1xf32>
    %cst_28 = arith.constant dense<0xFF800000> : vector<8xf32>
    %48 = vector.multi_reduction <maximumf>, %46, %cst_28 [1] : vector<8x64xf32> to vector<8xf32>
    %49 = vector.shape_cast %48 : vector<8xf32> to vector<8x1xf32>
    %50 = arith.maximumf %47, %49 : vector<8x1xf32>
    %51 = arith.subf %47, %50 : vector<8x1xf32>
    %52 = math.exp %51 : vector<8x1xf32>
    %53 = vector.broadcast %50 : vector<8x1xf32> to vector<8x64xf32>
    %54 = arith.subf %46, %53 : vector<8x64xf32>
    %55 = math.exp %54 : vector<8x64xf32>
    %c0_29 = arith.constant 0 : index
    %c0_30 = arith.constant 0 : index
    %56 = vector.load %arg12[%c0_29, %c0_30] : memref<8x1xf32, #tpu.memory_space<vmem>>, vector<8x1xf32>
    %57 = arith.mulf %52, %56 : vector<8x1xf32>
    %cst_31 = arith.constant dense<0.000000e+00> : vector<8xf32>
    %58 = vector.multi_reduction <add>, %55, %cst_31 [1] : vector<8x64xf32> to vector<8xf32>
    %59 = vector.shape_cast %58 : vector<8xf32> to vector<8x1xf32>
    %60 = arith.addf %57, %59 : vector<8x1xf32>
    %c0_32 = arith.constant 0 : index
    %c0_33 = arith.constant 0 : index
    %61 = vector.load %arg12[%c0_32, %c0_33] : memref<8x1xf32, #tpu.memory_space<vmem>>, vector<8x1xf32>
    tpu.vector_store %arg12[%c0_32, %c0_33], %60 {strides = array<i32>} : memref<8x1xf32, #tpu.memory_space<vmem>>, vector<8x1xf32>,
    %c0_34 = arith.constant 0 : index
    %c0_35 = arith.constant 0 : index
    %62 = vector.load %arg13[%c0_34, %c0_35] : memref<8x512xf32, #tpu.memory_space<vmem>>, vector<8x512xf32>
    %63 = vector.broadcast %52 : vector<8x1xf32> to vector<8x512xf32>
    %64 = arith.mulf %63, %62 : vector<8x512xf32>
    %65 = arith.truncf %55 : vector<8x64xf32> to vector<8x64xbf16>
    %cst_36 = arith.constant dense<0.000000e+00> : vector<8x512xf32>
    %66 = tpu.matmul %65, %14, %cst_36 {dimension_numbers = #tpu.dot_dimension_numbers<[1], [0], [0], [1], [0, 0, 1, 1], [], []>} : vector<8x64xbf16>, vector<64x512xbf16>, vector<8x512xf32> -> vector<8x512xf32>
    %67 = arith.addf %64, %66 : vector<8x512xf32>
    %c0_37 = arith.constant 0 : index
    %c0_38 = arith.constant 0 : index
    %68 = vector.load %arg13[%c0_37, %c0_38] : memref<8x512xf32, #tpu.memory_space<vmem>>, vector<8x512xf32>
    tpu.vector_store %arg13[%c0_37, %c0_38], %67 {strides = array<i32>} : memref<8x512xf32, #tpu.memory_space<vmem>>, vector<8x512xf32>,
    %c0_39 = arith.constant 0 : index
    %c0_40 = arith.constant 0 : index
    %69 = vector.load %arg11[%c0_39, %c0_40] : memref<8x1xf32, #tpu.memory_space<vmem>>, vector<8x1xf32>
    tpu.vector_store %arg11[%c0_39, %c0_40], %50 {strides = array<i32>} : memref<8x1xf32, #tpu.memory_space<vmem>>, vector<8x1xf32>,
    %c0_i32_41 = arith.constant 0 : i32
    %70 = arith.cmpi eq, %arg0, %c0_i32_41 : i32
    %71 = arith.extui %70 : i1 to i32
    %c0_i32_42 = arith.constant 0 : i32
    %72 = arith.cmpi ne, %71, %c0_i32_42 : i32
    scf.if %72 {
      %c0_43 = arith.constant 0 : index
      %c0_44 = arith.constant 0 : index
      %73 = vector.load %arg13[%c0_43, %c0_44] : memref<8x512xf32, #tpu.memory_space<vmem>>, vector<8x512xf32>
      %c0_45 = arith.constant 0 : index
      %c0_46 = arith.constant 0 : index
      %74 = vector.load %arg12[%c0_45, %c0_46] : memref<8x1xf32, #tpu.memory_space<vmem>>, vector<8x1xf32>
      %75 = vector.broadcast %74 : vector<8x1xf32> to vector<8x512xf32>
      %76 = arith.divf %73, %75 : vector<8x512xf32>
      %c0_47 = arith.constant 0 : index
      %c0_48 = arith.constant 0 : index
      %77 = vector.load %arg10[%c0_47, %c0_48] : memref<8x512xf32, #tpu.memory_space<vmem>>, vector<8x512xf32>
      tpu.vector_store %arg10[%c0_47, %c0_48], %76 {strides = array<i32>} : memref<8x512xf32, #tpu.memory_space<vmem>>, vector<8x512xf32>,
    } else {
    }
    return
  }
  func.func @transform_0(%arg0: i32) -> (i32, i32) {
    %c0_i32 = arith.constant 0 : i32
    %c0_i32_0 = arith.constant 0 : i32
    return %arg0, %c0_i32 : i32, i32
  }
  func.func @transform_1(%arg0: i32) -> (i32, i32) {
    %c0_i32 = arith.constant 0 : i32
    %c0_i32_0 = arith.constant 0 : i32
    %c0_i32_1 = arith.constant 0 : i32
    return %c0_i32, %c0_i32_0 : i32, i32
  }
  func.func @transform_2(%arg0: i32) -> (i32, i32) {
    %c0_i32 = arith.constant 0 : i32
    %c0_i32_0 = arith.constant 0 : i32
    %c0_i32_1 = arith.constant 0 : i32
    return %c0_i32, %c0_i32_0 : i32, i32
  }
  func.func @transform_3(%arg0: i32) -> (i32, i32) {
    %c0_i32 = arith.constant 0 : i32
    %c0_i32_0 = arith.constant 0 : i32
    %c0_i32_1 = arith.constant 0 : i32
    return %c0_i32, %c0_i32_0 : i32, i32
  }
  func.func @transform_4(%arg0: i32) -> (i32, i32) {
    %c0_i32 = arith.constant 0 : i32
    %c0_i32_0 = arith.constant 0 : i32
    %c0_i32_1 = arith.constant 0 : i32
    return %c0_i32, %c0_i32_0 : i32, i32
  }
  func.func @transform_5(%arg0: i32) -> (i32, i32) {
    %c0_i32 = arith.constant 0 : i32
    %c0_i32_0 = arith.constant 0 : i32
    %c0_i32_1 = arith.constant 0 : i32
    return %c0_i32, %c0_i32_0 : i32, i32
  }
  func.func @transform_6(%arg0: i32) -> (i32, i32) {
    %c0_i32 = arith.constant 0 : i32
    %c0_i32_0 = arith.constant 0 : i32
    %c0_i32_1 = arith.constant 0 : i32
    return %c0_i32, %c0_i32_0 : i32, i32
  }
  func.func @transform_7(%arg0: i32) -> (i32, i32) {
    %c0_i32 = arith.constant 0 : i32
    %c0_i32_0 = arith.constant 0 : i32
    %c0_i32_1 = arith.constant 0 : i32
    return %c0_i32, %c0_i32_0 : i32, i32
  }
  func.func @transform_8(%arg0: i32) -> (i32, i32) {
    %c0_i32 = arith.constant 0 : i32
    %c0_i32_0 = arith.constant 0 : i32
    %c0_i32_1 = arith.constant 0 : i32
    return %c0_i32, %c0_i32_0 : i32, i32
  }
  func.func @transform_9(%arg0: i32) -> (i32, i32) {
    %c0_i32 = arith.constant 0 : i32
    %c0_i32_0 = arith.constant 0 : i32
    %c0_i32_1 = arith.constant 0 : i32
    return %c0_i32, %c0_i32_0 : i32, i32
  }
}

</mosaic_0001>

<llo_original>
// kernel: forward.2
$region0: #{forward.2}
  #allocation0 [shape = 'u32[]', space=smem, size = 0x4, offset = 0x4, fixed_abs, tag = 'smem constant byte address 0x4 - core index']
  #allocation1 [shape = 'u32[144,128]{1,0:T(1,128)}', space=vmem, size = 0x12000, scoped, tag = 'internal scratch']
  #allocation2 [shape = 'f32[8,1]{1,0:T(8,128)}', space=vmem, size = 0x1000, scoped, tag = 'scratch operand']
  #allocation3 [shape = 'f32[8,1]{1,0:T(8,128)}', space=vmem, size = 0x1000, scoped, tag = 'scratch operand']
  #allocation4 [shape = 'f32[8,512]{1,0:T(8,128)}', space=vmem, size = 0x4000, scoped, tag = 'scratch operand']
  %s0 = inlined_call_operand.vmem [shape: bf16[64,512], index: 0, kind: input, shape index: {}]
  %s1 = inlined_call_operand.vmem [shape: bf16[512,512], index: 1, kind: input, shape index: {}]
  %s2 = inlined_call_operand.vmem [shape: f32[1,512], index: 2, kind: input, shape index: {}]
  %s3 = inlined_call_operand.vmem [shape: bf16[512,256], index: 3, kind: input, shape index: {}]
  %s4 = inlined_call_operand.vmem [shape: f32[1,256], index: 4, kind: input, shape index: {}]
  %s5 = inlined_call_operand.vmem [shape: bf16[512,256], index: 5, kind: input, shape index: {}]
  %s6 = inlined_call_operand.vmem [shape: f32[1,256], index: 6, kind: input, shape index: {}]
  %s7 = inlined_call_operand.vmem [shape: bf16[256,8], index: 7, kind: input, shape index: {}]
  %s8 = inlined_call_operand.vmem [shape: f32[1,8], index: 8, kind: input, shape index: {}]
  %s9 = inlined_call_operand.vmem [shape: f32[8,512], index: 9, kind: output, shape index: {}]
  %s10 = sld [smem:[#allocation0]]
  $region54: #{forward.2} parent=0
    _
  %s12 = ssub.s32 1, %s10
  %s13 = scalar_select 0, %s12, %s10
  // Predicated region
  $region2: #{forward.2} parent=0 // pred_check
    _
  $region3: #{forward.2} parent=0 // pred_check_branch
    %15 = sbr.rel (0) target = $region5
  $region4: #{forward.2} parent=0 // pred_region
    _
  $region5: #{forward.2} parent=0 // pred_fallthru
    _
  // Predicated region
  $region6: #{forward.2} parent=0 // pred_check
    _
  $region7: #{forward.2} parent=0 // pred_check_branch
    %17 = sbr.rel (0) target = $region9
  $region8: #{forward.2} parent=0 // pred_region
    _
  $region9: #{forward.2} parent=0 // pred_fallthru
    _
  // Predicated region
  $region10: #{forward.2} parent=0 // pred_check
    _
  $region11: #{forward.2} parent=0 // pred_check_branch
    %19 = sbr.rel (0) target = $region13
  $region12: #{forward.2} parent=0 // pred_region
    _
  $region13: #{forward.2} parent=0 // pred_fallthru
    _
  // Predicated region
  $region14: #{forward.2} parent=0 // pred_check
    _
  $region15: #{forward.2} parent=0 // pred_check_branch
    %21 = sbr.rel (0) target = $region17
  $region16: #{forward.2} parent=0 // pred_region
    _
  $region17: #{forward.2} parent=0 // pred_fallthru
    _
  // Predicated region
  $region18: #{forward.2} parent=0 // pred_check
    _
  $region19: #{forward.2} parent=0 // pred_check_branch
    %23 = sbr.rel (0) target = $region21
  $region20: #{forward.2} parent=0 // pred_region
    _
  $region21: #{forward.2} parent=0 // pred_fallthru
    _
  // Predicated region
  $region22: #{forward.2} parent=0 // pred_check
    _
  $region23: #{forward.2} parent=0 // pred_check_branch
    %25 = sbr.rel (0) target = $region25
  $region24: #{forward.2} parent=0 // pred_region
    _
  $region25: #{forward.2} parent=0 // pred_fallthru
    _
  // Predicated region
  $region26: #{forward.2} parent=0 // pred_check
    _
  $region27: #{forward.2} parent=0 // pred_check_branch
    %27 = sbr.rel (0) target = $region29
  $region28: #{forward.2} parent=0 // pred_region
    _
  $region29: #{forward.2} parent=0 // pred_fallthru
    _
  // Predicated region
  $region30: #{forward.2} parent=0 // pred_check
    _
  $region31: #{forward.2} parent=0 // pred_check_branch
    %29 = sbr.rel (0) target = $region33
  $region32: #{forward.2} parent=0 // pred_region
    _
  $region33: #{forward.2} parent=0 // pred_fallthru
    _
  // Predicated region
  $region34: #{forward.2} parent=0 // pred_check
    _
  $region35: #{forward.2} parent=0 // pred_check_branch
    %31 = sbr.rel (0) target = $region37
  $region36: #{forward.2} parent=0 // pred_region
    _
  $region37: #{forward.2} parent=0 // pred_fallthru
    _
  %p33 = scmp.eq.s32.totalorder 0, 0
  // Predicated region
  $region38: #{forward.2} parent=0 // pred_check
    %p34 = pneg %p33
  $region39: #{forward.2} parent=0 // pred_check_branch
    %36 = sbr.rel (%p34) target = $region41
  $region40: #{forward.2} parent=0 // pred_region
    %vm37 = vcmask 7168
    %38 = vst.msk [vmem:[#allocation2] sm:$0xff] %vm37, -1e+30
    %39 = vst.msk [vmem:[#allocation3] sm:$0xff] %vm37, 0.0
    %40 = vst [vmem:[#allocation4] sm:$0xff] 0.0
    %41 = vst [vmem:[#allocation4 + $0x8] sm:$0xff] 0.0
    %42 = vst [vmem:[#allocation4 + $0x10] sm:$0xff] 0.0
    %43 = vst [vmem:[#allocation4 + $0x18] sm:$0xff] 0.0
  $region41: #{forward.2} parent=0 // pred_fallthru
    _
  %v44 = vld [vmem:[%s0] sm:$0xff]
  %v45 = vld [vmem:[%s0 + $0x8] sm:$0xff]
  %v46 = vld [vmem:[%s0 + $0x10] sm:$0xff]
  %v47 = vld [vmem:[%s0 + $0x18] sm:$0xff]
  %v48 = vld [vmem:[%s0 + $0x20] sm:$0xff]
  %v49 = vld [vmem:[%s0 + $0x28] sm:$0xff]
  %v50 = vld [vmem:[%s0 + $0x30] sm:$0xff]
  %v51 = vld [vmem:[%s0 + $0x38] sm:$0xff]
  %v52 = vld [vmem:[%s0 + $0x40] sm:$0xff]
  %v53 = vld [vmem:[%s0 + $0x48] sm:$0xff]
  %v54 = vld [vmem:[%s0 + $0x50] sm:$0xff]
  %v55 = vld [vmem:[%s0 + $0x58] sm:$0xff]
  %v56 = vld [vmem:[%s0 + $0x60] sm:$0xff]
  %v57 = vld [vmem:[%s0 + $0x68] sm:$0xff]
  %v58 = vld [vmem:[%s0 + $0x70] sm:$0xff]
  %v59 = vld [vmem:[%s0 + $0x78] sm:$0xff]
  %v60 = vld [vmem:[%s1] sm:$0xff]
  %v61 = vld [vmem:[%s1 + $0x8] sm:$0xff]
  %v62 = vld [vmem:[%s1 + $0x10] sm:$0xff]
  %v63 = vld [vmem:[%s1 + $0x18] sm:$0xff]
  %v64 = vld [vmem:[%s1 + $0x20] sm:$0xff]
  %v65 = vld [vmem:[%s1 + $0x28] sm:$0xff]
  %v66 = vld [vmem:[%s1 + $0x30] sm:$0xff]
  %v67 = vld [vmem:[%s1 + $0x38] sm:$0xff]
  %v68 = vld [vmem:[%s1 + $0x40] sm:$0xff]
  %v69 = vld [vmem:[%s1 + $0x48] sm:$0xff]
  %v70 = vld [vmem:[%s1 + $0x50] sm:$0xff]
  %v71 = vld [vmem:[%s1 + $0x58] sm:$0xff]
  %v72 = vld [vmem:[%s1 + $0x60] sm:$0xff]
  %v73 = vld [vmem:[%s1 + $0x68] sm:$0xff]
  %v74 = vld [vmem:[%s1 + $0x70] sm:$0xff]
  %v75 = vld [vmem:[%s1 + $0x78] sm:$0xff]
  %v76 = vld [vmem:[%s1 + $0x80] sm:$0xff]
  %v77 = vld [vmem:[%s1 + $0x88] sm:$0xff]
  %v78 = vld [vmem:[%s1 + $0x90] sm:$0xff]
  %v79 = vld [vmem:[%s1 + $0x98] sm:$0xff]
  %v80 = vld [vmem:[%s1 + $0xa0] sm:$0xff]
  %v81 = vld [vmem:[%s1 + $0xa8] sm:$0xff]
  %v82 = vld [vmem:[%s1 + $0xb0] sm:$0xff]
  %v83 = vld [vmem:[%s1 + $0xb8] sm:$0xff]
  %v84 = vld [vmem:[%s1 + $0xc0] sm:$0xff]
  %v85 = vld [vmem:[%s1 + $0xc8] sm:$0xff]
  %v86 = vld [vmem:[%s1 + $0xd0] sm:$0xff]
  %v87 = vld [vmem:[%s1 + $0xd8] sm:$0xff]
  %v88 = vld [vmem:[%s1 + $0xe0] sm:$0xff]
  %v89 = vld [vmem:[%s1 + $0xe8] sm:$0xff]
  %v90 = vld [vmem:[%s1 + $0xf0] sm:$0xff]
  %v91 = vld [vmem:[%s1 + $0xf8] sm:$0xff]
  %v92 = vld [vmem:[%s1 + $0x100] sm:$0xff]
  %v93 = vld [vmem:[%s1 + $0x108] sm:$0xff]
  %v94 = vld [vmem:[%s1 + $0x110] sm:$0xff]
  %v95 = vld [vmem:[%s1 + $0x118] sm:$0xff]
  %v96 = vld [vmem:[%s1 + $0x120] sm:$0xff]
  %v97 = vld [vmem:[%s1 + $0x128] sm:$0xff]
  %v98 = vld [vmem:[%s1 + $0x130] sm:$0xff]
  %v99 = vld [vmem:[%s1 + $0x138] sm:$0xff]
  %v100 = vld [vmem:[%s1 + $0x140] sm:$0xff]
  %v101 = vld [vmem:[%s1 + $0x148] sm:$0xff]
  %v102 = vld [vmem:[%s1 + $0x150] sm:$0xff]
  %v103 = vld [vmem:[%s1 + $0x158] sm:$0xff]
  %v104 = vld [vmem:[%s1 + $0x160] sm:$0xff]
  %v105 = vld [vmem:[%s1 + $0x168] sm:$0xff]
  %v106 = vld [vmem:[%s1 + $0x170] sm:$0xff]
  %v107 = vld [vmem:[%s1 + $0x178] sm:$0xff]
  %v108 = vld [vmem:[%s1 + $0x180] sm:$0xff]
  %v109 = vld [vmem:[%s1 + $0x188] sm:$0xff]
  %v110 = vld [vmem:[%s1 + $0x190] sm:$0xff]
  %v111 = vld [vmem:[%s1 + $0x198] sm:$0xff]
  %v112 = vld [vmem:[%s1 + $0x1a0] sm:$0xff]
  %v113 = vld [vmem:[%s1 + $0x1a8] sm:$0xff]
  %v114 = vld [vmem:[%s1 + $0x1b0] sm:$0xff]
  %v115 = vld [vmem:[%s1 + $0x1b8] sm:$0xff]
  %v116 = vld [vmem:[%s1 + $0x1c0] sm:$0xff]
  %v117 = vld [vmem:[%s1 + $0x1c8] sm:$0xff]
  %v118 = vld [vmem:[%s1 + $0x1d0] sm:$0xff]
  %v119 = vld [vmem:[%s1 + $0x1d8] sm:$0xff]
  %v120 = vld [vmem:[%s1 + $0x1e0] sm:$0xff]
  %v121 = vld [vmem:[%s1 + $0x1e8] sm:$0xff]
  %v122 = vld [vmem:[%s1 + $0x1f0] sm:$0xff]
  %v123 = vld [vmem:[%s1 + $0x1f8] sm:$0xff]
  %v124 = vld [vmem:[%s1 + $0x200] sm:$0xff]
  %v125 = vld [vmem:[%s1 + $0x208] sm:$0xff]
  %v126 = vld [vmem:[%s1 + $0x210] sm:$0xff]
  %v127 = vld [vmem:[%s1 + $0x218] sm:$0xff]
  %v128 = vld [vmem:[%s1 + $0x220] sm:$0xff]
  %v129 = vld [vmem:[%s1 + $0x228] sm:$0xff]
  %v130 = vld [vmem:[%s1 + $0x230] sm:$0xff]
  %v131 = vld [vmem:[%s1 + $0x238] sm:$0xff]
  %v132 = vld [vmem:[%s1 + $0x240] sm:$0xff]
  %v133 = vld [vmem:[%s1 + $0x248] sm:$0xff]
  %v134 = vld [vmem:[%s1 + $0x250] sm:$0xff]
  %v135 = vld [vmem:[%s1 + $0x258] sm:$0xff]
  %v136 = vld [vmem:[%s1 + $0x260] sm:$0xff]
  %v137 = vld [vmem:[%s1 + $0x268] sm:$0xff]
  %v138 = vld [vmem:[%s1 + $0x270] sm:$0xff]
  %v139 = vld [vmem:[%s1 + $0x278] sm:$0xff]
  %v140 = vld [vmem:[%s1 + $0x280] sm:$0xff]
  %v141 = vld [vmem:[%s1 + $0x288] sm:$0xff]
  %v142 = vld [vmem:[%s1 + $0x290] sm:$0xff]
  %v143 = vld [vmem:[%s1 + $0x298] sm:$0xff]
  %v144 = vld [vmem:[%s1 + $0x2a0] sm:$0xff]
  %v145 = vld [vmem:[%s1 + $0x2a8] sm:$0xff]
  %v146 = vld [vmem:[%s1 + $0x2b0] sm:$0xff]
  %v147 = vld [vmem:[%s1 + $0x2b8] sm:$0xff]
  %v148 = vld [vmem:[%s1 + $0x2c0] sm:$0xff]
  %v149 = vld [vmem:[%s1 + $0x2c8] sm:$0xff]
  %v150 = vld [vmem:[%s1 + $0x2d0] sm:$0xff]
  %v151 = vld [vmem:[%s1 + $0x2d8] sm:$0xff]
  %v152 = vld [vmem:[%s1 + $0x2e0] sm:$0xff]
  %v153 = vld [vmem:[%s1 + $0x2e8] sm:$0xff]
  %v154 = vld [vmem:[%s1 + $0x2f0] sm:$0xff]
  %v155 = vld [vmem:[%s1 + $0x2f8] sm:$0xff]
  %v156 = vld [vmem:[%s1 + $0x300] sm:$0xff]
  %v157 = vld [vmem:[%s1 + $0x308] sm:$0xff]
  %v158 = vld [vmem:[%s1 + $0x310] sm:$0xff]
  %v159 = vld [vmem:[%s1 + $0x318] sm:$0xff]
  %v160 = vld [vmem:[%s1 + $0x320] sm:$0xff]
  %v161 = vld [vmem:[%s1 + $0x328] sm:$0xff]
  %v162 = vld [vmem:[%s1 + $0x330] sm:$0xff]
  %v163 = vld [vmem:[%s1 + $0x338] sm:$0xff]
  %v164 = vld [vmem:[%s1 + $0x340] sm:$0xff]
  %v165 = vld [vmem:[%s1 + $0x348] sm:$0xff]
  %v166 = vld [vmem:[%s1 + $0x350] sm:$0xff]
  %v167 = vld [vmem:[%s1 + $0x358] sm:$0xff]
  %v168 = vld [vmem:[%s1 + $0x360] sm:$0xff]
  %v169 = vld [vmem:[%s1 + $0x368] sm:$0xff]
  %v170 = vld [vmem:[%s1 + $0x370] sm:$0xff]
  %v171 = vld [vmem:[%s1 + $0x378] sm:$0xff]
  %v172 = vld [vmem:[%s1 + $0x380] sm:$0xff]
  %v173 = vld [vmem:[%s1 + $0x388] sm:$0xff]
  %v174 = vld [vmem:[%s1 + $0x390] sm:$0xff]
  %v175 = vld [vmem:[%s1 + $0x398] sm:$0xff]
  %v176 = vld [vmem:[%s1 + $0x3a0] sm:$0xff]
  %v177 = vld [vmem:[%s1 + $0x3a8] sm:$0xff]
  %v178 = vld [vmem:[%s1 + $0x3b0] sm:$0xff]
  %v179 = vld [vmem:[%s1 + $0x3b8] sm:$0xff]
  %v180 = vld [vmem:[%s1 + $0x3c0] sm:$0xff]
  %v181 = vld [vmem:[%s1 + $0x3c8] sm:$0xff]
  %v182 = vld [vmem:[%s1 + $0x3d0] sm:$0xff]
  %v183 = vld [vmem:[%s1 + $0x3d8] sm:$0xff]
  %v184 = vld [vmem:[%s1 + $0x3e0] sm:$0xff]
  %v185 = vld [vmem:[%s1 + $0x3e8] sm:$0xff]
  %v186 = vld [vmem:[%s1 + $0x3f0] sm:$0xff]
  %v187 = vld [vmem:[%s1 + $0x3f8] sm:$0xff]
  %v188 = vld [vmem:[%s2] sm:$0xf]
  %v190 = vlaneseq
  %v191 = vshrl.u32 %v190, 7
  %v192 = vsub.s32 0, %v191
  %v193 = vrot.slane %v188, %v192
  %v194 = vlaneseq
  %v195 = vshrl.u32 %v194, 7
  %v196 = vsub.s32 1, %v195
  %v197 = vrot.slane %v188, %v196
  %v198 = vlaneseq
  %v199 = vshrl.u32 %v198, 7
  %v200 = vsub.s32 2, %v199
  %v201 = vrot.slane %v188, %v200
  %v202 = vlaneseq
  %v203 = vshrl.u32 %v202, 7
  %v204 = vsub.s32 3, %v203
  %v205 = vrot.slane %v188, %v204
  %v226 = vunpack.c.l.b16 %v44
  %v227 = vunpack.c.h.b16 %v44
  %v228 = vunpack.c.l.b16 %v45
  %v229 = vunpack.c.h.b16 %v45
  %v230 = vunpack.c.l.b16 %v46
  %v231 = vunpack.c.h.b16 %v46
  %v232 = vunpack.c.l.b16 %v47
  %v233 = vunpack.c.h.b16 %v47
  %v234 = vunpack.c.l.b16 %v48
  %v235 = vunpack.c.h.b16 %v48
  %v236 = vunpack.c.l.b16 %v49
  %v237 = vunpack.c.h.b16 %v49
  %v238 = vunpack.c.l.b16 %v50
  %v239 = vunpack.c.h.b16 %v50
  %v240 = vunpack.c.l.b16 %v51
  %v241 = vunpack.c.h.b16 %v51
  %v242 = vunpack.c.l.b16 %v52
  %v243 = vunpack.c.h.b16 %v52
  %v244 = vunpack.c.l.b16 %v53
  %v245 = vunpack.c.h.b16 %v53
  %v246 = vunpack.c.l.b16 %v54
  %v247 = vunpack.c.h.b16 %v54
  %v248 = vunpack.c.l.b16 %v55
  %v249 = vunpack.c.h.b16 %v55
  %v250 = vunpack.c.l.b16 %v56
  %v251 = vunpack.c.h.b16 %v56
  %v252 = vunpack.c.l.b16 %v57
  %v253 = vunpack.c.h.b16 %v57
  %v254 = vunpack.c.l.b16 %v58
  %v255 = vunpack.c.h.b16 %v58
  %v256 = vunpack.c.l.b16 %v59
  %v257 = vunpack.c.h.b16 %v59
  %v258 = vpack.c.b16 %v230, %v226
  %v259 = vpack.c.b16 %v231, %v227
  %v260 = vpack.c.b16 %v232, %v228
  %v261 = vpack.c.b16 %v233, %v229
  %v262 = vpack.c.b16 %v238, %v234
  %v263 = vpack.c.b16 %v239, %v235
  %v264 = vpack.c.b16 %v240, %v236
  %v265 = vpack.c.b16 %v241, %v237
  %v266 = vpack.c.b16 %v246, %v242
  %v267 = vpack.c.b16 %v247, %v243
  %v268 = vpack.c.b16 %v248, %v244
  %v269 = vpack.c.b16 %v249, %v245
  %v270 = vpack.c.b16 %v254, %v250
  %v271 = vpack.c.b16 %v255, %v251
  %v272 = vpack.c.b16 %v256, %v252
  %v273 = vpack.c.b16 %v257, %v253
  %v418 = vunpack.c.l.b16 %v60
  %v419 = vunpack.c.h.b16 %v60
  %v420 = vunpack.c.l.b16 %v61
  %v421 = vunpack.c.h.b16 %v61
  %v422 = vunpack.c.l.b16 %v62
  %v423 = vunpack.c.h.b16 %v62
  %v424 = vunpack.c.l.b16 %v63
  %v425 = vunpack.c.h.b16 %v63
  %v426 = vunpack.c.l.b16 %v64
  %v427 = vunpack.c.h.b16 %v64
  %v428 = vunpack.c.l.b16 %v65
  %v429 = vunpack.c.h.b16 %v65
  %v430 = vunpack.c.l.b16 %v66
  %v431 = vunpack.c.h.b16 %v66
  %v432 = vunpack.c.l.b16 %v67
  %v433 = vunpack.c.h.b16 %v67
  %v434 = vunpack.c.l.b16 %v68
  %v435 = vunpack.c.h.b16 %v68
  %v436 = vunpack.c.l.b16 %v69
  %v437 = vunpack.c.h.b16 %v69
  %v438 = vunpack.c.l.b16 %v70
  %v439 = vunpack.c.h.b16 %v70
  %v440 = vunpack.c.l.b16 %v71
  %v441 = vunpack.c.h.b16 %v71
  %v442 = vunpack.c.l.b16 %v72
  %v443 = vunpack.c.h.b16 %v72
  %v444 = vunpack.c.l.b16 %v73
  %v445 = vunpack.c.h.b16 %v73
  %v446 = vunpack.c.l.b16 %v74
  %v447 = vunpack.c.h.b16 %v74
  %v448 = vunpack.c.l.b16 %v75
  %v449 = vunpack.c.h.b16 %v75
  %v450 = vunpack.c.l.b16 %v76
  %v451 = vunpack.c.h.b16 %v76
  %v452 = vunpack.c.l.b16 %v77
  %v453 = vunpack.c.h.b16 %v77
  %v454 = vunpack.c.l.b16 %v78
  %v455 = vunpack.c.h.b16 %v78
  %v456 = vunpack.c.l.b16 %v79
  %v457 = vunpack.c.h.b16 %v79
  %v458 = vunpack.c.l.b16 %v80
  %v459 = vunpack.c.h.b16 %v80
  %v460 = vunpack.c.l.b16 %v81
  %v461 = vunpack.c.h.b16 %v81
  %v462 = vunpack.c.l.b16 %v82
  %v463 = vunpack.c.h.b16 %v82
  %v464 = vunpack.c.l.b16 %v83
  %v465 = vunpack.c.h.b16 %v83
  %v466 = vunpack.c.l.b16 %v84
  %v467 = vunpack.c.h.b16 %v84
  %v468 = vunpack.c.l.b16 %v85
  %v469 = vunpack.c.h.b16 %v85
  %v470 = vunpack.c.l.b16 %v86
  %v471 = vunpack.c.h.b16 %v86
  %v472 = vunpack.c.l.b16 %v87
  %v473 = vunpack.c.h.b16 %v87
  %v474 = vunpack.c.l.b16 %v88
  %v475 = vunpack.c.h.b16 %v88
  %v476 = vunpack.c.l.b16 %v89
  %v477 = vunpack.c.h.b16 %v89
  %v478 = vunpack.c.l.b16 %v90
  %v479 = vunpack.c.h.b16 %v90
  %v480 = vunpack.c.l.b16 %v91
  %v481 = vunpack.c.h.b16 %v91
  %v482 = vunpack.c.l.b16 %v92
  %v483 = vunpack.c.h.b16 %v92
  %v484 = vunpack.c.l.b16 %v93
  %v485 = vunpack.c.h.b16 %v93
  %v486 = vunpack.c.l.b16 %v94
  %v487 = vunpack.c.h.b16 %v94
  %v488 = vunpack.c.l.b16 %v95
  %v489 = vunpack.c.h.b16 %v95
  %v490 = vunpack.c.l.b16 %v96
  %v491 = vunpack.c.h.b16 %v96
  %v492 = vunpack.c.l.b16 %v97
  %v493 = vunpack.c.h.b16 %v97
  %v494 = vunpack.c.l.b16 %v98
  %v495 = vunpack.c.h.b16 %v98
  %v496 = vunpack.c.l.b16 %v99
  %v497 = vunpack.c.h.b16 %v99
  %v498 = vunpack.c.l.b16 %v100
  %v499 = vunpack.c.h.b16 %v100
  %v500 = vunpack.c.l.b16 %v101
  %v501 = vunpack.c.h.b16 %v101
  %v502 = vunpack.c.l.b16 %v102
  %v503 = vunpack.c.h.b16 %v102
  %v504 = vunpack.c.l.b16 %v103
  %v505 = vunpack.c.h.b16 %v103
  %v506 = vunpack.c.l.b16 %v104
  %v507 = vunpack.c.h.b16 %v104
  %v508 = vunpack.c.l.b16 %v105
  %v509 = vunpack.c.h.b16 %v105
  %v510 = vunpack.c.l.b16 %v106
  %v511 = vunpack.c.h.b16 %v106
  %v512 = vunpack.c.l.b16 %v107
  %v513 = vunpack.c.h.b16 %v107
  %v514 = vunpack.c.l.b16 %v108
  %v515 = vunpack.c.h.b16 %v108
  %v516 = vunpack.c.l.b16 %v109
  %v517 = vunpack.c.h.b16 %v109
  %v518 = vunpack.c.l.b16 %v110
  %v519 = vunpack.c.h.b16 %v110
  %v520 = vunpack.c.l.b16 %v111
  %v521 = vunpack.c.h.b16 %v111
  %v522 = vunpack.c.l.b16 %v112
  %v523 = vunpack.c.h.b16 %v112
  %v524 = vunpack.c.l.b16 %v113
  %v525 = vunpack.c.h.b16 %v113
  %v526 = vunpack.c.l.b16 %v114
  %v527 = vunpack.c.h.b16 %v114
  %v528 = vunpack.c.l.b16 %v115
  %v529 = vunpack.c.h.b16 %v115
  %v530 = vunpack.c.l.b16 %v116
  %v531 = vunpack.c.h.b16 %v116
  %v532 = vunpack.c.l.b16 %v117
  %v533 = vunpack.c.h.b16 %v117
  %v534 = vunpack.c.l.b16 %v118
  %v535 = vunpack.c.h.b16 %v118
  %v536 = vunpack.c.l.b16 %v119
  %v537 = vunpack.c.h.b16 %v119
  %v538 = vunpack.c.l.b16 %v120
  %v539 = vunpack.c.h.b16 %v120
  %v540 = vunpack.c.l.b16 %v121
  %v541 = vunpack.c.h.b16 %v121
  %v542 = vunpack.c.l.b16 %v122
  %v543 = vunpack.c.h.b16 %v122
  %v544 = vunpack.c.l.b16 %v123
  %v545 = vunpack.c.h.b16 %v123
  %v546 = vunpack.c.l.b16 %v124
  %v547 = vunpack.c.h.b16 %v124
  %v548 = vunpack.c.l.b16 %v125
  %v549 = vunpack.c.h.b16 %v125
  %v550 = vunpack.c.l.b16 %v126
  %v551 = vunpack.c.h.b16 %v126
  %v552 = vunpack.c.l.b16 %v127
  %v553 = vunpack.c.h.b16 %v127
  %v554 = vunpack.c.l.b16 %v128
  %v555 = vunpack.c.h.b16 %v128
  %v556 = vunpack.c.l.b16 %v129
  %v557 = vunpack.c.h.b16 %v129
  %v558 = vunpack.c.l.b16 %v130
  %v559 = vunpack.c.h.b16 %v130
  %v560 = vunpack.c.l.b16 %v131
  %v561 = vunpack.c.h.b16 %v131
  %v562 = vunpack.c.l.b16 %v132
  %v563 = vunpack.c.h.b16 %v132
  %v564 = vunpack.c.l.b16 %v133
  %v565 = vunpack.c.h.b16 %v133
  %v566 = vunpack.c.l.b16 %v134
  %v567 = vunpack.c.h.b16 %v134
  %v568 = vunpack.c.l.b16 %v135
  %v569 = vunpack.c.h.b16 %v135
  %v570 = vunpack.c.l.b16 %v136
  %v571 = vunpack.c.h.b16 %v136
  %v572 = vunpack.c.l.b16 %v137
  %v573 = vunpack.c.h.b16 %v137
  %v574 = vunpack.c.l.b16 %v138
  %v575 = vunpack.c.h.b16 %v138
  %v576 = vunpack.c.l.b16 %v139
  %v577 = vunpack.c.h.b16 %v139
  %v578 = vunpack.c.l.b16 %v140
  %v579 = vunpack.c.h.b16 %v140
  %v580 = vunpack.c.l.b16 %v141
  %v581 = vunpack.c.h.b16 %v141
  %v582 = vunpack.c.l.b16 %v142
  %v583 = vunpack.c.h.b16 %v142
  %v584 = vunpack.c.l.b16 %v143
  %v585 = vunpack.c.h.b16 %v143
  %v586 = vunpack.c.l.b16 %v144
  %v587 = vunpack.c.h.b16 %v144
  %v588 = vunpack.c.l.b16 %v145
  %v589 = vunpack.c.h.b16 %v145
  %v590 = vunpack.c.l.b16 %v146
  %v591 = vunpack.c.h.b16 %v146
  %v592 = vunpack.c.l.b16 %v147
  %v593 = vunpack.c.h.b16 %v147
  %v594 = vunpack.c.l.b16 %v148
  %v595 = vunpack.c.h.b16 %v148
  %v596 = vunpack.c.l.b16 %v149
  %v597 = vunpack.c.h.b16 %v149
  %v598 = vunpack.c.l.b16 %v150
  %v599 = vunpack.c.h.b16 %v150
  %v600 = vunpack.c.l.b16 %v151
  %v601 = vunpack.c.h.b16 %v151
  %v602 = vunpack.c.l.b16 %v152
  %v603 = vunpack.c.h.b16 %v152
  %v604 = vunpack.c.l.b16 %v153
  %v605 = vunpack.c.h.b16 %v153
  %v606 = vunpack.c.l.b16 %v154
  %v607 = vunpack.c.h.b16 %v154
  %v608 = vunpack.c.l.b16 %v155
  %v609 = vunpack.c.h.b16 %v155
  %v610 = vunpack.c.l.b16 %v156
  %v611 = vunpack.c.h.b16 %v156
  %v612 = vunpack.c.l.b16 %v157
  %v613 = vunpack.c.h.b16 %v157
  %v614 = vunpack.c.l.b16 %v158
  %v615 = vunpack.c.h.b16 %v158
  %v616 = vunpack.c.l.b16 %v159
  %v617 = vunpack.c.h.b16 %v159
  %v618 = vunpack.c.l.b16 %v160
  %v619 = vunpack.c.h.b16 %v160
  %v620 = vunpack.c.l.b16 %v161
  %v621 = vunpack.c.h.b16 %v161
  %v622 = vunpack.c.l.b16 %v162
  %v623 = vunpack.c.h.b16 %v162
  %v624 = vunpack.c.l.b16 %v163
  %v625 = vunpack.c.h.b16 %v163
  %v626 = vunpack.c.l.b16 %v164
  %v627 = vunpack.c.h.b16 %v164
  %v628 = vunpack.c.l.b16 %v165
  %v629 = vunpack.c.h.b16 %v165
  %v630 = vunpack.c.l.b16 %v166
  %v631 = vunpack.c.h.b16 %v166
  %v632 = vunpack.c.l.b16 %v167
  %v633 = vunpack.c.h.b16 %v167
  %v634 = vunpack.c.l.b16 %v168
  %v635 = vunpack.c.h.b16 %v168
  %v636 = vunpack.c.l.b16 %v169
  %v637 = vunpack.c.h.b16 %v169
  %v638 = vunpack.c.l.b16 %v170
  %v639 = vunpack.c.h.b16 %v170
  %v640 = vunpack.c.l.b16 %v171
  %v641 = vunpack.c.h.b16 %v171
  %v642 = vunpack.c.l.b16 %v172
  %v643 = vunpack.c.h.b16 %v172
  %v644 = vunpack.c.l.b16 %v173
  %v645 = vunpack.c.h.b16 %v173
  %v646 = vunpack.c.l.b16 %v174
  %v647 = vunpack.c.h.b16 %v174
  %v648 = vunpack.c.l.b16 %v175
  %v649 = vunpack.c.h.b16 %v175
  %v650 = vunpack.c.l.b16 %v176
  %v651 = vunpack.c.h.b16 %v176
  %v652 = vunpack.c.l.b16 %v177
  %v653 = vunpack.c.h.b16 %v177
  %v654 = vunpack.c.l.b16 %v178
  %v655 = vunpack.c.h.b16 %v178
  %v656 = vunpack.c.l.b16 %v179
  %v657 = vunpack.c.h.b16 %v179
  %v658 = vunpack.c.l.b16 %v180
  %v659 = vunpack.c.h.b16 %v180
  %v660 = vunpack.c.l.b16 %v181
  %v661 = vunpack.c.h.b16 %v181
  %v662 = vunpack.c.l.b16 %v182
  %v663 = vunpack.c.h.b16 %v182
  %v664 = vunpack.c.l.b16 %v183
  %v665 = vunpack.c.h.b16 %v183
  %v666 = vunpack.c.l.b16 %v184
  %v667 = vunpack.c.h.b16 %v184
  %v668 = vunpack.c.l.b16 %v185
  %v669 = vunpack.c.h.b16 %v185
  %v670 = vunpack.c.l.b16 %v186
  %v671 = vunpack.c.h.b16 %v186
  %v672 = vunpack.c.l.b16 %v187
  %v673 = vunpack.c.h.b16 %v187
  %v674 = vpack.c.b16 %v422, %v418
  %v675 = vpack.c.b16 %v423, %v419
  %v676 = vpack.c.b16 %v424, %v420
  %v677 = vpack.c.b16 %v425, %v421
  %v678 = vpack.c.b16 %v430, %v426
  %v679 = vpack.c.b16 %v431, %v427
  %v680 = vpack.c.b16 %v432, %v428
  %v681 = vpack.c.b16 %v433, %v429
  %v682 = vpack.c.b16 %v438, %v434
  %v683 = vpack.c.b16 %v439, %v435
  %v684 = vpack.c.b16 %v440, %v436
  %v685 = vpack.c.b16 %v441, %v437
  %v686 = vpack.c.b16 %v446, %v442
  %v687 = vpack.c.b16 %v447, %v443
  %v688 = vpack.c.b16 %v448, %v444
  %v689 = vpack.c.b16 %v449, %v445
  %v690 = vpack.c.b16 %v454, %v450
  %v691 = vpack.c.b16 %v455, %v451
  %v692 = vpack.c.b16 %v456, %v452
  %v693 = vpack.c.b16 %v457, %v453
  %v694 = vpack.c.b16 %v462, %v458
  %v695 = vpack.c.b16 %v463, %v459
  %v696 = vpack.c.b16 %v464, %v460
  %v697 = vpack.c.b16 %v465, %v461
  %v698 = vpack.c.b16 %v470, %v466
  %v699 = vpack.c.b16 %v471, %v467
  %v700 = vpack.c.b16 %v472, %v468
  %v701 = vpack.c.b16 %v473, %v469
  %v702 = vpack.c.b16 %v478, %v474
  %v703 = vpack.c.b16 %v479, %v475
  %v704 = vpack.c.b16 %v480, %v476
  %v705 = vpack.c.b16 %v481, %v477
  %v706 = vpack.c.b16 %v486, %v482
  %v707 = vpack.c.b16 %v487, %v483
  %v708 = vpack.c.b16 %v488, %v484
  %v709 = vpack.c.b16 %v489, %v485
  %v710 = vpack.c.b16 %v494, %v490
  %v711 = vpack.c.b16 %v495, %v491
  %v712 = vpack.c.b16 %v496, %v492
  %v713 = vpack.c.b16 %v497, %v493
  %v714 = vpack.c.b16 %v502, %v498
  %v715 = vpack.c.b16 %v503, %v499
  %v716 = vpack.c.b16 %v504, %v500
  %v717 = vpack.c.b16 %v505, %v501
  %v718 = vpack.c.b16 %v510, %v506
  %v719 = vpack.c.b16 %v511, %v507
  %v720 = vpack.c.b16 %v512, %v508
  %v721 = vpack.c.b16 %v513, %v509
  %v722 = vpack.c.b16 %v518, %v514
  %v723 = vpack.c.b16 %v519, %v515
  %v724 = vpack.c.b16 %v520, %v516
  %v725 = vpack.c.b16 %v521, %v517
  %v726 = vpack.c.b16 %v526, %v522
  %v727 = vpack.c.b16 %v527, %v523
  %v728 = vpack.c.b16 %v528, %v524
  %v729 = vpack.c.b16 %v529, %v525
  %v730 = vpack.c.b16 %v534, %v530
  %v731 = vpack.c.b16 %v535, %v531
  %v732 = vpack.c.b16 %v536, %v532
  %v733 = vpack.c.b16 %v537, %v533
  %v734 = vpack.c.b16 %v542, %v538
  %v735 = vpack.c.b16 %v543, %v539
  %v736 = vpack.c.b16 %v544, %v540
  %v737 = vpack.c.b16 %v545, %v541
  %v738 = vpack.c.b16 %v550, %v546
  %v739 = vpack.c.b16 %v551, %v547
  %v740 = vpack.c.b16 %v552, %v548
  %v741 = vpack.c.b16 %v553, %v549
  %v742 = vpack.c.b16 %v558, %v554
  %v743 = vpack.c.b16 %v559, %v555
  %v744 = vpack.c.b16 %v560, %v556
  %v745 = vpack.c.b16 %v561, %v557
  %v746 = vpack.c.b16 %v566, %v562
  %v747 = vpack.c.b16 %v567, %v563
  %v748 = vpack.c.b16 %v568, %v564
  %v749 = vpack.c.b16 %v569, %v565
  %v750 = vpack.c.b16 %v574, %v570
  %v751 = vpack.c.b16 %v575, %v571
  %v752 = vpack.c.b16 %v576, %v572
  %v753 = vpack.c.b16 %v577, %v573
  %v754 = vpack.c.b16 %v582, %v578
  %v755 = vpack.c.b16 %v583, %v579
  %v756 = vpack.c.b16 %v584, %v580
  %v757 = vpack.c.b16 %v585, %v581
  %v758 = vpack.c.b16 %v590, %v586
  %v759 = vpack.c.b16 %v591, %v587
  %v760 = vpack.c.b16 %v592, %v588
  %v761 = vpack.c.b16 %v593, %v589
  %v762 = vpack.c.b16 %v598, %v594
  %v763 = vpack.c.b16 %v599, %v595
  %v764 = vpack.c.b16 %v600, %v596
  %v765 = vpack.c.b16 %v601, %v597
  %v766 = vpack.c.b16 %v606, %v602
  %v767 = vpack.c.b16 %v607, %v603
  %v768 = vpack.c.b16 %v608, %v604
  %v769 = vpack.c.b16 %v609, %v605
  %v770 = vpack.c.b16 %v614, %v610
  %v771 = vpack.c.b16 %v615, %v611
  %v772 = vpack.c.b16 %v616, %v612
  %v773 = vpack.c.b16 %v617, %v613
  %v774 = vpack.c.b16 %v622, %v618
  %v775 = vpack.c.b16 %v623, %v619
  %v776 = vpack.c.b16 %v624, %v620
  %v777 = vpack.c.b16 %v625, %v621
  %v778 = vpack.c.b16 %v630, %v626
  %v779 = vpack.c.b16 %v631, %v627
  %v780 = vpack.c.b16 %v632, %v628
  %v781 = vpack.c.b16 %v633, %v629
  %v782 = vpack.c.b16 %v638, %v634
  %v783 = vpack.c.b16 %v639, %v635
  %v784 = vpack.c.b16 %v640, %v636
  %v785 = vpack.c.b16 %v641, %v637
  %v786 = vpack.c.b16 %v646, %v642
  %v787 = vpack.c.b16 %v647, %v643
  %v788 = vpack.c.b16 %v648, %v644
  %v789 = vpack.c.b16 %v649, %v645
  %v790 = vpack.c.b16 %v654, %v650
  %v791 = vpack.c.b16 %v655, %v651
  %v792 = vpack.c.b16 %v656, %v652
  %v793 = vpack.c.b16 %v657, %v653
  %v794 = vpack.c.b16 %v662, %v658
  %v795 = vpack.c.b16 %v663, %v659
  %v796 = vpack.c.b16 %v664, %v660
  %v797 = vpack.c.b16 %v665, %v661
  %v798 = vpack.c.b16 %v670, %v666
  %v799 = vpack.c.b16 %v671, %v667
  %v800 = vpack.c.b16 %v672, %v668
  %v801 = vpack.c.b16 %v673, %v669
  %930 = vmatprep.subr.bf16.mxu0 %v703
  %931 = vmatpush1.bf16.msra.mxu0 %v702
  %932 = vmatprep.subr.bf16.mxu0 %v699
  %933 = vmatpush1.bf16.msra.mxu0 %v698
  %934 = vmatprep.subr.bf16.mxu0 %v695
  %935 = vmatpush1.bf16.msra.mxu0 %v694
  %936 = vmatprep.subr.bf16.mxu0 %v691
  %937 = vmatpush1.bf16.msra.mxu0 %v690
  %938 = vmatprep.subr.bf16.mxu0 %v687
  %939 = vmatpush1.bf16.msra.mxu0 %v686
  %940 = vmatprep.subr.bf16.mxu0 %v683
  %941 = vmatpush1.bf16.msra.mxu0 %v682
  %942 = vmatprep.subr.bf16.mxu0 %v679
  %943 = vmatpush1.bf16.msra.mxu0 %v678
  %944 = vmatprep.subr.bf16.mxu0 %v675
  %945 = vmatpush1.bf16.msra.mxu0 %v674
  %946 = vmatprep.subr.bf16.mxu0 %v735
  %947 = vmatpush2.bf16.msra.mxu0 %v734
  %948 = vmatprep.subr.bf16.mxu0 %v731
  %949 = vmatpush2.bf16.msra.mxu0 %v730
  %950 = vmatprep.subr.bf16.mxu0 %v727
  %951 = vmatpush2.bf16.msra.mxu0 %v726
  %952 = vmatprep.subr.bf16.mxu0 %v723
  %953 = vmatpush2.bf16.msra.mxu0 %v722
  %954 = vmatprep.subr.bf16.mxu0 %v719
  %955 = vmatpush2.bf16.msra.mxu0 %v718
  %956 = vmatprep.subr.bf16.mxu0 %v715
  %957 = vmatpush2.bf16.msra.mxu0 %v714
  %958 = vmatprep.subr.bf16.mxu0 %v711
  %959 = vmatpush2.bf16.msra.mxu0 %v710
  %960 = vmatprep.subr.bf16.mxu0 %v707
  %961 = vmatpush2.bf16.msra.mxu0 %v706
  %962 = vmatprep.mubr.bf16.mxu0 %v259
  %963 = vmatmul.mubr.bf16.gmra.mxu0 %v258
  %v964 = vpop.f32.mrf.mxu0
  %v965 = vadd.f32 %v193, %v964
  %v966 = vpop.f32.mrf.mxu0
  %v967 = vadd.f32 %v197, %v966
  %v968 = vpop.f32.mrf.mxu0
  %v969 = vadd.f32 %v193, %v968
  %v970 = vpop.f32.mrf.mxu0
  %v971 = vadd.f32 %v197, %v970
  %972 = vmatprep.mubr.bf16.mxu0 %v263
  %973 = vmatmul.mubr.bf16.gmra.mxu0 %v262
  %v974 = vpop.f32.mrf.mxu0
  %v975 = vadd.f32 %v193, %v974
  %v976 = vpop.f32.mrf.mxu0
  %v977 = vadd.f32 %v197, %v976
  %v978 = vpop.f32.mrf.mxu0
  %v979 = vadd.f32 %v193, %v978
  %v980 = vpop.f32.mrf.mxu0
  %v981 = vadd.f32 %v197, %v980
  %982 = vmatprep.mubr.bf16.mxu0 %v267
  %983 = vmatmul.mubr.bf16.gmra.mxu0 %v266
  %v984 = vpop.f32.mrf.mxu0
  %v985 = vadd.f32 %v193, %v984
  %v986 = vpop.f32.mrf.mxu0
  %v987 = vadd.f32 %v197, %v986
  %v988 = vpop.f32.mrf.mxu0
  %v989 = vadd.f32 %v193, %v988
  %v990 = vpop.f32.mrf.mxu0
  %v991 = vadd.f32 %v197, %v990
  %992 = vmatprep.mubr.bf16.mxu0 %v271
  %993 = vmatmul.mubr.bf16.gmra.mxu0 %v270
  %v994 = vpop.f32.mrf.mxu0
  %v995 = vadd.f32 %v193, %v994
  %v996 = vpop.f32.mrf.mxu0
  %v997 = vadd.f32 %v197, %v996
  %v998 = vpop.f32.mrf.mxu0
  %v999 = vadd.f32 %v193, %v998
  %v1000 = vpop.f32.mrf.mxu0
  %v1001 = vadd.f32 %v197, %v1000
  %1002 = vdwg.mxu0
  %1003 = vmatprep.subr.bf16.mxu0 %v767
  %1004 = vmatpush1.bf16.msra.mxu0 %v766
  %1005 = vmatprep.subr.bf16.mxu0 %v763
  %1006 = vmatpush1.bf16.msra.mxu0 %v762
  %1007 = vmatprep.subr.bf16.mxu0 %v759
  %1008 = vmatpush1.bf16.msra.mxu0 %v758
  %1009 = vmatprep.subr.bf16.mxu0 %v755
  %1010 = vmatpush1.bf16.msra.mxu0 %v754
  %1011 = vmatprep.subr.bf16.mxu0 %v751
  %1012 = vmatpush1.bf16.msra.mxu0 %v750
  %1013 = vmatprep.subr.bf16.mxu0 %v747
  %1014 = vmatpush1.bf16.msra.mxu0 %v746
  %1015 = vmatprep.subr.bf16.mxu0 %v743
  %1016 = vmatpush1.bf16.msra.mxu0 %v742
  %1017 = vmatprep.subr.bf16.mxu0 %v739
  %1018 = vmatpush1.bf16.msra.mxu0 %v738
  %1019 = vmatprep.subr.bf16.mxu0 %v799
  %1020 = vmatpush2.bf16.msra.mxu0 %v798
  %1021 = vmatprep.subr.bf16.mxu0 %v795
  %1022 = vmatpush2.bf16.msra.mxu0 %v794
  %1023 = vmatprep.subr.bf16.mxu0 %v791
  %1024 = vmatpush2.bf16.msra.mxu0 %v790
  %1025 = vmatprep.subr.bf16.mxu0 %v787
  %1026 = vmatpush2.bf16.msra.mxu0 %v786
  %1027 = vmatprep.subr.bf16.mxu0 %v783
  %1028 = vmatpush2.bf16.msra.mxu0 %v782
  %1029 = vmatprep.subr.bf16.mxu0 %v779
  %1030 = vmatpush2.bf16.msra.mxu0 %v778
  %1031 = vmatprep.subr.bf16.mxu0 %v775
  %1032 = vmatpush2.bf16.msra.mxu0 %v774
  %1033 = vmatprep.subr.bf16.mxu0 %v771
  %1034 = vmatpush2.bf16.msra.mxu0 %v770
  %1035 = vmatprep.mubr.bf16.mxu0 %v261
  %1036 = vmatmul.mubr.bf16.gmra.mxu0 %v260
  %v1037 = vpop.f32.mrf.mxu0
  %v1038 = vadd.f32 %v965, %v1037
  %v1039 = vpop.f32.mrf.mxu0
  %v1040 = vadd.f32 %v967, %v1039
  %v1041 = vpop.f32.mrf.mxu0
  %v1042 = vadd.f32 %v969, %v1041
  %v1043 = vpop.f32.mrf.mxu0
  %v1044 = vadd.f32 %v971, %v1043
  %1045 = vmatprep.mubr.bf16.mxu0 %v265
  %1046 = vmatmul.mubr.bf16.gmra.mxu0 %v264
  %v1047 = vpop.f32.mrf.mxu0
  %v1048 = vadd.f32 %v975, %v1047
  %v1049 = vpop.f32.mrf.mxu0
  %v1050 = vadd.f32 %v977, %v1049
  %v1051 = vpop.f32.mrf.mxu0
  %v1052 = vadd.f32 %v979, %v1051
  %v1053 = vpop.f32.mrf.mxu0
  %v1054 = vadd.f32 %v981, %v1053
  %1055 = vmatprep.mubr.bf16.mxu0 %v269
  %1056 = vmatmul.mubr.bf16.gmra.mxu0 %v268
  %v1057 = vpop.f32.mrf.mxu0
  %v1058 = vadd.f32 %v985, %v1057
  %v1059 = vpop.f32.mrf.mxu0
  %v1060 = vadd.f32 %v987, %v1059
  %v1061 = vpop.f32.mrf.mxu0
  %v1062 = vadd.f32 %v989, %v1061
  %v1063 = vpop.f32.mrf.mxu0
  %v1064 = vadd.f32 %v991, %v1063
  %1065 = vmatprep.mubr.bf16.mxu0 %v273
  %1066 = vmatmul.mubr.bf16.gmra.mxu0 %v272
  %v1067 = vpop.f32.mrf.mxu0
  %v1068 = vadd.f32 %v995, %v1067
  %v1069 = vpop.f32.mrf.mxu0
  %v1070 = vadd.f32 %v997, %v1069
  %v1071 = vpop.f32.mrf.mxu0
  %v1072 = vadd.f32 %v999, %v1071
  %v1073 = vpop.f32.mrf.mxu0
  %v1074 = vadd.f32 %v1001, %v1073
  %1075 = vdwg.mxu0
  %1076 = vmatprep.subr.bf16.mxu0 %v705
  %1077 = vmatpush1.bf16.msra.mxu0 %v704
  %1078 = vmatprep.subr.bf16.mxu0 %v701
  %1079 = vmatpush1.bf16.msra.mxu0 %v700
  %1080 = vmatprep.subr.bf16.mxu0 %v697
  %1081 = vmatpush1.bf16.msra.mxu0 %v696
  %1082 = vmatprep.subr.bf16.mxu0 %v693
  %1083 = vmatpush1.bf16.msra.mxu0 %v692
  %1084 = vmatprep.subr.bf16.mxu0 %v689
  %1085 = vmatpush1.bf16.msra.mxu0 %v688
  %1086 = vmatprep.subr.bf16.mxu0 %v685
  %1087 = vmatpush1.bf16.msra.mxu0 %v684
  %1088 = vmatprep.subr.bf16.mxu0 %v681
  %1089 = vmatpush1.bf16.msra.mxu0 %v680
  %1090 = vmatprep.subr.bf16.mxu0 %v677
  %1091 = vmatpush1.bf16.msra.mxu0 %v676
  %1092 = vmatprep.subr.bf16.mxu0 %v737
  %1093 = vmatpush2.bf16.msra.mxu0 %v736
  %1094 = vmatprep.subr.bf16.mxu0 %v733
  %1095 = vmatpush2.bf16.msra.mxu0 %v732
  %1096 = vmatprep.subr.bf16.mxu0 %v729
  %1097 = vmatpush2.bf16.msra.mxu0 %v728
  %1098 = vmatprep.subr.bf16.mxu0 %v725
  %1099 = vmatpush2.bf16.msra.mxu0 %v724
  %1100 = vmatprep.subr.bf16.mxu0 %v721
  %1101 = vmatpush2.bf16.msra.mxu0 %v720
  %1102 = vmatprep.subr.bf16.mxu0 %v717
  %1103 = vmatpush2.bf16.msra.mxu0 %v716
  %1104 = vmatprep.subr.bf16.mxu0 %v713
  %1105 = vmatpush2.bf16.msra.mxu0 %v712
  %1106 = vmatprep.subr.bf16.mxu0 %v709
  %1107 = vmatpush2.bf16.msra.mxu0 %v708
  %1108 = vmatprep.mubr.bf16.mxu0 %v259
  %1109 = vmatmul.mubr.bf16.gmra.mxu0 %v258
  %v1110 = vpop.f32.mrf.mxu0
  %v1111 = vadd.f32 %v201, %v1110
  %v1112 = vpop.f32.mrf.mxu0
  %v1113 = vadd.f32 %v205, %v1112
  %v1114 = vpop.f32.mrf.mxu0
  %v1115 = vadd.f32 %v201, %v1114
  %v1116 = vpop.f32.mrf.mxu0
  %v1117 = vadd.f32 %v205, %v1116
  %1118 = vmatprep.mubr.bf16.mxu0 %v263
  %1119 = vmatmul.mubr.bf16.gmra.mxu0 %v262
  %v1120 = vpop.f32.mrf.mxu0
  %v1121 = vadd.f32 %v201, %v1120
  %v1122 = vpop.f32.mrf.mxu0
  %v1123 = vadd.f32 %v205, %v1122
  %v1124 = vpop.f32.mrf.mxu0
  %v1125 = vadd.f32 %v201, %v1124
  %v1126 = vpop.f32.mrf.mxu0
  %v1127 = vadd.f32 %v205, %v1126
  %1128 = vmatprep.mubr.bf16.mxu0 %v267
  %1129 = vmatmul.mubr.bf16.gmra.mxu0 %v266
  %v1130 = vpop.f32.mrf.mxu0
  %v1131 = vadd.f32 %v201, %v1130
  %v1132 = vpop.f32.mrf.mxu0
  %v1133 = vadd.f32 %v205, %v1132
  %v1134 = vpop.f32.mrf.mxu0
  %v1135 = vadd.f32 %v201, %v1134
  %v1136 = vpop.f32.mrf.mxu0
  %v1137 = vadd.f32 %v205, %v1136
  %1138 = vmatprep.mubr.bf16.mxu0 %v271
  %1139 = vmatmul.mubr.bf16.gmra.mxu0 %v270
  %v1140 = vpop.f32.mrf.mxu0
  %v1141 = vadd.f32 %v201, %v1140
  %v1142 = vpop.f32.mrf.mxu0
  %v1143 = vadd.f32 %v205, %v1142
  %v1144 = vpop.f32.mrf.mxu0
  %v1145 = vadd.f32 %v201, %v1144
  %v1146 = vpop.f32.mrf.mxu0
  %v1147 = vadd.f32 %v205, %v1146
  %1148 = vdwg.mxu0
  %1149 = vmatprep.subr.bf16.mxu0 %v769
  %1150 = vmatpush1.bf16.msra.mxu0 %v768
  %1151 = vmatprep.subr.bf16.mxu0 %v765
  %1152 = vmatpush1.bf16.msra.mxu0 %v764
  %1153 = vmatprep.subr.bf16.mxu0 %v761
  %1154 = vmatpush1.bf16.msra.mxu0 %v760
  %1155 = vmatprep.subr.bf16.mxu0 %v757
  %1156 = vmatpush1.bf16.msra.mxu0 %v756
  %1157 = vmatprep.subr.bf16.mxu0 %v753
  %1158 = vmatpush1.bf16.msra.mxu0 %v752
  %1159 = vmatprep.subr.bf16.mxu0 %v749
  %1160 = vmatpush1.bf16.msra.mxu0 %v748
  %1161 = vmatprep.subr.bf16.mxu0 %v745
  %1162 = vmatpush1.bf16.msra.mxu0 %v744
  %1163 = vmatprep.subr.bf16.mxu0 %v741
  %1164 = vmatpush1.bf16.msra.mxu0 %v740
  %1165 = vmatprep.subr.bf16.mxu0 %v801
  %1166 = vmatpush2.bf16.msra.mxu0 %v800
  %1167 = vmatprep.subr.bf16.mxu0 %v797
  %1168 = vmatpush2.bf16.msra.mxu0 %v796
  %1169 = vmatprep.subr.bf16.mxu0 %v793
  %1170 = vmatpush2.bf16.msra.mxu0 %v792
  %1171 = vmatprep.subr.bf16.mxu0 %v789
  %1172 = vmatpush2.bf16.msra.mxu0 %v788
  %1173 = vmatprep.subr.bf16.mxu0 %v785
  %1174 = vmatpush2.bf16.msra.mxu0 %v784
  %1175 = vmatprep.subr.bf16.mxu0 %v781
  %1176 = vmatpush2.bf16.msra.mxu0 %v780
  %1177 = vmatprep.subr.bf16.mxu0 %v777
  %1178 = vmatpush2.bf16.msra.mxu0 %v776
  %1179 = vmatprep.subr.bf16.mxu0 %v773
  %1180 = vmatpush2.bf16.msra.mxu0 %v772
  %1181 = vmatprep.mubr.bf16.mxu0 %v261
  %1182 = vmatmul.mubr.bf16.gmra.mxu0 %v260
  %v1183 = vpop.f32.mrf.mxu0
  %v1184 = vadd.f32 %v1111, %v1183
  %v1185 = vpop.f32.mrf.mxu0
  %v1186 = vadd.f32 %v1113, %v1185
  %v1187 = vpop.f32.mrf.mxu0
  %v1188 = vadd.f32 %v1115, %v1187
  %v1189 = vpop.f32.mrf.mxu0
  %v1190 = vadd.f32 %v1117, %v1189
  %1191 = vmatprep.mubr.bf16.mxu0 %v265
  %1192 = vmatmul.mubr.bf16.gmra.mxu0 %v264
  %v1193 = vpop.f32.mrf.mxu0
  %v1194 = vadd.f32 %v1121, %v1193
  %v1195 = vpop.f32.mrf.mxu0
  %v1196 = vadd.f32 %v1123, %v1195
  %v1197 = vpop.f32.mrf.mxu0
  %v1198 = vadd.f32 %v1125, %v1197
  %v1199 = vpop.f32.mrf.mxu0
  %v1200 = vadd.f32 %v1127, %v1199
  %1201 = vmatprep.mubr.bf16.mxu0 %v269
  %1202 = vmatmul.mubr.bf16.gmra.mxu0 %v268
  %v1203 = vpop.f32.mrf.mxu0
  %v1204 = vadd.f32 %v1131, %v1203
  %v1205 = vpop.f32.mrf.mxu0
  %v1206 = vadd.f32 %v1133, %v1205
  %v1207 = vpop.f32.mrf.mxu0
  %v1208 = vadd.f32 %v1135, %v1207
  %v1209 = vpop.f32.mrf.mxu0
  %v1210 = vadd.f32 %v1137, %v1209
  %1211 = vmatprep.mubr.bf16.mxu0 %v273
  %1212 = vmatmul.mubr.bf16.gmra.mxu0 %v272
  %v1213 = vpop.f32.mrf.mxu0
  %v1214 = vadd.f32 %v1141, %v1213
  %v1215 = vpop.f32.mrf.mxu0
  %v1216 = vadd.f32 %v1143, %v1215
  %v1217 = vpop.f32.mrf.mxu0
  %v1218 = vadd.f32 %v1145, %v1217
  %v1219 = vpop.f32.mrf.mxu0
  %v1220 = vadd.f32 %v1147, %v1219
  %1221 = vdwg.mxu0
  %vm1222 = vcmp.gt.f32.partialorder %v1038, 0.0
  %vm1223 = vcmp.gt.f32.partialorder %v1040, 0.0
  %vm1224 = vcmp.gt.f32.partialorder %v1184, 0.0
  %vm1225 = vcmp.gt.f32.partialorder %v1186, 0.0
  %vm1226 = vcmp.gt.f32.partialorder %v1042, 0.0
  %vm1227 = vcmp.gt.f32.partialorder %v1044, 0.0
  %vm1228 = vcmp.gt.f32.partialorder %v1188, 0.0
  %vm1229 = vcmp.gt.f32.partialorder %v1190, 0.0
  %vm1230 = vcmp.gt.f32.partialorder %v1048, 0.0
  %vm1231 = vcmp.gt.f32.partialorder %v1050, 0.0
  %vm1232 = vcmp.gt.f32.partialorder %v1194, 0.0
  %vm1233 = vcmp.gt.f32.partialorder %v1196, 0.0
  %vm1234 = vcmp.gt.f32.partialorder %v1052, 0.0
  %vm1235 = vcmp.gt.f32.partialorder %v1054, 0.0
  %vm1236 = vcmp.gt.f32.partialorder %v1198, 0.0
  %vm1237 = vcmp.gt.f32.partialorder %v1200, 0.0
  %vm1238 = vcmp.gt.f32.partialorder %v1058, 0.0
  %vm1239 = vcmp.gt.f32.partialorder %v1060, 0.0
  %vm1240 = vcmp.gt.f32.partialorder %v1204, 0.0
  %vm1241 = vcmp.gt.f32.partialorder %v1206, 0.0
  %vm1242 = vcmp.gt.f32.partialorder %v1062, 0.0
  %vm1243 = vcmp.gt.f32.partialorder %v1064, 0.0
  %vm1244 = vcmp.gt.f32.partialorder %v1208, 0.0
  %vm1245 = vcmp.gt.f32.partialorder %v1210, 0.0
  %vm1246 = vcmp.gt.f32.partialorder %v1068, 0.0
  %vm1247 = vcmp.gt.f32.partialorder %v1070, 0.0
  %vm1248 = vcmp.gt.f32.partialorder %v1214, 0.0
  %vm1249 = vcmp.gt.f32.partialorder %v1216, 0.0
  %vm1250 = vcmp.gt.f32.partialorder %v1072, 0.0
  %vm1251 = vcmp.gt.f32.partialorder %v1074, 0.0
  %vm1252 = vcmp.gt.f32.partialorder %v1218, 0.0
  %vm1253 = vcmp.gt.f32.partialorder %v1220, 0.0
  %v1254 = vmul.f32 %v1038, 0.01
  %v1255 = vmul.f32 %v1040, 0.01
  %v1256 = vmul.f32 %v1184, 0.01
  %v1257 = vmul.f32 %v1186, 0.01
  %v1258 = vmul.f32 %v1042, 0.01
  %v1259 = vmul.f32 %v1044, 0.01
  %v1260 = vmul.f32 %v1188, 0.01
  %v1261 = vmul.f32 %v1190, 0.01
  %v1262 = vmul.f32 %v1048, 0.01
  %v1263 = vmul.f32 %v1050, 0.01
  %v1264 = vmul.f32 %v1194, 0.01
  %v1265 = vmul.f32 %v1196, 0.01
  %v1266 = vmul.f32 %v1052, 0.01
  %v1267 = vmul.f32 %v1054, 0.01
  %v1268 = vmul.f32 %v1198, 0.01
  %v1269 = vmul.f32 %v1200, 0.01
  %v1270 = vmul.f32 %v1058, 0.01
  %v1271 = vmul.f32 %v1060, 0.01
  %v1272 = vmul.f32 %v1204, 0.01
  %v1273 = vmul.f32 %v1206, 0.01
  %v1274 = vmul.f32 %v1062, 0.01
  %v1275 = vmul.f32 %v1064, 0.01
  %v1276 = vmul.f32 %v1208, 0.01
  %v1277 = vmul.f32 %v1210, 0.01
  %v1278 = vmul.f32 %v1068, 0.01
  %v1279 = vmul.f32 %v1070, 0.01
  %v1280 = vmul.f32 %v1214, 0.01
  %v1281 = vmul.f32 %v1216, 0.01
  %v1282 = vmul.f32 %v1072, 0.01
  %v1283 = vmul.f32 %v1074, 0.01
  %v1284 = vmul.f32 %v1218, 0.01
  %v1285 = vmul.f32 %v1220, 0.01
  %v1286 = vsel %vm1222, %v1038, %v1254
  %v1287 = vsel %vm1223, %v1040, %v1255
  %v1288 = vsel %vm1224, %v1184, %v1256
  %v1289 = vsel %vm1225, %v1186, %v1257
  %v1290 = vsel %vm1226, %v1042, %v1258
  %v1291 = vsel %vm1227, %v1044, %v1259
  %v1292 = vsel %vm1228, %v1188, %v1260
  %v1293 = vsel %vm1229, %v1190, %v1261
  %v1294 = vsel %vm1230, %v1048, %v1262
  %v1295 = vsel %vm1231, %v1050, %v1263
  %v1296 = vsel %vm1232, %v1194, %v1264
  %v1297 = vsel %vm1233, %v1196, %v1265
  %v1298 = vsel %vm1234, %v1052, %v1266
  %v1299 = vsel %vm1235, %v1054, %v1267
  %v1300 = vsel %vm1236, %v1198, %v1268
  %v1301 = vsel %vm1237, %v1200, %v1269
  %v1302 = vsel %vm1238, %v1058, %v1270
  %v1303 = vsel %vm1239, %v1060, %v1271
  %v1304 = vsel %vm1240, %v1204, %v1272
  %v1305 = vsel %vm1241, %v1206, %v1273
  %v1306 = vsel %vm1242, %v1062, %v1274
  %v1307 = vsel %vm1243, %v1064, %v1275
  %v1308 = vsel %vm1244, %v1208, %v1276
  %v1309 = vsel %vm1245, %v1210, %v1277
  %v1310 = vsel %vm1246, %v1068, %v1278
  %v1311 = vsel %vm1247, %v1070, %v1279
  %v1312 = vsel %vm1248, %v1214, %v1280
  %v1313 = vsel %vm1249, %v1216, %v1281
  %v1314 = vsel %vm1250, %v1072, %v1282
  %v1315 = vsel %vm1251, %v1074, %v1283
  %v1316 = vsel %vm1252, %v1218, %v1284
  %v1317 = vsel %vm1253, %v1220, %v1285
  %v1318 = vpack.c.bf16 %v1290, %v1286
  %v1319 = vpack.c.bf16 %v1291, %v1287
  %v1320 = vpack.c.bf16 %v1292, %v1288
  %v1321 = vpack.c.bf16 %v1293, %v1289
  %v1322 = vpack.c.bf16 %v1298, %v1294
  %v1323 = vpack.c.bf16 %v1299, %v1295
  %v1324 = vpack.c.bf16 %v1300, %v1296
  %v1325 = vpack.c.bf16 %v1301, %v1297
  %v1326 = vpack.c.bf16 %v1306, %v1302
  %v1327 = vpack.c.bf16 %v1307, %v1303
  %v1328 = vpack.c.bf16 %v1308, %v1304
  %v1329 = vpack.c.bf16 %v1309, %v1305
  %v1330 = vpack.c.bf16 %v1314, %v1310
  %v1331 = vpack.c.bf16 %v1315, %v1311
  %v1332 = vpack.c.bf16 %v1316, %v1312
  %v1333 = vpack.c.bf16 %v1317, %v1313
  %v1334 = vld [vmem:[%s3] sm:$0xff]
  %v1335 = vld [vmem:[%s3 + $0x8] sm:$0xff]
  %v1336 = vld [vmem:[%s3 + $0x10] sm:$0xff]
  %v1337 = vld [vmem:[%s3 + $0x18] sm:$0xff]
  %v1338 = vld [vmem:[%s3 + $0x20] sm:$0xff]
  %v1339 = vld [vmem:[%s3 + $0x28] sm:$0xff]
  %v1340 = vld [vmem:[%s3 + $0x30] sm:$0xff]
  %v1341 = vld [vmem:[%s3 + $0x38] sm:$0xff]
  %v1342 = vld [vmem:[%s3 + $0x40] sm:$0xff]
  %v1343 = vld [vmem:[%s3 + $0x48] sm:$0xff]
  %v1344 = vld [vmem:[%s3 + $0x50] sm:$0xff]
  %v1345 = vld [vmem:[%s3 + $0x58] sm:$0xff]
  %v1346 = vld [vmem:[%s3 + $0x60] sm:$0xff]
  %v1347 = vld [vmem:[%s3 + $0x68] sm:$0xff]
  %v1348 = vld [vmem:[%s3 + $0x70] sm:$0xff]
  %v1349 = vld [vmem:[%s3 + $0x78] sm:$0xff]
  %v1350 = vld [vmem:[%s3 + $0x80] sm:$0xff]
  %v1351 = vld [vmem:[%s3 + $0x88] sm:$0xff]
  %v1352 = vld [vmem:[%s3 + $0x90] sm:$0xff]
  %v1353 = vld [vmem:[%s3 + $0x98] sm:$0xff]
  %v1354 = vld [vmem:[%s3 + $0xa0] sm:$0xff]
  %v1355 = vld [vmem:[%s3 + $0xa8] sm:$0xff]
  %v1356 = vld [vmem:[%s3 + $0xb0] sm:$0xff]
  %v1357 = vld [vmem:[%s3 + $0xb8] sm:$0xff]
  %v1358 = vld [vmem:[%s3 + $0xc0] sm:$0xff]
  %v1359 = vld [vmem:[%s3 + $0xc8] sm:$0xff]
  %v1360 = vld [vmem:[%s3 + $0xd0] sm:$0xff]
  %v1361 = vld [vmem:[%s3 + $0xd8] sm:$0xff]
  %v1362 = vld [vmem:[%s3 + $0xe0] sm:$0xff]
  %v1363 = vld [vmem:[%s3 + $0xe8] sm:$0xff]
  %v1364 = vld [vmem:[%s3 + $0xf0] sm:$0xff]
  %v1365 = vld [vmem:[%s3 + $0xf8] sm:$0xff]
  %v1366 = vld [vmem:[%s3 + $0x100] sm:$0xff]
  %v1367 = vld [vmem:[%s3 + $0x108] sm:$0xff]
  %v1368 = vld [vmem:[%s3 + $0x110] sm:$0xff]
  %v1369 = vld [vmem:[%s3 + $0x118] sm:$0xff]
  %v1370 = vld [vmem:[%s3 + $0x120] sm:$0xff]
  %v1371 = vld [vmem:[%s3 + $0x128] sm:$0xff]
  %v1372 = vld [vmem:[%s3 + $0x130] sm:$0xff]
  %v1373 = vld [vmem:[%s3 + $0x138] sm:$0xff]
  %v1374 = vld [vmem:[%s3 + $0x140] sm:$0xff]
  %v1375 = vld [vmem:[%s3 + $0x148] sm:$0xff]
  %v1376 = vld [vmem:[%s3 + $0x150] sm:$0xff]
  %v1377 = vld [vmem:[%s3 + $0x158] sm:$0xff]
  %v1378 = vld [vmem:[%s3 + $0x160] sm:$0xff]
  %v1379 = vld [vmem:[%s3 + $0x168] sm:$0xff]
  %v1380 = vld [vmem:[%s3 + $0x170] sm:$0xff]
  %v1381 = vld [vmem:[%s3 + $0x178] sm:$0xff]
  %v1382 = vld [vmem:[%s3 + $0x180] sm:$0xff]
  %v1383 = vld [vmem:[%s3 + $0x188] sm:$0xff]
  %v1384 = vld [vmem:[%s3 + $0x190] sm:$0xff]
  %v1385 = vld [vmem:[%s3 + $0x198] sm:$0xff]
  %v1386 = vld [vmem:[%s3 + $0x1a0] sm:$0xff]
  %v1387 = vld [vmem:[%s3 + $0x1a8] sm:$0xff]
  %v1388 = vld [vmem:[%s3 + $0x1b0] sm:$0xff]
  %v1389 = vld [vmem:[%s3 + $0x1b8] sm:$0xff]
  %v1390 = vld [vmem:[%s3 + $0x1c0] sm:$0xff]
  %v1391 = vld [vmem:[%s3 + $0x1c8] sm:$0xff]
  %v1392 = vld [vmem:[%s3 + $0x1d0] sm:$0xff]
  %v1393 = vld [vmem:[%s3 + $0x1d8] sm:$0xff]
  %v1394 = vld [vmem:[%s3 + $0x1e0] sm:$0xff]
  %v1395 = vld [vmem:[%s3 + $0x1e8] sm:$0xff]
  %v1396 = vld [vmem:[%s3 + $0x1f0] sm:$0xff]
  %v1397 = vld [vmem:[%s3 + $0x1f8] sm:$0xff]
  %v1398 = vld [vmem:[%s4] sm:$0x3]
  %v1400 = vlaneseq
  %v1401 = vshrl.u32 %v1400, 7
  %v1402 = vsub.s32 0, %v1401
  %v1403 = vrot.slane %v1398, %v1402
  %v1404 = vlaneseq
  %v1405 = vshrl.u32 %v1404, 7
  %v1406 = vsub.s32 1, %v1405
  %v1407 = vrot.slane %v1398, %v1406
  %v1474 = vunpack.c.l.b16 %v1334
  %v1475 = vunpack.c.h.b16 %v1334
  %v1476 = vunpack.c.l.b16 %v1335
  %v1477 = vunpack.c.h.b16 %v1335
  %v1478 = vunpack.c.l.b16 %v1336
  %v1479 = vunpack.c.h.b16 %v1336
  %v1480 = vunpack.c.l.b16 %v1337
  %v1481 = vunpack.c.h.b16 %v1337
  %v1482 = vunpack.c.l.b16 %v1338
  %v1483 = vunpack.c.h.b16 %v1338
  %v1484 = vunpack.c.l.b16 %v1339
  %v1485 = vunpack.c.h.b16 %v1339
  %v1486 = vunpack.c.l.b16 %v1340
  %v1487 = vunpack.c.h.b16 %v1340
  %v1488 = vunpack.c.l.b16 %v1341
  %v1489 = vunpack.c.h.b16 %v1341
  %v1490 = vunpack.c.l.b16 %v1342
  %v1491 = vunpack.c.h.b16 %v1342
  %v1492 = vunpack.c.l.b16 %v1343
  %v1493 = vunpack.c.h.b16 %v1343
  %v1494 = vunpack.c.l.b16 %v1344
  %v1495 = vunpack.c.h.b16 %v1344
  %v1496 = vunpack.c.l.b16 %v1345
  %v1497 = vunpack.c.h.b16 %v1345
  %v1498 = vunpack.c.l.b16 %v1346
  %v1499 = vunpack.c.h.b16 %v1346
  %v1500 = vunpack.c.l.b16 %v1347
  %v1501 = vunpack.c.h.b16 %v1347
  %v1502 = vunpack.c.l.b16 %v1348
  %v1503 = vunpack.c.h.b16 %v1348
  %v1504 = vunpack.c.l.b16 %v1349
  %v1505 = vunpack.c.h.b16 %v1349
  %v1506 = vunpack.c.l.b16 %v1350
  %v1507 = vunpack.c.h.b16 %v1350
  %v1508 = vunpack.c.l.b16 %v1351
  %v1509 = vunpack.c.h.b16 %v1351
  %v1510 = vunpack.c.l.b16 %v1352
  %v1511 = vunpack.c.h.b16 %v1352
  %v1512 = vunpack.c.l.b16 %v1353
  %v1513 = vunpack.c.h.b16 %v1353
  %v1514 = vunpack.c.l.b16 %v1354
  %v1515 = vunpack.c.h.b16 %v1354
  %v1516 = vunpack.c.l.b16 %v1355
  %v1517 = vunpack.c.h.b16 %v1355
  %v1518 = vunpack.c.l.b16 %v1356
  %v1519 = vunpack.c.h.b16 %v1356
  %v1520 = vunpack.c.l.b16 %v1357
  %v1521 = vunpack.c.h.b16 %v1357
  %v1522 = vunpack.c.l.b16 %v1358
  %v1523 = vunpack.c.h.b16 %v1358
  %v1524 = vunpack.c.l.b16 %v1359
  %v1525 = vunpack.c.h.b16 %v1359
  %v1526 = vunpack.c.l.b16 %v1360
  %v1527 = vunpack.c.h.b16 %v1360
  %v1528 = vunpack.c.l.b16 %v1361
  %v1529 = vunpack.c.h.b16 %v1361
  %v1530 = vunpack.c.l.b16 %v1362
  %v1531 = vunpack.c.h.b16 %v1362
  %v1532 = vunpack.c.l.b16 %v1363
  %v1533 = vunpack.c.h.b16 %v1363
  %v1534 = vunpack.c.l.b16 %v1364
  %v1535 = vunpack.c.h.b16 %v1364
  %v1536 = vunpack.c.l.b16 %v1365
  %v1537 = vunpack.c.h.b16 %v1365
  %v1538 = vunpack.c.l.b16 %v1366
  %v1539 = vunpack.c.h.b16 %v1366
  %v1540 = vunpack.c.l.b16 %v1367
  %v1541 = vunpack.c.h.b16 %v1367
  %v1542 = vunpack.c.l.b16 %v1368
  %v1543 = vunpack.c.h.b16 %v1368
  %v1544 = vunpack.c.l.b16 %v1369
  %v1545 = vunpack.c.h.b16 %v1369
  %v1546 = vunpack.c.l.b16 %v1370
  %v1547 = vunpack.c.h.b16 %v1370
  %v1548 = vunpack.c.l.b16 %v1371
  %v1549 = vunpack.c.h.b16 %v1371
  %v1550 = vunpack.c.l.b16 %v1372
  %v1551 = vunpack.c.h.b16 %v1372
  %v1552 = vunpack.c.l.b16 %v1373
  %v1553 = vunpack.c.h.b16 %v1373
  %v1554 = vunpack.c.l.b16 %v1374
  %v1555 = vunpack.c.h.b16 %v1374
  %v1556 = vunpack.c.l.b16 %v1375
  %v1557 = vunpack.c.h.b16 %v1375
  %v1558 = vunpack.c.l.b16 %v1376
  %v1559 = vunpack.c.h.b16 %v1376
  %v1560 = vunpack.c.l.b16 %v1377
  %v1561 = vunpack.c.h.b16 %v1377
  %v1562 = vunpack.c.l.b16 %v1378
  %v1563 = vunpack.c.h.b16 %v1378
  %v1564 = vunpack.c.l.b16 %v1379
  %v1565 = vunpack.c.h.b16 %v1379
  %v1566 = vunpack.c.l.b16 %v1380
  %v1567 = vunpack.c.h.b16 %v1380
  %v1568 = vunpack.c.l.b16 %v1381
  %v1569 = vunpack.c.h.b16 %v1381
  %v1570 = vunpack.c.l.b16 %v1382
  %v1571 = vunpack.c.h.b16 %v1382
  %v1572 = vunpack.c.l.b16 %v1383
  %v1573 = vunpack.c.h.b16 %v1383
  %v1574 = vunpack.c.l.b16 %v1384
  %v1575 = vunpack.c.h.b16 %v1384
  %v1576 = vunpack.c.l.b16 %v1385
  %v1577 = vunpack.c.h.b16 %v1385
  %v1578 = vunpack.c.l.b16 %v1386
  %v1579 = vunpack.c.h.b16 %v1386
  %v1580 = vunpack.c.l.b16 %v1387
  %v1581 = vunpack.c.h.b16 %v1387
  %v1582 = vunpack.c.l.b16 %v1388
  %v1583 = vunpack.c.h.b16 %v1388
  %v1584 = vunpack.c.l.b16 %v1389
  %v1585 = vunpack.c.h.b16 %v1389
  %v1586 = vunpack.c.l.b16 %v1390
  %v1587 = vunpack.c.h.b16 %v1390
  %v1588 = vunpack.c.l.b16 %v1391
  %v1589 = vunpack.c.h.b16 %v1391
  %v1590 = vunpack.c.l.b16 %v1392
  %v1591 = vunpack.c.h.b16 %v1392
  %v1592 = vunpack.c.l.b16 %v1393
  %v1593 = vunpack.c.h.b16 %v1393
  %v1594 = vunpack.c.l.b16 %v1394
  %v1595 = vunpack.c.h.b16 %v1394
  %v1596 = vunpack.c.l.b16 %v1395
  %v1597 = vunpack.c.h.b16 %v1395
  %v1598 = vunpack.c.l.b16 %v1396
  %v1599 = vunpack.c.h.b16 %v1396
  %v1600 = vunpack.c.l.b16 %v1397
  %v1601 = vunpack.c.h.b16 %v1397
  %v1602 = vpack.c.b16 %v1476, %v1474
  %v1603 = vpack.c.b16 %v1477, %v1475
  %v1604 = vpack.c.b16 %v1480, %v1478
  %v1605 = vpack.c.b16 %v1481, %v1479
  %v1606 = vpack.c.b16 %v1484, %v1482
  %v1607 = vpack.c.b16 %v1485, %v1483
  %v1608 = vpack.c.b16 %v1488, %v1486
  %v1609 = vpack.c.b16 %v1489, %v1487
  %v1610 = vpack.c.b16 %v1492, %v1490
  %v1611 = vpack.c.b16 %v1493, %v1491
  %v1612 = vpack.c.b16 %v1496, %v1494
  %v1613 = vpack.c.b16 %v1497, %v1495
  %v1614 = vpack.c.b16 %v1500, %v1498
  %v1615 = vpack.c.b16 %v1501, %v1499
  %v1616 = vpack.c.b16 %v1504, %v1502
  %v1617 = vpack.c.b16 %v1505, %v1503
  %v1618 = vpack.c.b16 %v1508, %v1506
  %v1619 = vpack.c.b16 %v1509, %v1507
  %v1620 = vpack.c.b16 %v1512, %v1510
  %v1621 = vpack.c.b16 %v1513, %v1511
  %v1622 = vpack.c.b16 %v1516, %v1514
  %v1623 = vpack.c.b16 %v1517, %v1515
  %v1624 = vpack.c.b16 %v1520, %v1518
  %v1625 = vpack.c.b16 %v1521, %v1519
  %v1626 = vpack.c.b16 %v1524, %v1522
  %v1627 = vpack.c.b16 %v1525, %v1523
  %v1628 = vpack.c.b16 %v1528, %v1526
  %v1629 = vpack.c.b16 %v1529, %v1527
  %v1630 = vpack.c.b16 %v1532, %v1530
  %v1631 = vpack.c.b16 %v1533, %v1531
  %v1632 = vpack.c.b16 %v1536, %v1534
  %v1633 = vpack.c.b16 %v1537, %v1535
  %v1634 = vpack.c.b16 %v1540, %v1538
  %v1635 = vpack.c.b16 %v1541, %v1539
  %v1636 = vpack.c.b16 %v1544, %v1542
  %v1637 = vpack.c.b16 %v1545, %v1543
  %v1638 = vpack.c.b16 %v1548, %v1546
  %v1639 = vpack.c.b16 %v1549, %v1547
  %v1640 = vpack.c.b16 %v1552, %v1550
  %v1641 = vpack.c.b16 %v1553, %v1551
  %v1642 = vpack.c.b16 %v1556, %v1554
  %v1643 = vpack.c.b16 %v1557, %v1555
  %v1644 = vpack.c.b16 %v1560, %v1558
  %v1645 = vpack.c.b16 %v1561, %v1559
  %v1646 = vpack.c.b16 %v1564, %v1562
  %v1647 = vpack.c.b16 %v1565, %v1563
  %v1648 = vpack.c.b16 %v1568, %v1566
  %v1649 = vpack.c.b16 %v1569, %v1567
  %v1650 = vpack.c.b16 %v1572, %v1570
  %v1651 = vpack.c.b16 %v1573, %v1571
  %v1652 = vpack.c.b16 %v1576, %v1574
  %v1653 = vpack.c.b16 %v1577, %v1575
  %v1654 = vpack.c.b16 %v1580, %v1578
  %v1655 = vpack.c.b16 %v1581, %v1579
  %v1656 = vpack.c.b16 %v1584, %v1582
  %v1657 = vpack.c.b16 %v1585, %v1583
  %v1658 = vpack.c.b16 %v1588, %v1586
  %v1659 = vpack.c.b16 %v1589, %v1587
  %v1660 = vpack.c.b16 %v1592, %v1590
  %v1661 = vpack.c.b16 %v1593, %v1591
  %v1662 = vpack.c.b16 %v1596, %v1594
  %v1663 = vpack.c.b16 %v1597, %v1595
  %v1664 = vpack.c.b16 %v1600, %v1598
  %v1665 = vpack.c.b16 %v1601, %v1599
  %1730 = vmatprep.subr.bf16.mxu0 %v1617
  %1731 = vmatpush1.bf16.msra.mxu0 %v1616
  %1732 = vmatprep.subr.bf16.mxu0 %v1615
  %1733 = vmatpush1.bf16.msra.mxu0 %v1614
  %1734 = vmatprep.subr.bf16.mxu0 %v1613
  %1735 = vmatpush1.bf16.msra.mxu0 %v1612
  %1736 = vmatprep.subr.bf16.mxu0 %v1611
  %1737 = vmatpush1.bf16.msra.mxu0 %v1610
  %1738 = vmatprep.subr.bf16.mxu0 %v1609
  %1739 = vmatpush1.bf16.msra.mxu0 %v1608
  %1740 = vmatprep.subr.bf16.mxu0 %v1607
  %1741 = vmatpush1.bf16.msra.mxu0 %v1606
  %1742 = vmatprep.subr.bf16.mxu0 %v1605
  %1743 = vmatpush1.bf16.msra.mxu0 %v1604
  %1744 = vmatprep.subr.bf16.mxu0 %v1603
  %1745 = vmatpush1.bf16.msra.mxu0 %v1602
  %1746 = vmatprep.subr.bf16.mxu0 %v1633
  %1747 = vmatpush2.bf16.msra.mxu0 %v1632
  %1748 = vmatprep.subr.bf16.mxu0 %v1631
  %1749 = vmatpush2.bf16.msra.mxu0 %v1630
  %1750 = vmatprep.subr.bf16.mxu0 %v1629
  %1751 = vmatpush2.bf16.msra.mxu0 %v1628
  %1752 = vmatprep.subr.bf16.mxu0 %v1627
  %1753 = vmatpush2.bf16.msra.mxu0 %v1626
  %1754 = vmatprep.subr.bf16.mxu0 %v1625
  %1755 = vmatpush2.bf16.msra.mxu0 %v1624
  %1756 = vmatprep.subr.bf16.mxu0 %v1623
  %1757 = vmatpush2.bf16.msra.mxu0 %v1622
  %1758 = vmatprep.subr.bf16.mxu0 %v1621
  %1759 = vmatpush2.bf16.msra.mxu0 %v1620
  %1760 = vmatprep.subr.bf16.mxu0 %v1619
  %1761 = vmatpush2.bf16.msra.mxu0 %v1618
  %1762 = vmatprep.mubr.bf16.mxu0 %v1319
  %1763 = vmatmul.mubr.bf16.gmra.mxu0 %v1318
  %v1764 = vpop.f32.mrf.mxu0
  %v1765 = vadd.f32 %v1403, %v1764
  %v1766 = vpop.f32.mrf.mxu0
  %v1767 = vadd.f32 %v1407, %v1766
  %v1768 = vpop.f32.mrf.mxu0
  %v1769 = vadd.f32 %v1403, %v1768
  %v1770 = vpop.f32.mrf.mxu0
  %v1771 = vadd.f32 %v1407, %v1770
  %1772 = vmatprep.mubr.bf16.mxu0 %v1323
  %1773 = vmatmul.mubr.bf16.gmra.mxu0 %v1322
  %v1774 = vpop.f32.mrf.mxu0
  %v1775 = vadd.f32 %v1403, %v1774
  %v1776 = vpop.f32.mrf.mxu0
  %v1777 = vadd.f32 %v1407, %v1776
  %v1778 = vpop.f32.mrf.mxu0
  %v1779 = vadd.f32 %v1403, %v1778
  %v1780 = vpop.f32.mrf.mxu0
  %v1781 = vadd.f32 %v1407, %v1780
  %1782 = vmatprep.mubr.bf16.mxu0 %v1327
  %1783 = vmatmul.mubr.bf16.gmra.mxu0 %v1326
  %v1784 = vpop.f32.mrf.mxu0
  %v1785 = vadd.f32 %v1403, %v1784
  %v1786 = vpop.f32.mrf.mxu0
  %v1787 = vadd.f32 %v1407, %v1786
  %v1788 = vpop.f32.mrf.mxu0
  %v1789 = vadd.f32 %v1403, %v1788
  %v1790 = vpop.f32.mrf.mxu0
  %v1791 = vadd.f32 %v1407, %v1790
  %1792 = vmatprep.mubr.bf16.mxu0 %v1331
  %1793 = vmatmul.mubr.bf16.gmra.mxu0 %v1330
  %v1794 = vpop.f32.mrf.mxu0
  %v1795 = vadd.f32 %v1403, %v1794
  %v1796 = vpop.f32.mrf.mxu0
  %v1797 = vadd.f32 %v1407, %v1796
  %v1798 = vpop.f32.mrf.mxu0
  %v1799 = vadd.f32 %v1403, %v1798
  %v1800 = vpop.f32.mrf.mxu0
  %v1801 = vadd.f32 %v1407, %v1800
  %1802 = vdwg.mxu0
  %1803 = vmatprep.subr.bf16.mxu0 %v1649
  %1804 = vmatpush1.bf16.msra.mxu0 %v1648
  %1805 = vmatprep.subr.bf16.mxu0 %v1647
  %1806 = vmatpush1.bf16.msra.mxu0 %v1646
  %1807 = vmatprep.subr.bf16.mxu0 %v1645
  %1808 = vmatpush1.bf16.msra.mxu0 %v1644
  %1809 = vmatprep.subr.bf16.mxu0 %v1643
  %1810 = vmatpush1.bf16.msra.mxu0 %v1642
  %1811 = vmatprep.subr.bf16.mxu0 %v1641
  %1812 = vmatpush1.bf16.msra.mxu0 %v1640
  %1813 = vmatprep.subr.bf16.mxu0 %v1639
  %1814 = vmatpush1.bf16.msra.mxu0 %v1638
  %1815 = vmatprep.subr.bf16.mxu0 %v1637
  %1816 = vmatpush1.bf16.msra.mxu0 %v1636
  %1817 = vmatprep.subr.bf16.mxu0 %v1635
  %1818 = vmatpush1.bf16.msra.mxu0 %v1634
  %1819 = vmatprep.subr.bf16.mxu0 %v1665
  %1820 = vmatpush2.bf16.msra.mxu0 %v1664
  %1821 = vmatprep.subr.bf16.mxu0 %v1663
  %1822 = vmatpush2.bf16.msra.mxu0 %v1662
  %1823 = vmatprep.subr.bf16.mxu0 %v1661
  %1824 = vmatpush2.bf16.msra.mxu0 %v1660
  %1825 = vmatprep.subr.bf16.mxu0 %v1659
  %1826 = vmatpush2.bf16.msra.mxu0 %v1658
  %1827 = vmatprep.subr.bf16.mxu0 %v1657
  %1828 = vmatpush2.bf16.msra.mxu0 %v1656
  %1829 = vmatprep.subr.bf16.mxu0 %v1655
  %1830 = vmatpush2.bf16.msra.mxu0 %v1654
  %1831 = vmatprep.subr.bf16.mxu0 %v1653
  %1832 = vmatpush2.bf16.msra.mxu0 %v1652
  %1833 = vmatprep.subr.bf16.mxu0 %v1651
  %1834 = vmatpush2.bf16.msra.mxu0 %v1650
  %1835 = vmatprep.mubr.bf16.mxu0 %v1321
  %1836 = vmatmul.mubr.bf16.gmra.mxu0 %v1320
  %v1837 = vpop.f32.mrf.mxu0
  %v1838 = vadd.f32 %v1765, %v1837
  %v1839 = vpop.f32.mrf.mxu0
  %v1840 = vadd.f32 %v1767, %v1839
  %v1841 = vpop.f32.mrf.mxu0
  %v1842 = vadd.f32 %v1769, %v1841
  %v1843 = vpop.f32.mrf.mxu0
  %v1844 = vadd.f32 %v1771, %v1843
  %1845 = vmatprep.mubr.bf16.mxu0 %v1325
  %1846 = vmatmul.mubr.bf16.gmra.mxu0 %v1324
  %v1847 = vpop.f32.mrf.mxu0
  %v1848 = vadd.f32 %v1775, %v1847
  %v1849 = vpop.f32.mrf.mxu0
  %v1850 = vadd.f32 %v1777, %v1849
  %v1851 = vpop.f32.mrf.mxu0
  %v1852 = vadd.f32 %v1779, %v1851
  %v1853 = vpop.f32.mrf.mxu0
  %v1854 = vadd.f32 %v1781, %v1853
  %1855 = vmatprep.mubr.bf16.mxu0 %v1329
  %1856 = vmatmul.mubr.bf16.gmra.mxu0 %v1328
  %v1857 = vpop.f32.mrf.mxu0
  %v1858 = vadd.f32 %v1785, %v1857
  %v1859 = vpop.f32.mrf.mxu0
  %v1860 = vadd.f32 %v1787, %v1859
  %v1861 = vpop.f32.mrf.mxu0
  %v1862 = vadd.f32 %v1789, %v1861
  %v1863 = vpop.f32.mrf.mxu0
  %v1864 = vadd.f32 %v1791, %v1863
  %1865 = vmatprep.mubr.bf16.mxu0 %v1333
  %1866 = vmatmul.mubr.bf16.gmra.mxu0 %v1332
  %v1867 = vpop.f32.mrf.mxu0
  %v1868 = vadd.f32 %v1795, %v1867
  %v1869 = vpop.f32.mrf.mxu0
  %v1870 = vadd.f32 %v1797, %v1869
  %v1871 = vpop.f32.mrf.mxu0
  %v1872 = vadd.f32 %v1799, %v1871
  %v1873 = vpop.f32.mrf.mxu0
  %v1874 = vadd.f32 %v1801, %v1873
  %1875 = vdwg.mxu0
  %v1876 = vtanh.pop %v1838
  %v1877 = vtanh.pop %v1840
  %v1878 = vtanh.pop %v1842
  %v1879 = vtanh.pop %v1844
  %v1880 = vtanh.pop %v1848
  %v1881 = vtanh.pop %v1850
  %v1882 = vtanh.pop %v1852
  %v1883 = vtanh.pop %v1854
  %v1884 = vtanh.pop %v1858
  %v1885 = vtanh.pop %v1860
  %v1886 = vtanh.pop %v1862
  %v1887 = vtanh.pop %v1864
  %v1888 = vtanh.pop %v1868
  %v1889 = vtanh.pop %v1870
  %v1890 = vtanh.pop %v1872
  %v1891 = vtanh.pop %v1874
  %v1892 = vld [vmem:[%s5] sm:$0xff]
  %v1893 = vld [vmem:[%s5 + $0x8] sm:$0xff]
  %v1894 = vld [vmem:[%s5 + $0x10] sm:$0xff]
  %v1895 = vld [vmem:[%s5 + $0x18] sm:$0xff]
  %v1896 = vld [vmem:[%s5 + $0x20] sm:$0xff]
  %v1897 = vld [vmem:[%s5 + $0x28] sm:$0xff]
  %v1898 = vld [vmem:[%s5 + $0x30] sm:$0xff]
  %v1899 = vld [vmem:[%s5 + $0x38] sm:$0xff]
  %v1900 = vld [vmem:[%s5 + $0x40] sm:$0xff]
  %v1901 = vld [vmem:[%s5 + $0x48] sm:$0xff]
  %v1902 = vld [vmem:[%s5 + $0x50] sm:$0xff]
  %v1903 = vld [vmem:[%s5 + $0x58] sm:$0xff]
  %v1904 = vld [vmem:[%s5 + $0x60] sm:$0xff]
  %v1905 = vld [vmem:[%s5 + $0x68] sm:$0xff]
  %v1906 = vld [vmem:[%s5 + $0x70] sm:$0xff]
  %v1907 = vld [vmem:[%s5 + $0x78] sm:$0xff]
  %v1908 = vld [vmem:[%s5 + $0x80] sm:$0xff]
  %v1909 = vld [vmem:[%s5 + $0x88] sm:$0xff]
  %v1910 = vld [vmem:[%s5 + $0x90] sm:$0xff]
  %v1911 = vld [vmem:[%s5 + $0x98] sm:$0xff]
  %v1912 = vld [vmem:[%s5 + $0xa0] sm:$0xff]
  %v1913 = vld [vmem:[%s5 + $0xa8] sm:$0xff]
  %v1914 = vld [vmem:[%s5 + $0xb0] sm:$0xff]
  %v1915 = vld [vmem:[%s5 + $0xb8] sm:$0xff]
  %v1916 = vld [vmem:[%s5 + $0xc0] sm:$0xff]
  %v1917 = vld [vmem:[%s5 + $0xc8] sm:$0xff]
  %v1918 = vld [vmem:[%s5 + $0xd0] sm:$0xff]
  %v1919 = vld [vmem:[%s5 + $0xd8] sm:$0xff]
  %v1920 = vld [vmem:[%s5 + $0xe0] sm:$0xff]
  %v1921 = vld [vmem:[%s5 + $0xe8] sm:$0xff]
  %v1922 = vld [vmem:[%s5 + $0xf0] sm:$0xff]
  %v1923 = vld [vmem:[%s5 + $0xf8] sm:$0xff]
  %v1924 = vld [vmem:[%s5 + $0x100] sm:$0xff]
  %v1925 = vld [vmem:[%s5 + $0x108] sm:$0xff]
  %v1926 = vld [vmem:[%s5 + $0x110] sm:$0xff]
  %v1927 = vld [vmem:[%s5 + $0x118] sm:$0xff]
  %v1928 = vld [vmem:[%s5 + $0x120] sm:$0xff]
  %v1929 = vld [vmem:[%s5 + $0x128] sm:$0xff]
  %v1930 = vld [vmem:[%s5 + $0x130] sm:$0xff]
  %v1931 = vld [vmem:[%s5 + $0x138] sm:$0xff]
  %v1932 = vld [vmem:[%s5 + $0x140] sm:$0xff]
  %v1933 = vld [vmem:[%s5 + $0x148] sm:$0xff]
  %v1934 = vld [vmem:[%s5 + $0x150] sm:$0xff]
  %v1935 = vld [vmem:[%s5 + $0x158] sm:$0xff]
  %v1936 = vld [vmem:[%s5 + $0x160] sm:$0xff]
  %v1937 = vld [vmem:[%s5 + $0x168] sm:$0xff]
  %v1938 = vld [vmem:[%s5 + $0x170] sm:$0xff]
  %v1939 = vld [vmem:[%s5 + $0x178] sm:$0xff]
  %v1940 = vld [vmem:[%s5 + $0x180] sm:$0xff]
  %v1941 = vld [vmem:[%s5 + $0x188] sm:$0xff]
  %v1942 = vld [vmem:[%s5 + $0x190] sm:$0xff]
  %v1943 = vld [vmem:[%s5 + $0x198] sm:$0xff]
  %v1944 = vld [vmem:[%s5 + $0x1a0] sm:$0xff]
  %v1945 = vld [vmem:[%s5 + $0x1a8] sm:$0xff]
  %v1946 = vld [vmem:[%s5 + $0x1b0] sm:$0xff]
  %v1947 = vld [vmem:[%s5 + $0x1b8] sm:$0xff]
  %v1948 = vld [vmem:[%s5 + $0x1c0] sm:$0xff]
  %v1949 = vld [vmem:[%s5 + $0x1c8] sm:$0xff]
  %v1950 = vld [vmem:[%s5 + $0x1d0] sm:$0xff]
  %v1951 = vld [vmem:[%s5 + $0x1d8] sm:$0xff]
  %v1952 = vld [vmem:[%s5 + $0x1e0] sm:$0xff]
  %v1953 = vld [vmem:[%s5 + $0x1e8] sm:$0xff]
  %v1954 = vld [vmem:[%s5 + $0x1f0] sm:$0xff]
  %v1955 = vld [vmem:[%s5 + $0x1f8] sm:$0xff]
  %v1956 = vld [vmem:[%s6] sm:$0x3]
  %v1958 = vlaneseq
  %v1959 = vshrl.u32 %v1958, 7
  %v1960 = vsub.s32 0, %v1959
  %v1961 = vrot.slane %v1956, %v1960
  %v1962 = vlaneseq
  %v1963 = vshrl.u32 %v1962, 7
  %v1964 = vsub.s32 1, %v1963
  %v1965 = vrot.slane %v1956, %v1964
  %v2032 = vunpack.c.l.b16 %v1892
  %v2033 = vunpack.c.h.b16 %v1892
  %v2034 = vunpack.c.l.b16 %v1893
  %v2035 = vunpack.c.h.b16 %v1893
  %v2036 = vunpack.c.l.b16 %v1894
  %v2037 = vunpack.c.h.b16 %v1894
  %v2038 = vunpack.c.l.b16 %v1895
  %v2039 = vunpack.c.h.b16 %v1895
  %v2040 = vunpack.c.l.b16 %v1896
  %v2041 = vunpack.c.h.b16 %v1896
  %v2042 = vunpack.c.l.b16 %v1897
  %v2043 = vunpack.c.h.b16 %v1897
  %v2044 = vunpack.c.l.b16 %v1898
  %v2045 = vunpack.c.h.b16 %v1898
  %v2046 = vunpack.c.l.b16 %v1899
  %v2047 = vunpack.c.h.b16 %v1899
  %v2048 = vunpack.c.l.b16 %v1900
  %v2049 = vunpack.c.h.b16 %v1900
  %v2050 = vunpack.c.l.b16 %v1901
  %v2051 = vunpack.c.h.b16 %v1901
  %v2052 = vunpack.c.l.b16 %v1902
  %v2053 = vunpack.c.h.b16 %v1902
  %v2054 = vunpack.c.l.b16 %v1903
  %v2055 = vunpack.c.h.b16 %v1903
  %v2056 = vunpack.c.l.b16 %v1904
  %v2057 = vunpack.c.h.b16 %v1904
  %v2058 = vunpack.c.l.b16 %v1905
  %v2059 = vunpack.c.h.b16 %v1905
  %v2060 = vunpack.c.l.b16 %v1906
  %v2061 = vunpack.c.h.b16 %v1906
  %v2062 = vunpack.c.l.b16 %v1907
  %v2063 = vunpack.c.h.b16 %v1907
  %v2064 = vunpack.c.l.b16 %v1908
  %v2065 = vunpack.c.h.b16 %v1908
  %v2066 = vunpack.c.l.b16 %v1909
  %v2067 = vunpack.c.h.b16 %v1909
  %v2068 = vunpack.c.l.b16 %v1910
  %v2069 = vunpack.c.h.b16 %v1910
  %v2070 = vunpack.c.l.b16 %v1911
  %v2071 = vunpack.c.h.b16 %v1911
  %v2072 = vunpack.c.l.b16 %v1912
  %v2073 = vunpack.c.h.b16 %v1912
  %v2074 = vunpack.c.l.b16 %v1913
  %v2075 = vunpack.c.h.b16 %v1913
  %v2076 = vunpack.c.l.b16 %v1914
  %v2077 = vunpack.c.h.b16 %v1914
  %v2078 = vunpack.c.l.b16 %v1915
  %v2079 = vunpack.c.h.b16 %v1915
  %v2080 = vunpack.c.l.b16 %v1916
  %v2081 = vunpack.c.h.b16 %v1916
  %v2082 = vunpack.c.l.b16 %v1917
  %v2083 = vunpack.c.h.b16 %v1917
  %v2084 = vunpack.c.l.b16 %v1918
  %v2085 = vunpack.c.h.b16 %v1918
  %v2086 = vunpack.c.l.b16 %v1919
  %v2087 = vunpack.c.h.b16 %v1919
  %v2088 = vunpack.c.l.b16 %v1920
  %v2089 = vunpack.c.h.b16 %v1920
  %v2090 = vunpack.c.l.b16 %v1921
  %v2091 = vunpack.c.h.b16 %v1921
  %v2092 = vunpack.c.l.b16 %v1922
  %v2093 = vunpack.c.h.b16 %v1922
  %v2094 = vunpack.c.l.b16 %v1923
  %v2095 = vunpack.c.h.b16 %v1923
  %v2096 = vunpack.c.l.b16 %v1924
  %v2097 = vunpack.c.h.b16 %v1924
  %v2098 = vunpack.c.l.b16 %v1925
  %v2099 = vunpack.c.h.b16 %v1925
  %v2100 = vunpack.c.l.b16 %v1926
  %v2101 = vunpack.c.h.b16 %v1926
  %v2102 = vunpack.c.l.b16 %v1927
  %v2103 = vunpack.c.h.b16 %v1927
  %v2104 = vunpack.c.l.b16 %v1928
  %v2105 = vunpack.c.h.b16 %v1928
  %v2106 = vunpack.c.l.b16 %v1929
  %v2107 = vunpack.c.h.b16 %v1929
  %v2108 = vunpack.c.l.b16 %v1930
  %v2109 = vunpack.c.h.b16 %v1930
  %v2110 = vunpack.c.l.b16 %v1931
  %v2111 = vunpack.c.h.b16 %v1931
  %v2112 = vunpack.c.l.b16 %v1932
  %v2113 = vunpack.c.h.b16 %v1932
  %v2114 = vunpack.c.l.b16 %v1933
  %v2115 = vunpack.c.h.b16 %v1933
  %v2116 = vunpack.c.l.b16 %v1934
  %v2117 = vunpack.c.h.b16 %v1934
  %v2118 = vunpack.c.l.b16 %v1935
  %v2119 = vunpack.c.h.b16 %v1935
  %v2120 = vunpack.c.l.b16 %v1936
  %v2121 = vunpack.c.h.b16 %v1936
  %v2122 = vunpack.c.l.b16 %v1937
  %v2123 = vunpack.c.h.b16 %v1937
  %v2124 = vunpack.c.l.b16 %v1938
  %v2125 = vunpack.c.h.b16 %v1938
  %v2126 = vunpack.c.l.b16 %v1939
  %v2127 = vunpack.c.h.b16 %v1939
  %v2128 = vunpack.c.l.b16 %v1940
  %v2129 = vunpack.c.h.b16 %v1940
  %v2130 = vunpack.c.l.b16 %v1941
  %v2131 = vunpack.c.h.b16 %v1941
  %v2132 = vunpack.c.l.b16 %v1942
  %v2133 = vunpack.c.h.b16 %v1942
  %v2134 = vunpack.c.l.b16 %v1943
  %v2135 = vunpack.c.h.b16 %v1943
  %v2136 = vunpack.c.l.b16 %v1944
  %v2137 = vunpack.c.h.b16 %v1944
  %v2138 = vunpack.c.l.b16 %v1945
  %v2139 = vunpack.c.h.b16 %v1945
  %v2140 = vunpack.c.l.b16 %v1946
  %v2141 = vunpack.c.h.b16 %v1946
  %v2142 = vunpack.c.l.b16 %v1947
  %v2143 = vunpack.c.h.b16 %v1947
  %v2144 = vunpack.c.l.b16 %v1948
  %v2145 = vunpack.c.h.b16 %v1948
  %v2146 = vunpack.c.l.b16 %v1949
  %v2147 = vunpack.c.h.b16 %v1949
  %v2148 = vunpack.c.l.b16 %v1950
  %v2149 = vunpack.c.h.b16 %v1950
  %v2150 = vunpack.c.l.b16 %v1951
  %v2151 = vunpack.c.h.b16 %v1951
  %v2152 = vunpack.c.l.b16 %v1952
  %v2153 = vunpack.c.h.b16 %v1952
  %v2154 = vunpack.c.l.b16 %v1953
  %v2155 = vunpack.c.h.b16 %v1953
  %v2156 = vunpack.c.l.b16 %v1954
  %v2157 = vunpack.c.h.b16 %v1954
  %v2158 = vunpack.c.l.b16 %v1955
  %v2159 = vunpack.c.h.b16 %v1955
  %v2160 = vpack.c.b16 %v2034, %v2032
  %v2161 = vpack.c.b16 %v2035, %v2033
  %v2162 = vpack.c.b16 %v2038, %v2036
  %v2163 = vpack.c.b16 %v2039, %v2037
  %v2164 = vpack.c.b16 %v2042, %v2040
  %v2165 = vpack.c.b16 %v2043, %v2041
  %v2166 = vpack.c.b16 %v2046, %v2044
  %v2167 = vpack.c.b16 %v2047, %v2045
  %v2168 = vpack.c.b16 %v2050, %v2048
  %v2169 = vpack.c.b16 %v2051, %v2049
  %v2170 = vpack.c.b16 %v2054, %v2052
  %v2171 = vpack.c.b16 %v2055, %v2053
  %v2172 = vpack.c.b16 %v2058, %v2056
  %v2173 = vpack.c.b16 %v2059, %v2057
  %v2174 = vpack.c.b16 %v2062, %v2060
  %v2175 = vpack.c.b16 %v2063, %v2061
  %v2176 = vpack.c.b16 %v2066, %v2064
  %v2177 = vpack.c.b16 %v2067, %v2065
  %v2178 = vpack.c.b16 %v2070, %v2068
  %v2179 = vpack.c.b16 %v2071, %v2069
  %v2180 = vpack.c.b16 %v2074, %v2072
  %v2181 = vpack.c.b16 %v2075, %v2073
  %v2182 = vpack.c.b16 %v2078, %v2076
  %v2183 = vpack.c.b16 %v2079, %v2077
  %v2184 = vpack.c.b16 %v2082, %v2080
  %v2185 = vpack.c.b16 %v2083, %v2081
  %v2186 = vpack.c.b16 %v2086, %v2084
  %v2187 = vpack.c.b16 %v2087, %v2085
  %v2188 = vpack.c.b16 %v2090, %v2088
  %v2189 = vpack.c.b16 %v2091, %v2089
  %v2190 = vpack.c.b16 %v2094, %v2092
  %v2191 = vpack.c.b16 %v2095, %v2093
  %v2192 = vpack.c.b16 %v2098, %v2096
  %v2193 = vpack.c.b16 %v2099, %v2097
  %v2194 = vpack.c.b16 %v2102, %v2100
  %v2195 = vpack.c.b16 %v2103, %v2101
  %v2196 = vpack.c.b16 %v2106, %v2104
  %v2197 = vpack.c.b16 %v2107, %v2105
  %v2198 = vpack.c.b16 %v2110, %v2108
  %v2199 = vpack.c.b16 %v2111, %v2109
  %v2200 = vpack.c.b16 %v2114, %v2112
  %v2201 = vpack.c.b16 %v2115, %v2113
  %v2202 = vpack.c.b16 %v2118, %v2116
  %v2203 = vpack.c.b16 %v2119, %v2117
  %v2204 = vpack.c.b16 %v2122, %v2120
  %v2205 = vpack.c.b16 %v2123, %v2121
  %v2206 = vpack.c.b16 %v2126, %v2124
  %v2207 = vpack.c.b16 %v2127, %v2125
  %v2208 = vpack.c.b16 %v2130, %v2128
  %v2209 = vpack.c.b16 %v2131, %v2129
  %v2210 = vpack.c.b16 %v2134, %v2132
  %v2211 = vpack.c.b16 %v2135, %v2133
  %v2212 = vpack.c.b16 %v2138, %v2136
  %v2213 = vpack.c.b16 %v2139, %v2137
  %v2214 = vpack.c.b16 %v2142, %v2140
  %v2215 = vpack.c.b16 %v2143, %v2141
  %v2216 = vpack.c.b16 %v2146, %v2144
  %v2217 = vpack.c.b16 %v2147, %v2145
  %v2218 = vpack.c.b16 %v2150, %v2148
  %v2219 = vpack.c.b16 %v2151, %v2149
  %v2220 = vpack.c.b16 %v2154, %v2152
  %v2221 = vpack.c.b16 %v2155, %v2153
  %v2222 = vpack.c.b16 %v2158, %v2156
  %v2223 = vpack.c.b16 %v2159, %v2157
  %2288 = vmatprep.subr.bf16.mxu0 %v2175
  %2289 = vmatpush1.bf16.msra.mxu0 %v2174
  %2290 = vmatprep.subr.bf16.mxu0 %v2173
  %2291 = vmatpush1.bf16.msra.mxu0 %v2172
  %2292 = vmatprep.subr.bf16.mxu0 %v2171
  %2293 = vmatpush1.bf16.msra.mxu0 %v2170
  %2294 = vmatprep.subr.bf16.mxu0 %v2169
  %2295 = vmatpush1.bf16.msra.mxu0 %v2168
  %2296 = vmatprep.subr.bf16.mxu0 %v2167
  %2297 = vmatpush1.bf16.msra.mxu0 %v2166
  %2298 = vmatprep.subr.bf16.mxu0 %v2165
  %2299 = vmatpush1.bf16.msra.mxu0 %v2164
  %2300 = vmatprep.subr.bf16.mxu0 %v2163
  %2301 = vmatpush1.bf16.msra.mxu0 %v2162
  %2302 = vmatprep.subr.bf16.mxu0 %v2161
  %2303 = vmatpush1.bf16.msra.mxu0 %v2160
  %2304 = vmatprep.subr.bf16.mxu0 %v2191
  %2305 = vmatpush2.bf16.msra.mxu0 %v2190
  %2306 = vmatprep.subr.bf16.mxu0 %v2189
  %2307 = vmatpush2.bf16.msra.mxu0 %v2188
  %2308 = vmatprep.subr.bf16.mxu0 %v2187
  %2309 = vmatpush2.bf16.msra.mxu0 %v2186
  %2310 = vmatprep.subr.bf16.mxu0 %v2185
  %2311 = vmatpush2.bf16.msra.mxu0 %v2184
  %2312 = vmatprep.subr.bf16.mxu0 %v2183
  %2313 = vmatpush2.bf16.msra.mxu0 %v2182
  %2314 = vmatprep.subr.bf16.mxu0 %v2181
  %2315 = vmatpush2.bf16.msra.mxu0 %v2180
  %2316 = vmatprep.subr.bf16.mxu0 %v2179
  %2317 = vmatpush2.bf16.msra.mxu0 %v2178
  %2318 = vmatprep.subr.bf16.mxu0 %v2177
  %2319 = vmatpush2.bf16.msra.mxu0 %v2176
  %2320 = vmatprep.mubr.bf16.mxu0 %v1319
  %2321 = vmatmul.mubr.bf16.gmra.mxu0 %v1318
  %v2322 = vpop.f32.mrf.mxu0
  %v2323 = vadd.f32 %v1961, %v2322
  %v2324 = vpop.f32.mrf.mxu0
  %v2325 = vadd.f32 %v1965, %v2324
  %v2326 = vpop.f32.mrf.mxu0
  %v2327 = vadd.f32 %v1961, %v2326
  %v2328 = vpop.f32.mrf.mxu0
  %v2329 = vadd.f32 %v1965, %v2328
  %2330 = vmatprep.mubr.bf16.mxu0 %v1323
  %2331 = vmatmul.mubr.bf16.gmra.mxu0 %v1322
  %v2332 = vpop.f32.mrf.mxu0
  %v2333 = vadd.f32 %v1961, %v2332
  %v2334 = vpop.f32.mrf.mxu0
  %v2335 = vadd.f32 %v1965, %v2334
  %v2336 = vpop.f32.mrf.mxu0
  %v2337 = vadd.f32 %v1961, %v2336
  %v2338 = vpop.f32.mrf.mxu0
  %v2339 = vadd.f32 %v1965, %v2338
  %2340 = vmatprep.mubr.bf16.mxu0 %v1327
  %2341 = vmatmul.mubr.bf16.gmra.mxu0 %v1326
  %v2342 = vpop.f32.mrf.mxu0
  %v2343 = vadd.f32 %v1961, %v2342
  %v2344 = vpop.f32.mrf.mxu0
  %v2345 = vadd.f32 %v1965, %v2344
  %v2346 = vpop.f32.mrf.mxu0
  %v2347 = vadd.f32 %v1961, %v2346
  %v2348 = vpop.f32.mrf.mxu0
  %v2349 = vadd.f32 %v1965, %v2348
  %2350 = vmatprep.mubr.bf16.mxu0 %v1331
  %2351 = vmatmul.mubr.bf16.gmra.mxu0 %v1330
  %v2352 = vpop.f32.mrf.mxu0
  %v2353 = vadd.f32 %v1961, %v2352
  %v2354 = vpop.f32.mrf.mxu0
  %v2355 = vadd.f32 %v1965, %v2354
  %v2356 = vpop.f32.mrf.mxu0
  %v2357 = vadd.f32 %v1961, %v2356
  %v2358 = vpop.f32.mrf.mxu0
  %v2359 = vadd.f32 %v1965, %v2358
  %2360 = vdwg.mxu0
  %2361 = vmatprep.subr.bf16.mxu0 %v2207
  %2362 = vmatpush1.bf16.msra.mxu0 %v2206
  %2363 = vmatprep.subr.bf16.mxu0 %v2205
  %2364 = vmatpush1.bf16.msra.mxu0 %v2204
  %2365 = vmatprep.subr.bf16.mxu0 %v2203
  %2366 = vmatpush1.bf16.msra.mxu0 %v2202
  %2367 = vmatprep.subr.bf16.mxu0 %v2201
  %2368 = vmatpush1.bf16.msra.mxu0 %v2200
  %2369 = vmatprep.subr.bf16.mxu0 %v2199
  %2370 = vmatpush1.bf16.msra.mxu0 %v2198
  %2371 = vmatprep.subr.bf16.mxu0 %v2197
  %2372 = vmatpush1.bf16.msra.mxu0 %v2196
  %2373 = vmatprep.subr.bf16.mxu0 %v2195
  %2374 = vmatpush1.bf16.msra.mxu0 %v2194
  %2375 = vmatprep.subr.bf16.mxu0 %v2193
  %2376 = vmatpush1.bf16.msra.mxu0 %v2192
  %2377 = vmatprep.subr.bf16.mxu0 %v2223
  %2378 = vmatpush2.bf16.msra.mxu0 %v2222
  %2379 = vmatprep.subr.bf16.mxu0 %v2221
  %2380 = vmatpush2.bf16.msra.mxu0 %v2220
  %2381 = vmatprep.subr.bf16.mxu0 %v2219
  %2382 = vmatpush2.bf16.msra.mxu0 %v2218
  %2383 = vmatprep.subr.bf16.mxu0 %v2217
  %2384 = vmatpush2.bf16.msra.mxu0 %v2216
  %2385 = vmatprep.subr.bf16.mxu0 %v2215
  %2386 = vmatpush2.bf16.msra.mxu0 %v2214
  %2387 = vmatprep.subr.bf16.mxu0 %v2213
  %2388 = vmatpush2.bf16.msra.mxu0 %v2212
  %2389 = vmatprep.subr.bf16.mxu0 %v2211
  %2390 = vmatpush2.bf16.msra.mxu0 %v2210
  %2391 = vmatprep.subr.bf16.mxu0 %v2209
  %2392 = vmatpush2.bf16.msra.mxu0 %v2208
  %2393 = vmatprep.mubr.bf16.mxu0 %v1321
  %2394 = vmatmul.mubr.bf16.gmra.mxu0 %v1320
  %v2395 = vpop.f32.mrf.mxu0
  %v2396 = vadd.f32 %v2323, %v2395
  %v2397 = vpop.f32.mrf.mxu0
  %v2398 = vadd.f32 %v2325, %v2397
  %v2399 = vpop.f32.mrf.mxu0
  %v2400 = vadd.f32 %v2327, %v2399
  %v2401 = vpop.f32.mrf.mxu0
  %v2402 = vadd.f32 %v2329, %v2401
  %2403 = vmatprep.mubr.bf16.mxu0 %v1325
  %2404 = vmatmul.mubr.bf16.gmra.mxu0 %v1324
  %v2405 = vpop.f32.mrf.mxu0
  %v2406 = vadd.f32 %v2333, %v2405
  %v2407 = vpop.f32.mrf.mxu0
  %v2408 = vadd.f32 %v2335, %v2407
  %v2409 = vpop.f32.mrf.mxu0
  %v2410 = vadd.f32 %v2337, %v2409
  %v2411 = vpop.f32.mrf.mxu0
  %v2412 = vadd.f32 %v2339, %v2411
  %2413 = vmatprep.mubr.bf16.mxu0 %v1329
  %2414 = vmatmul.mubr.bf16.gmra.mxu0 %v1328
  %v2415 = vpop.f32.mrf.mxu0
  %v2416 = vadd.f32 %v2343, %v2415
  %v2417 = vpop.f32.mrf.mxu0
  %v2418 = vadd.f32 %v2345, %v2417
  %v2419 = vpop.f32.mrf.mxu0
  %v2420 = vadd.f32 %v2347, %v2419
  %v2421 = vpop.f32.mrf.mxu0
  %v2422 = vadd.f32 %v2349, %v2421
  %2423 = vmatprep.mubr.bf16.mxu0 %v1333
  %2424 = vmatmul.mubr.bf16.gmra.mxu0 %v1332
  %v2425 = vpop.f32.mrf.mxu0
  %v2426 = vadd.f32 %v2353, %v2425
  %v2427 = vpop.f32.mrf.mxu0
  %v2428 = vadd.f32 %v2355, %v2427
  %v2429 = vpop.f32.mrf.mxu0
  %v2430 = vadd.f32 %v2357, %v2429
  %v2431 = vpop.f32.mrf.mxu0
  %v2432 = vadd.f32 %v2359, %v2431
  %2433 = vdwg.mxu0
  %v2434 = vxor.u32 %v2396, 2147483648
  %v2435 = vxor.u32 %v2398, 2147483648
  %v2436 = vxor.u32 %v2400, 2147483648
  %v2437 = vxor.u32 %v2402, 2147483648
  %v2438 = vxor.u32 %v2406, 2147483648
  %v2439 = vxor.u32 %v2408, 2147483648
  %v2440 = vxor.u32 %v2410, 2147483648
  %v2441 = vxor.u32 %v2412, 2147483648
  %v2442 = vxor.u32 %v2416, 2147483648
  %v2443 = vxor.u32 %v2418, 2147483648
  %v2444 = vxor.u32 %v2420, 2147483648
  %v2445 = vxor.u32 %v2422, 2147483648
  %v2446 = vxor.u32 %v2426, 2147483648
  %v2447 = vxor.u32 %v2428, 2147483648
  %v2448 = vxor.u32 %v2430, 2147483648
  %v2449 = vxor.u32 %v2432, 2147483648
  %v2450 = vmul.f32 %v2434, 1.442695
  %v2451 = vpow.pop %v2450
  %v2452 = vmul.f32 %v2435, 1.442695
  %v2453 = vpow.pop %v2452
  %v2454 = vmul.f32 %v2436, 1.442695
  %v2455 = vpow.pop %v2454
  %v2456 = vmul.f32 %v2437, 1.442695
  %v2457 = vpow.pop %v2456
  %v2458 = vmul.f32 %v2438, 1.442695
  %v2459 = vpow.pop %v2458
  %v2460 = vmul.f32 %v2439, 1.442695
  %v2461 = vpow.pop %v2460
  %v2462 = vmul.f32 %v2440, 1.442695
  %v2463 = vpow.pop %v2462
  %v2464 = vmul.f32 %v2441, 1.442695
  %v2465 = vpow.pop %v2464
  %v2466 = vmul.f32 %v2442, 1.442695
  %v2467 = vpow.pop %v2466
  %v2468 = vmul.f32 %v2443, 1.442695
  %v2469 = vpow.pop %v2468
  %v2470 = vmul.f32 %v2444, 1.442695
  %v2471 = vpow.pop %v2470
  %v2472 = vmul.f32 %v2445, 1.442695
  %v2473 = vpow.pop %v2472
  %v2474 = vmul.f32 %v2446, 1.442695
  %v2475 = vpow.pop %v2474
  %v2476 = vmul.f32 %v2447, 1.442695
  %v2477 = vpow.pop %v2476
  %v2478 = vmul.f32 %v2448, 1.442695
  %v2479 = vpow.pop %v2478
  %v2480 = vmul.f32 %v2449, 1.442695
  %v2481 = vpow.pop %v2480
  %v2482 = vadd.f32 %v2451, 1.0
  %v2483 = vadd.f32 %v2453, 1.0
  %v2484 = vadd.f32 %v2455, 1.0
  %v2485 = vadd.f32 %v2457, 1.0
  %v2486 = vadd.f32 %v2459, 1.0
  %v2487 = vadd.f32 %v2461, 1.0
  %v2488 = vadd.f32 %v2463, 1.0
  %v2489 = vadd.f32 %v2465, 1.0
  %v2490 = vadd.f32 %v2467, 1.0
  %v2491 = vadd.f32 %v2469, 1.0
  %v2492 = vadd.f32 %v2471, 1.0
  %v2493 = vadd.f32 %v2473, 1.0
  %v2494 = vadd.f32 %v2475, 1.0
  %v2495 = vadd.f32 %v2477, 1.0
  %v2496 = vadd.f32 %v2479, 1.0
  %v2497 = vadd.f32 %v2481, 1.0
  %v2498 = vrcp.pop %v2482
  %v2499 = vmul.f32 1.0, %v2498
  %v2500 = vrcp.pop %v2483
  %v2501 = vmul.f32 1.0, %v2500
  %v2502 = vrcp.pop %v2484
  %v2503 = vmul.f32 1.0, %v2502
  %v2504 = vrcp.pop %v2485
  %v2505 = vmul.f32 1.0, %v2504
  %v2506 = vrcp.pop %v2486
  %v2507 = vmul.f32 1.0, %v2506
  %v2508 = vrcp.pop %v2487
  %v2509 = vmul.f32 1.0, %v2508
  %v2510 = vrcp.pop %v2488
  %v2511 = vmul.f32 1.0, %v2510
  %v2512 = vrcp.pop %v2489
  %v2513 = vmul.f32 1.0, %v2512
  %v2514 = vrcp.pop %v2490
  %v2515 = vmul.f32 1.0, %v2514
  %v2516 = vrcp.pop %v2491
  %v2517 = vmul.f32 1.0, %v2516
  %v2518 = vrcp.pop %v2492
  %v2519 = vmul.f32 1.0, %v2518
  %v2520 = vrcp.pop %v2493
  %v2521 = vmul.f32 1.0, %v2520
  %v2522 = vrcp.pop %v2494
  %v2523 = vmul.f32 1.0, %v2522
  %v2524 = vrcp.pop %v2495
  %v2525 = vmul.f32 1.0, %v2524
  %v2526 = vrcp.pop %v2496
  %v2527 = vmul.f32 1.0, %v2526
  %v2528 = vrcp.pop %v2497
  %v2529 = vmul.f32 1.0, %v2528
  %v2530 = vmul.f32 %v1876, %v2499
  %v2531 = vmul.f32 %v1877, %v2501
  %v2532 = vmul.f32 %v1878, %v2503
  %v2533 = vmul.f32 %v1879, %v2505
  %v2534 = vmul.f32 %v1880, %v2507
  %v2535 = vmul.f32 %v1881, %v2509
  %v2536 = vmul.f32 %v1882, %v2511
  %v2537 = vmul.f32 %v1883, %v2513
  %v2538 = vmul.f32 %v1884, %v2515
  %v2539 = vmul.f32 %v1885, %v2517
  %v2540 = vmul.f32 %v1886, %v2519
  %v2541 = vmul.f32 %v1887, %v2521
  %v2542 = vmul.f32 %v1888, %v2523
  %v2543 = vmul.f32 %v1889, %v2525
  %v2544 = vmul.f32 %v1890, %v2527
  %v2545 = vmul.f32 %v1891, %v2529
  %v2546 = vpack.c.bf16 %v2532, %v2530
  %v2547 = vpack.c.bf16 %v2533, %v2531
  %v2548 = vpack.c.bf16 %v2536, %v2534
  %v2549 = vpack.c.bf16 %v2537, %v2535
  %v2550 = vpack.c.bf16 %v2540, %v2538
  %v2551 = vpack.c.bf16 %v2541, %v2539
  %v2552 = vpack.c.bf16 %v2544, %v2542
  %v2553 = vpack.c.bf16 %v2545, %v2543
  %v2554 = vld [vmem:[%s7] sm:$0xf]
  %v2555 = vld [vmem:[%s7 + $0x4] sm:$0xf]
  %v2556 = vld [vmem:[%s7 + $0x8] sm:$0xf]
  %v2557 = vld [vmem:[%s7 + $0xc] sm:$0xf]
  %v2558 = vld [vmem:[%s7 + $0x10] sm:$0xf]
  %v2559 = vld [vmem:[%s7 + $0x14] sm:$0xf]
  %v2560 = vld [vmem:[%s7 + $0x18] sm:$0xf]
  %v2561 = vld [vmem:[%s7 + $0x1c] sm:$0xf]
  %v2562 = vld [vmem:[%s7 + $0x20] sm:$0xf]
  %v2563 = vld [vmem:[%s7 + $0x24] sm:$0xf]
  %v2564 = vld [vmem:[%s7 + $0x28] sm:$0xf]
  %v2565 = vld [vmem:[%s7 + $0x2c] sm:$0xf]
  %v2566 = vld [vmem:[%s7 + $0x30] sm:$0xf]
  %v2567 = vld [vmem:[%s7 + $0x34] sm:$0xf]
  %v2568 = vld [vmem:[%s7 + $0x38] sm:$0xf]
  %v2569 = vld [vmem:[%s7 + $0x3c] sm:$0xf]
  %v2570 = vld [vmem:[%s7 + $0x40] sm:$0xf]
  %v2571 = vld [vmem:[%s7 + $0x44] sm:$0xf]
  %v2572 = vld [vmem:[%s7 + $0x48] sm:$0xf]
  %v2573 = vld [vmem:[%s7 + $0x4c] sm:$0xf]
  %v2574 = vld [vmem:[%s7 + $0x50] sm:$0xf]
  %v2575 = vld [vmem:[%s7 + $0x54] sm:$0xf]
  %v2576 = vld [vmem:[%s7 + $0x58] sm:$0xf]
  %v2577 = vld [vmem:[%s7 + $0x5c] sm:$0xf]
  %v2578 = vld [vmem:[%s7 + $0x60] sm:$0xf]
  %v2579 = vld [vmem:[%s7 + $0x64] sm:$0xf]
  %v2580 = vld [vmem:[%s7 + $0x68] sm:$0xf]
  %v2581 = vld [vmem:[%s7 + $0x6c] sm:$0xf]
  %v2582 = vld [vmem:[%s7 + $0x70] sm:$0xf]
  %v2583 = vld [vmem:[%s7 + $0x74] sm:$0xf]
  %v2584 = vld [vmem:[%s7 + $0x78] sm:$0xf]
  %v2585 = vld [vmem:[%s7 + $0x7c] sm:$0xf]
  %v2586 = vld [vmem:[%s8] sm:$0x1]
  %v2588 = vlaneseq
  %v2589 = vshrl.u32 %v2588, 7
  %v2590 = vsub.s32 0, %v2589
  %v2591 = vrot.slane %v2586, %v2590
  %v2625 = vunpack.c.l.b16 %v2554
  %v2626 = vunpack.c.l.b16 %v2555
  %v2627 = vunpack.c.l.b16 %v2556
  %v2628 = vunpack.c.l.b16 %v2557
  %v2629 = vunpack.c.l.b16 %v2558
  %v2630 = vunpack.c.l.b16 %v2559
  %v2631 = vunpack.c.l.b16 %v2560
  %v2632 = vunpack.c.l.b16 %v2561
  %v2633 = vunpack.c.l.b16 %v2562
  %v2634 = vunpack.c.l.b16 %v2563
  %v2635 = vunpack.c.l.b16 %v2564
  %v2636 = vunpack.c.l.b16 %v2565
  %v2637 = vunpack.c.l.b16 %v2566
  %v2638 = vunpack.c.l.b16 %v2567
  %v2639 = vunpack.c.l.b16 %v2568
  %v2640 = vunpack.c.l.b16 %v2569
  %v2641 = vunpack.c.l.b16 %v2570
  %v2642 = vunpack.c.l.b16 %v2571
  %v2643 = vunpack.c.l.b16 %v2572
  %v2644 = vunpack.c.l.b16 %v2573
  %v2645 = vunpack.c.l.b16 %v2574
  %v2646 = vunpack.c.l.b16 %v2575
  %v2647 = vunpack.c.l.b16 %v2576
  %v2648 = vunpack.c.l.b16 %v2577
  %v2649 = vunpack.c.l.b16 %v2578
  %v2650 = vunpack.c.l.b16 %v2579
  %v2651 = vunpack.c.l.b16 %v2580
  %v2652 = vunpack.c.l.b16 %v2581
  %v2653 = vunpack.c.l.b16 %v2582
  %v2654 = vunpack.c.l.b16 %v2583
  %v2655 = vunpack.c.l.b16 %v2584
  %v2656 = vunpack.c.l.b16 %v2585
  %v2657 = vpack.c.b16 %v2626, %v2625
  %v2658 = vpack.c.b16 %v2628, %v2627
  %v2659 = vpack.c.b16 %v2630, %v2629
  %v2660 = vpack.c.b16 %v2632, %v2631
  %v2661 = vpack.c.b16 %v2634, %v2633
  %v2662 = vpack.c.b16 %v2636, %v2635
  %v2663 = vpack.c.b16 %v2638, %v2637
  %v2664 = vpack.c.b16 %v2640, %v2639
  %v2665 = vpack.c.b16 %v2642, %v2641
  %v2666 = vpack.c.b16 %v2644, %v2643
  %v2667 = vpack.c.b16 %v2646, %v2645
  %v2668 = vpack.c.b16 %v2648, %v2647
  %v2669 = vpack.c.b16 %v2650, %v2649
  %v2670 = vpack.c.b16 %v2652, %v2651
  %v2671 = vpack.c.b16 %v2654, %v2653
  %v2672 = vpack.c.b16 %v2656, %v2655
  %2689 = vmatprep.subr.bf16.mxu0 0
  %2690 = vmatpush1.bf16.msra.mxu0 %v2664
  %2691 = vmatprep.subr.bf16.mxu0 0
  %2692 = vmatpush1.bf16.msra.mxu0 %v2663
  %2693 = vmatprep.subr.bf16.mxu0 0
  %2694 = vmatpush1.bf16.msra.mxu0 %v2662
  %2695 = vmatprep.subr.bf16.mxu0 0
  %2696 = vmatpush1.bf16.msra.mxu0 %v2661
  %2697 = vmatprep.subr.bf16.mxu0 0
  %2698 = vmatpush1.bf16.msra.mxu0 %v2660
  %2699 = vmatprep.subr.bf16.mxu0 0
  %2700 = vmatpush1.bf16.msra.mxu0 %v2659
  %2701 = vmatprep.subr.bf16.mxu0 0
  %2702 = vmatpush1.bf16.msra.mxu0 %v2658
  %2703 = vmatprep.subr.bf16.mxu0 0
  %2704 = vmatpush1.bf16.msra.mxu0 %v2657
  %2705 = vmatprep.subr.bf16.mxu0 0
  %2706 = vmatpush2.bf16.msra.mxu0 %v2672
  %2707 = vmatprep.subr.bf16.mxu0 0
  %2708 = vmatpush2.bf16.msra.mxu0 %v2671
  %2709 = vmatprep.subr.bf16.mxu0 0
  %2710 = vmatpush2.bf16.msra.mxu0 %v2670
  %2711 = vmatprep.subr.bf16.mxu0 0
  %2712 = vmatpush2.bf16.msra.mxu0 %v2669
  %2713 = vmatprep.subr.bf16.mxu0 0
  %2714 = vmatpush2.bf16.msra.mxu0 %v2668
  %2715 = vmatprep.subr.bf16.mxu0 0
  %2716 = vmatpush2.bf16.msra.mxu0 %v2667
  %2717 = vmatprep.subr.bf16.mxu0 0
  %2718 = vmatpush2.bf16.msra.mxu0 %v2666
  %2719 = vmatprep.subr.bf16.mxu0 0
  %2720 = vmatpush2.bf16.msra.mxu0 %v2665
  %2721 = vmatprep.mubr.bf16.mxu0 %v2547
  %2722 = vmatmul.mubr.bf16.gmra.mxu0 %v2546
  %v2723 = vpop.f32.mrf.mxu0
  %v2724 = vadd.f32 %v2591, %v2723
  %v2725 = vpop.f32.mrf.mxu0
  %v2726 = vpop.f32.mrf.mxu0
  %v2727 = vadd.f32 %v2591, %v2726
  %v2728 = vpop.f32.mrf.mxu0
  %2729 = vmatprep.mubr.bf16.mxu0 %v2549
  %2730 = vmatmul.mubr.bf16.gmra.mxu0 %v2548
  %v2731 = vpop.f32.mrf.mxu0
  %v2732 = vadd.f32 %v2591, %v2731
  %v2733 = vpop.f32.mrf.mxu0
  %v2734 = vpop.f32.mrf.mxu0
  %v2735 = vadd.f32 %v2591, %v2734
  %v2736 = vpop.f32.mrf.mxu0
  %2737 = vmatprep.mubr.bf16.mxu0 %v2551
  %2738 = vmatmul.mubr.bf16.gmra.mxu0 %v2550
  %v2739 = vpop.f32.mrf.mxu0
  %v2740 = vadd.f32 %v2591, %v2739
  %v2741 = vpop.f32.mrf.mxu0
  %v2742 = vpop.f32.mrf.mxu0
  %v2743 = vadd.f32 %v2591, %v2742
  %v2744 = vpop.f32.mrf.mxu0
  %2745 = vmatprep.mubr.bf16.mxu0 %v2553
  %2746 = vmatmul.mubr.bf16.gmra.mxu0 %v2552
  %v2747 = vpop.f32.mrf.mxu0
  %v2748 = vadd.f32 %v2591, %v2747
  %v2749 = vpop.f32.mrf.mxu0
  %v2750 = vpop.f32.mrf.mxu0
  %v2751 = vadd.f32 %v2591, %v2750
  %v2752 = vpop.f32.mrf.mxu0
  %2753 = vdwg.mxu0
  %s2754 = smul.u32 0, 64
  %v2755 = vlaneseq
  %v2756 = vshrl.u32 %v2755, 7
  %v2757 = vadd.s32 %v2756, 8
  %v2758 = vadd.s32 %v2756, 16
  %v2759 = vadd.s32 %v2756, 24
  %v2760 = vadd.s32 %v2756, 32
  %v2761 = vadd.s32 %v2756, 40
  %v2762 = vadd.s32 %v2756, 48
  %v2763 = vadd.s32 %v2756, 56
  %v2764 = vstv %s2754
  %v2765 = vadd.s32 %v2764, %v2756
  %v2766 = vadd.s32 %v2764, %v2757
  %v2767 = vadd.s32 %v2764, %v2758
  %v2768 = vadd.s32 %v2764, %v2759
  %v2769 = vadd.s32 %v2764, %v2760
  %v2770 = vadd.s32 %v2764, %v2761
  %v2771 = vadd.s32 %v2764, %v2762
  %v2772 = vadd.s32 %v2764, %v2763
  %vm2773 = vcmp.lt.s32.totalorder %v2765, 64
  %vm2774 = vcmp.lt.s32.totalorder %v2766, 64
  %vm2775 = vcmp.lt.s32.totalorder %v2767, 64
  %vm2776 = vcmp.lt.s32.totalorder %v2768, 64
  %vm2777 = vcmp.lt.s32.totalorder %v2769, 64
  %vm2778 = vcmp.lt.s32.totalorder %v2770, 64
  %vm2779 = vcmp.lt.s32.totalorder %v2771, 64
  %vm2780 = vcmp.lt.s32.totalorder %v2772, 64
  %v2781 = vsel %vm2773, %v2724, -1e+30
  %v2782 = vsel %vm2774, %v2727, -1e+30
  %v2783 = vsel %vm2775, %v2732, -1e+30
  %v2784 = vsel %vm2776, %v2735, -1e+30
  %v2785 = vsel %vm2777, %v2740, -1e+30
  %v2786 = vsel %vm2778, %v2743, -1e+30
  %v2787 = vsel %vm2779, %v2748, -1e+30
  %v2788 = vsel %vm2780, %v2751, -1e+30
  %2789 = vxpose.xlu0.b32.start [1/16] %v2781, 128
  %2790 = vxpose.xlu0.b32.cont [2/16] %v2782, 128
  %2791 = vxpose.xlu0.b32.cont [3/16] %v2783, 128
  %2792 = vxpose.xlu0.b32.cont [4/16] %v2784, 128
  %2793 = vxpose.xlu0.b32.cont [5/16] %v2785, 128
  %2794 = vxpose.xlu0.b32.cont [6/16] %v2786, 128
  %2795 = vxpose.xlu0.b32.cont [7/16] %v2787, 128
  %2796 = vxpose.xlu0.b32.cont [8/16] %v2788, 128
  %2797 = vxpose.xlu0.b32.cont [9/16] 0.0, 128
  %2798 = vxpose.xlu0.b32.cont [10/16] 0.0, 128
  %2799 = vxpose.xlu0.b32.cont [11/16] 0.0, 128
  %2800 = vxpose.xlu0.b32.cont [12/16] 0.0, 128
  %2801 = vxpose.xlu0.b32.cont [13/16] 0.0, 128
  %2802 = vxpose.xlu0.b32.cont [14/16] 0.0, 128
  %2803 = vxpose.xlu0.b32.cont [15/16] 0.0, 128
  %2804 = vxpose.xlu0.b32.end [16/16] 0.0, 128
  %v2805 = vpop.trf.xlu0
  %v2806 = vpop.trf.xlu0
  %v2807 = vpop.trf.xlu0
  %v2808 = vpop.trf.xlu0
  %v2809 = vpop.trf.xlu0
  %v2810 = vpop.trf.xlu0
  %v2811 = vpop.trf.xlu0
  %v2812 = vpop.trf.xlu0
  %v2813 = vpop.trf.xlu0
  %v2814 = vpop.trf.xlu0
  %v2815 = vpop.trf.xlu0
  %v2816 = vpop.trf.xlu0
  %v2817 = vpop.trf.xlu0
  %v2818 = vpop.trf.xlu0
  %v2819 = vpop.trf.xlu0
  %v2820 = vpop.trf.xlu0
  %v2821 = vld [vmem:[#allocation2] sm:$0xff]
  %vm2822 = vcmask 523264
  %v2823 = vsel %vm2822, %v2805, -inf
  %2824 = vmax.xlane.f32.xlu0 %v2823
  %v2825 = vpop.xlane.xlu0 %2824
  %v2826 = vmax.f32 %v2821, %v2825
  %v2827 = vsub.f32 %v2821, %v2826
  %v2828 = vmul.f32 %v2827, 1.442695
  %v2829 = vpow.pop %v2828
  %2831 = vset.pattern.permute.xlu0 0
  %2832 = vperm.xlu0 %2831, %v2826
  %v2833 = vpop.permute.xlu0 %2832
  %v2835 = vsub.f32 %v2805, %v2833
  %v2836 = vmul.f32 %v2835, 1.442695
  %v2837 = vpow.pop %v2836
  %v2838 = vld [vmem:[#allocation3] sm:$0xff]
  %v2839 = vmul.f32 %v2829, %v2838
  %v2840 = vsel %vm2822, %v2837, 0.0
  %2841 = vadd.xlane.f32.xlu0 %v2840
  %v2842 = vpop.xlane.xlu0 %2841
  %v2843 = vadd.f32 %v2839, %v2842
  %vm2844 = vcmask 7168
  %2845 = vst.msk [vmem:[#allocation3] sm:$0xff] %vm2844, %v2843
  %v2846 = vld [vmem:[#allocation4] sm:$0xff]
  %v2847 = vld [vmem:[#allocation4 + $0x8] sm:$0xff]
  %v2848 = vld [vmem:[#allocation4 + $0x10] sm:$0xff]
  %v2849 = vld [vmem:[#allocation4 + $0x18] sm:$0xff]
  %2851 = vset.pattern.permute.xlu0 0
  %2852 = vperm.xlu0 %2851, %v2829
  %v2853 = vpop.permute.xlu0 %2852
  %v2855 = vmul.f32 %v2853, %v2846
  %v2856 = vmul.f32 %v2853, %v2847
  %v2857 = vmul.f32 %v2853, %v2848
  %v2858 = vmul.f32 %v2853, %v2849
  %v2859 = vpack.c.bf16 %v2837, %v2837
  %v2861 = vsel %vm2822, %v2859, 0
  %2863 = vmatprep.subr.bf16.mxu0 0
  %2864 = vmatpush1.bf16.msra.mxu0 0
  %2865 = vmatprep.subr.bf16.mxu0 0
  %2866 = vmatpush1.bf16.msra.mxu0 0
  %2867 = vmatprep.subr.bf16.mxu0 0
  %2868 = vmatpush1.bf16.msra.mxu0 0
  %2869 = vmatprep.subr.bf16.mxu0 0
  %2870 = vmatpush1.bf16.msra.mxu0 0
  %2871 = vmatprep.subr.bf16.mxu0 %v1331
  %2872 = vmatpush1.bf16.msra.mxu0 %v1330
  %2873 = vmatprep.subr.bf16.mxu0 %v1327
  %2874 = vmatpush1.bf16.msra.mxu0 %v1326
  %2875 = vmatprep.subr.bf16.mxu0 %v1323
  %2876 = vmatpush1.bf16.msra.mxu0 %v1322
  %2877 = vmatprep.subr.bf16.mxu0 %v1319
  %2878 = vmatpush1.bf16.msra.mxu0 %v1318
  %2879 = vmatprep.subr.bf16.mxu0 0
  %2880 = vmatpush2.bf16.msra.mxu0 0
  %2881 = vmatprep.subr.bf16.mxu0 0
  %2882 = vmatpush2.bf16.msra.mxu0 0
  %2883 = vmatprep.subr.bf16.mxu0 0
  %2884 = vmatpush2.bf16.msra.mxu0 0
  %2885 = vmatprep.subr.bf16.mxu0 0
  %2886 = vmatpush2.bf16.msra.mxu0 0
  %2887 = vmatprep.subr.bf16.mxu0 0
  %2888 = vmatpush2.bf16.msra.mxu0 0
  %2889 = vmatprep.subr.bf16.mxu0 0
  %2890 = vmatpush2.bf16.msra.mxu0 0
  %2891 = vmatprep.subr.bf16.mxu0 0
  %2892 = vmatpush2.bf16.msra.mxu0 0
  %2893 = vmatprep.subr.bf16.mxu0 0
  %2894 = vmatpush2.bf16.msra.mxu0 0
  %2895 = vmatprep.mubr.bf16.mxu0 0
  %2896 = vmatmul.mubr.bf16.gmra.mxu0 %v2861
  %v2897 = vpop.f32.mrf.mxu0
  %v2898 = vadd.f32 0.0, %v2897
  %v2899 = vpop.f32.mrf.mxu0
  %v2900 = vadd.f32 0.0, %v2899
  %v2901 = vpop.f32.mrf.mxu0
  %v2902 = vpop.f32.mrf.mxu0
  %2903 = vdwg.mxu0
  %2904 = vmatprep.subr.bf16.mxu0 0
  %2905 = vmatpush1.bf16.msra.mxu0 0
  %2906 = vmatprep.subr.bf16.mxu0 0
  %2907 = vmatpush1.bf16.msra.mxu0 0
  %2908 = vmatprep.subr.bf16.mxu0 0
  %2909 = vmatpush1.bf16.msra.mxu0 0
  %2910 = vmatprep.subr.bf16.mxu0 0
  %2911 = vmatpush1.bf16.msra.mxu0 0
  %2912 = vmatprep.subr.bf16.mxu0 %v1333
  %2913 = vmatpush1.bf16.msra.mxu0 %v1332
  %2914 = vmatprep.subr.bf16.mxu0 %v1329
  %2915 = vmatpush1.bf16.msra.mxu0 %v1328
  %2916 = vmatprep.subr.bf16.mxu0 %v1325
  %2917 = vmatpush1.bf16.msra.mxu0 %v1324
  %2918 = vmatprep.subr.bf16.mxu0 %v1321
  %2919 = vmatpush1.bf16.msra.mxu0 %v1320
  %2920 = vmatprep.subr.bf16.mxu0 0
  %2921 = vmatpush2.bf16.msra.mxu0 0
  %2922 = vmatprep.subr.bf16.mxu0 0
  %2923 = vmatpush2.bf16.msra.mxu0 0
  %2924 = vmatprep.subr.bf16.mxu0 0
  %2925 = vmatpush2.bf16.msra.mxu0 0
  %2926 = vmatprep.subr.bf16.mxu0 0
  %2927 = vmatpush2.bf16.msra.mxu0 0
  %2928 = vmatprep.subr.bf16.mxu0 0
  %2929 = vmatpush2.bf16.msra.mxu0 0
  %2930 = vmatprep.subr.bf16.mxu0 0
  %2931 = vmatpush2.bf16.msra.mxu0 0
  %2932 = vmatprep.subr.bf16.mxu0 0
  %2933 = vmatpush2.bf16.msra.mxu0 0
  %2934 = vmatprep.subr.bf16.mxu0 0
  %2935 = vmatpush2.bf16.msra.mxu0 0
  %2936 = vmatprep.mubr.bf16.mxu0 0
  %2937 = vmatmul.mubr.bf16.gmra.mxu0 %v2861
  %v2938 = vpop.f32.mrf.mxu0
  %v2939 = vadd.f32 0.0, %v2938
  %v2940 = vpop.f32.mrf.mxu0
  %v2941 = vadd.f32 0.0, %v2940
  %v2942 = vpop.f32.mrf.mxu0
  %v2943 = vpop.f32.mrf.mxu0
  %2944 = vdwg.mxu0
  %v2945 = vadd.f32 %v2855, %v2898
  %v2946 = vadd.f32 %v2856, %v2900
  %v2947 = vadd.f32 %v2857, %v2939
  %v2948 = vadd.f32 %v2858, %v2941
  %2949 = vst [vmem:[#allocation4] sm:$0xff] %v2945
  %2950 = vst [vmem:[#allocation4 + $0x8] sm:$0xff] %v2946
  %2951 = vst [vmem:[#allocation4 + $0x10] sm:$0xff] %v2947
  %2952 = vst [vmem:[#allocation4 + $0x18] sm:$0xff] %v2948
  %2953 = vst.msk [vmem:[#allocation2] sm:$0xff] %vm2844, %v2826
  // Predicated region
  $region42: #{forward.2} parent=0 // pred_check
    %p2954 = pneg %p33
  $region43: #{forward.2} parent=0 // pred_check_branch
    %2956 = sbr.rel (%p2954) target = $region45
  $region44: #{forward.2} parent=0 // pred_region
    %v2957 = vld [vmem:[#allocation4] sm:$0xff]
    %v2958 = vld [vmem:[#allocation4 + $0x8] sm:$0xff]
    %v2959 = vld [vmem:[#allocation4 + $0x10] sm:$0xff]
    %v2960 = vld [vmem:[#allocation4 + $0x18] sm:$0xff]
    %v2961 = vld [vmem:[#allocation3] sm:$0xff]
    %2963 = vset.pattern.permute.xlu0 0
    %2964 = vperm.xlu0 %2963, %v2961
    %v2965 = vpop.permute.xlu0 %2964
    %v2967 = vrcp.pop %v2965
    %v2968 = vmul.f32 %v2957, %v2967
    %v2969 = vmul.f32 %v2958, %v2967
    %v2970 = vmul.f32 %v2959, %v2967
    %v2971 = vmul.f32 %v2960, %v2967
    %2972 = vst [vmem:[%s9] sm:$0xff] %v2968
    %2973 = vst [vmem:[%s9 + $0x8] sm:$0xff] %v2969
    %2974 = vst [vmem:[%s9 + $0x10] sm:$0xff] %v2970
    %2975 = vst [vmem:[%s9 + $0x18] sm:$0xff] %v2971
  $region45: #{forward.2} parent=0 // pred_fallthru
    _
  // Predicated region
  $region46: #{forward.2} parent=0 // pred_check
    _
  $region47: #{forward.2} parent=0 // pred_check_branch
    %2977 = sbr.rel (0) target = $region49
  $region48: #{forward.2} parent=0 // pred_region
    _
  $region49: #{forward.2} parent=0 // pred_fallthru
    _
  // Predicated region
  $region50: #{forward.2} parent=0 // pred_check
    _
  $region51: #{forward.2} parent=0 // pred_check_branch
    %2979 = sbr.rel (0) target = $region53
  $region52: #{forward.2} parent=0 // pred_region
    _
  $region53: #{forward.2} parent=0 // pred_fallthru
    _

// kernel: forward.3
$region0: #{forward.3}
  #allocation0 [shape = 'u32[]', space=smem, size = 0x4, offset = 0x4, fixed_abs, tag = 'smem constant byte address 0x4 - core index']
  #allocation1 [shape = 'u32[144,128]{1,0:T(1,128)}', space=vmem, size = 0x12000, scoped, tag = 'internal scratch']
  %s0 = inlined_call_operand.vmem [shape: bf16[8,512], index: 0, kind: input, shape index: {}]
  %s1 = inlined_call_operand.hbm [shape: bf16[512,512], index: 1, kind: input, shape index: {}]
  %s2 = inlined_call_operand.hbm [shape: f32[1,512], index: 2, kind: input, shape index: {}]
  %s3 = inlined_call_operand.hbm [shape: bf16[8,8], index: 3, kind: input, shape index: {}]
  %s4 = inlined_call_operand.hbm [shape: bf16[8,8], index: 4, kind: input, shape index: {}]
  %s5 = inlined_call_operand.hbm [shape: bf16[1536,512], index: 5, kind: input, shape index: {}]
  %s6 = inlined_call_operand.hbm [shape: f32[1,512], index: 6, kind: input, shape index: {}]
  %s7 = inlined_call_operand.vmem [shape: f32[8,512], index: 7, kind: output, shape index: {}]
  %s8 = sld [smem:[#allocation0]]
  $region62: #{forward.3} parent=0
    _
  %s10 = ssub.s32 1, %s8
  %s11 = scalar_select 0, %s10, %s8
  $region1: #{forward.3} parent=0
    #allocation2 [shape = 'u8[524288]{0}', space=vmem, size = 0x80000, scoped, tag = 'input window, operand 1, single buffered']
    #allocation3 [shape = 's32[1]{0}', space=sflag, size = 0x4, scoped, tag = 'scoped memory for forward.3']
    #allocation4 [shape = 'u8[2048]{0}', space=vmem, size = 0x800, scoped, tag = 'input window, operand 2, single buffered']
    #allocation5 [shape = 's32[1]{0}', space=sflag, size = 0x4, scoped, tag = 'scoped memory for forward.3']
    #allocation6 [shape = 'u8[2048]{0}', space=vmem, size = 0x800, scoped, tag = 'input window, operand 3, single buffered']
    #allocation7 [shape = 'u8[2048]{0}', space=vmem, size = 0x800, scoped, tag = 'input window, operand 4, single buffered']
    #allocation8 [shape = 's32[1]{0}', space=sflag, size = 0x4, scoped, tag = 'scoped memory for forward.3']
    #allocation9 [shape = 'u8[1572864]{0}', space=vmem, size = 0x180000, scoped, tag = 'input window, operand 5, single buffered']
    #allocation10 [shape = 'u8[2048]{0}', space=vmem, size = 0x800, scoped, tag = 'input window, operand 6, single buffered']
    #allocation11 [shape = 's32[1]{0}', space=sflag, size = 0x4, scoped, tag = 'scoped memory for forward.3']
    %12 = vsyncpa [#allocation3], 0
    %13 = vsyncpa [#allocation5], 0
    %14 = vsyncpa [#allocation8], 0
    %15 = vsyncpa [#allocation11], 0
    // Predicated region
    $region2: #{forward.3} parent=1 // pred_check
      _
    $region3: #{forward.3} parent=1 // pred_check_branch
      %17 = sbr.rel (0) target = $region5
    $region4: #{forward.3} parent=1 // pred_region
      _
    $region5: #{forward.3} parent=1 // pred_fallthru
      _
    // Predicated region
    $region6: #{forward.3} parent=1 // pred_check
      _
    $region7: #{forward.3} parent=1 // pred_check_branch
      %19 = sbr.rel (0) target = $region9
    $region8: #{forward.3} parent=1 // pred_region
      %s21 = ssub.s32 16384, 16384
      %22 = vsyncadd [#allocation3], %s21
      %s23 = sshll.u32 [#allocation2], 4
      %s24 = int_to_ptr.vmem [resolvable:$true] %s23
      %29 = dma.hbm_to_vmem [thread:$0]  %s1, 16384, %s24, [#allocation3], 256, 256, 16
    $region9: #{forward.3} parent=1 // pred_fallthru
      _
    // Predicated region
    $region10: #{forward.3} parent=1 // pred_check
      _
    $region11: #{forward.3} parent=1 // pred_check_branch
      %31 = sbr.rel (0) target = $region13
    $region12: #{forward.3} parent=1 // pred_region
      %s33 = ssub.s32 64, 64
      %34 = vsyncadd [#allocation5], %s33
      %s36 = sshll.u32 [#allocation4], 4
      %s37 = int_to_ptr.vmem [resolvable:$true] %s36
      %39 = dma.hbm_to_vmem [thread:$0]  %s2, 64, %s37, [#allocation5]
    $region13: #{forward.3} parent=1 // pred_fallthru
      _
    // Predicated region
    $region14: #{forward.3} parent=1 // pred_check
      _
    $region15: #{forward.3} parent=1 // pred_check_branch
      %41 = sbr.rel (0) target = $region17
    $region16: #{forward.3} parent=1 // pred_region
      %s43 = ssub.s32 64, 64
      %44 = vsyncadd [#allocation5], %s43
      %s46 = sshll.u32 [#allocation6], 4
      %s47 = int_to_ptr.vmem [resolvable:$true] %s46
      %49 = dma.hbm_to_vmem [thread:$0]  %s3, 64, %s47, [#allocation5]
    $region17: #{forward.3} parent=1 // pred_fallthru
      _
    // Predicated region
    $region18: #{forward.3} parent=1 // pred_check
      _
    $region19: #{forward.3} parent=1 // pred_check_branch
      %51 = sbr.rel (0) target = $region21
    $region20: #{forward.3} parent=1 // pred_region
      %s53 = ssub.s32 64, 64
      %54 = vsyncadd [#allocation8], %s53
      %s56 = sshll.u32 [#allocation7], 4
      %s57 = int_to_ptr.vmem [resolvable:$true] %s56
      %59 = dma.hbm_to_vmem [thread:$0]  %s4, 64, %s57, [#allocation8]
    $region21: #{forward.3} parent=1 // pred_fallthru
      _
    // Predicated region
    $region22: #{forward.3} parent=1 // pred_check
      _
    $region23: #{forward.3} parent=1 // pred_check_branch
      %61 = sbr.rel (0) target = $region25
    $region24: #{forward.3} parent=1 // pred_region
      %s63 = ssub.s32 49152, 49152
      %64 = vsyncadd [#allocation8], %s63
      %s65 = sshll.u32 [#allocation9], 4
      %s66 = int_to_ptr.vmem [resolvable:$true] %s65
      %71 = dma.hbm_to_vmem [thread:$0]  %s5, 49152, %s66, [#allocation8], 256, 256, 16
    $region25: #{forward.3} parent=1 // pred_fallthru
      _
    // Predicated region
    $region26: #{forward.3} parent=1 // pred_check
      _
    $region27: #{forward.3} parent=1 // pred_check_branch
      %73 = sbr.rel (0) target = $region29
    $region28: #{forward.3} parent=1 // pred_region
      %s75 = ssub.s32 64, 64
      %76 = vsyncadd [#allocation11], %s75
      %s78 = sshll.u32 [#allocation10], 4
      %s79 = int_to_ptr.vmem [resolvable:$true] %s78
      %81 = dma.hbm_to_vmem [thread:$0]  %s6, 64, %s79, [#allocation11]
    $region29: #{forward.3} parent=1 // pred_fallthru
      _
    // Predicated region
    $region30: #{forward.3} parent=1 // pred_check
      _
    $region31: #{forward.3} parent=1 // pred_check_branch
      %83 = sbr.rel (0) target = $region33
    $region32: #{forward.3} parent=1 // pred_region
      %84 = dma.done [#allocation3], 16384
    $region33: #{forward.3} parent=1 // pred_fallthru
      _
    // Predicated region
    $region34: #{forward.3} parent=1 // pred_check
      _
    $region35: #{forward.3} parent=1 // pred_check_branch
      %86 = sbr.rel (0) target = $region37
    $region36: #{forward.3} parent=1 // pred_region
      %87 = dma.done [#allocation5], 64
    $region37: #{forward.3} parent=1 // pred_fallthru
      _
    // Predicated region
    $region38: #{forward.3} parent=1 // pred_check
      _
    $region39: #{forward.3} parent=1 // pred_check_branch
      %89 = sbr.rel (0) target = $region41
    $region40: #{forward.3} parent=1 // pred_region
      %90 = dma.done [#allocation5], 64
    $region41: #{forward.3} parent=1 // pred_fallthru
      _
    // Predicated region
    $region42: #{forward.3} parent=1 // pred_check
      _
    $region43: #{forward.3} parent=1 // pred_check_branch
      %92 = sbr.rel (0) target = $region45
    $region44: #{forward.3} parent=1 // pred_region
      %93 = dma.done [#allocation8], 64
    $region45: #{forward.3} parent=1 // pred_fallthru
      _
    // Predicated region
    $region46: #{forward.3} parent=1 // pred_check
      _
    $region47: #{forward.3} parent=1 // pred_check_branch
      %95 = sbr.rel (0) target = $region49
    $region48: #{forward.3} parent=1 // pred_region
      %96 = dma.done [#allocation8], 49152
    $region49: #{forward.3} parent=1 // pred_fallthru
      _
    // Predicated region
    $region50: #{forward.3} parent=1 // pred_check
      _
    $region51: #{forward.3} parent=1 // pred_check_branch
      %98 = sbr.rel (0) target = $region53
    $region52: #{forward.3} parent=1 // pred_region
      %99 = dma.done [#allocation11], 64
    $region53: #{forward.3} parent=1 // pred_fallthru
      _
    %v101 = vld [vmem:[%s0] sm:$0xff]
    %v102 = vld [vmem:[%s0 + $0x8] sm:$0xff]
    %v103 = vld [vmem:[#allocation2] sm:$0xff]
    %v104 = vld [vmem:[#allocation2 + $0x8] sm:$0xff]
    %v105 = vld [vmem:[#allocation2 + $0x10] sm:$0xff]
    %v106 = vld [vmem:[#allocation2 + $0x18] sm:$0xff]
    %v107 = vld [vmem:[#allocation2 + $0x20] sm:$0xff]
    %v108 = vld [vmem:[#allocation2 + $0x28] sm:$0xff]
    %v109 = vld [vmem:[#allocation2 + $0x30] sm:$0xff]
    %v110 = vld [vmem:[#allocation2 + $0x38] sm:$0xff]
    %v111 = vld [vmem:[#allocation2 + $0x40] sm:$0xff]
    %v112 = vld [vmem:[#allocation2 + $0x48] sm:$0xff]
    %v113 = vld [vmem:[#allocation2 + $0x50] sm:$0xff]
    %v114 = vld [vmem:[#allocation2 + $0x58] sm:$0xff]
    %v115 = vld [vmem:[#allocation2 + $0x60] sm:$0xff]
    %v116 = vld [vmem:[#allocation2 + $0x68] sm:$0xff]
    %v117 = vld [vmem:[#allocation2 + $0x70] sm:$0xff]
    %v118 = vld [vmem:[#allocation2 + $0x78] sm:$0xff]
    %v119 = vld [vmem:[#allocation2 + $0x80] sm:$0xff]
    %v120 = vld [vmem:[#allocation2 + $0x88] sm:$0xff]
    %v121 = vld [vmem:[#allocation2 + $0x90] sm:$0xff]
    %v122 = vld [vmem:[#allocation2 + $0x98] sm:$0xff]
    %v123 = vld [vmem:[#allocation2 + $0xa0] sm:$0xff]
    %v124 = vld [vmem:[#allocation2 + $0xa8] sm:$0xff]
    %v125 = vld [vmem:[#allocation2 + $0xb0] sm:$0xff]
    %v126 = vld [vmem:[#allocation2 + $0xb8] sm:$0xff]
    %v127 = vld [vmem:[#allocation2 + $0xc0] sm:$0xff]
    %v128 = vld [vmem:[#allocation2 + $0xc8] sm:$0xff]
    %v129 = vld [vmem:[#allocation2 + $0xd0] sm:$0xff]
    %v130 = vld [vmem:[#allocation2 + $0xd8] sm:$0xff]
    %v131 = vld [vmem:[#allocation2 + $0xe0] sm:$0xff]
    %v132 = vld [vmem:[#allocation2 + $0xe8] sm:$0xff]
    %v133 = vld [vmem:[#allocation2 + $0xf0] sm:$0xff]
    %v134 = vld [vmem:[#allocation2 + $0xf8] sm:$0xff]
    %v135 = vld [vmem:[#allocation2 + $0x100] sm:$0xff]
    %v136 = vld [vmem:[#allocation2 + $0x108] sm:$0xff]
    %v137 = vld [vmem:[#allocation2 + $0x110] sm:$0xff]
    %v138 = vld [vmem:[#allocation2 + $0x118] sm:$0xff]
    %v139 = vld [vmem:[#allocation2 + $0x120] sm:$0xff]
    %v140 = vld [vmem:[#allocation2 + $0x128] sm:$0xff]
    %v141 = vld [vmem:[#allocation2 + $0x130] sm:$0xff]
    %v142 = vld [vmem:[#allocation2 + $0x138] sm:$0xff]
    %v143 = vld [vmem:[#allocation2 + $0x140] sm:$0xff]
    %v144 = vld [vmem:[#allocation2 + $0x148] sm:$0xff]
    %v145 = vld [vmem:[#allocation2 + $0x150] sm:$0xff]
    %v146 = vld [vmem:[#allocation2 + $0x158] sm:$0xff]
    %v147 = vld [vmem:[#allocation2 + $0x160] sm:$0xff]
    %v148 = vld [vmem:[#allocation2 + $0x168] sm:$0xff]
    %v149 = vld [vmem:[#allocation2 + $0x170] sm:$0xff]
    %v150 = vld [vmem:[#allocation2 + $0x178] sm:$0xff]
    %v151 = vld [vmem:[#allocation2 + $0x180] sm:$0xff]
    %v152 = vld [vmem:[#allocation2 + $0x188] sm:$0xff]
    %v153 = vld [vmem:[#allocation2 + $0x190] sm:$0xff]
    %v154 = vld [vmem:[#allocation2 + $0x198] sm:$0xff]
    %v155 = vld [vmem:[#allocation2 + $0x1a0] sm:$0xff]
    %v156 = vld [vmem:[#allocation2 + $0x1a8] sm:$0xff]
    %v157 = vld [vmem:[#allocation2 + $0x1b0] sm:$0xff]
    %v158 = vld [vmem:[#allocation2 + $0x1b8] sm:$0xff]
    %v159 = vld [vmem:[#allocation2 + $0x1c0] sm:$0xff]
    %v160 = vld [vmem:[#allocation2 + $0x1c8] sm:$0xff]
    %v161 = vld [vmem:[#allocation2 + $0x1d0] sm:$0xff]
    %v162 = vld [vmem:[#allocation2 + $0x1d8] sm:$0xff]
    %v163 = vld [vmem:[#allocation2 + $0x1e0] sm:$0xff]
    %v164 = vld [vmem:[#allocation2 + $0x1e8] sm:$0xff]
    %v165 = vld [vmem:[#allocation2 + $0x1f0] sm:$0xff]
    %v166 = vld [vmem:[#allocation2 + $0x1f8] sm:$0xff]
    %v167 = vld [vmem:[#allocation2 + $0x200] sm:$0xff]
    %v168 = vld [vmem:[#allocation2 + $0x208] sm:$0xff]
    %v169 = vld [vmem:[#allocation2 + $0x210] sm:$0xff]
    %v170 = vld [vmem:[#allocation2 + $0x218] sm:$0xff]
    %v171 = vld [vmem:[#allocation2 + $0x220] sm:$0xff]
    %v172 = vld [vmem:[#allocation2 + $0x228] sm:$0xff]
    %v173 = vld [vmem:[#allocation2 + $0x230] sm:$0xff]
    %v174 = vld [vmem:[#allocation2 + $0x238] sm:$0xff]
    %v175 = vld [vmem:[#allocation2 + $0x240] sm:$0xff]
    %v176 = vld [vmem:[#allocation2 + $0x248] sm:$0xff]
    %v177 = vld [vmem:[#allocation2 + $0x250] sm:$0xff]
    %v178 = vld [vmem:[#allocation2 + $0x258] sm:$0xff]
    %v179 = vld [vmem:[#allocation2 + $0x260] sm:$0xff]
    %v180 = vld [vmem:[#allocation2 + $0x268] sm:$0xff]
    %v181 = vld [vmem:[#allocation2 + $0x270] sm:$0xff]
    %v182 = vld [vmem:[#allocation2 + $0x278] sm:$0xff]
    %v183 = vld [vmem:[#allocation2 + $0x280] sm:$0xff]
    %v184 = vld [vmem:[#allocation2 + $0x288] sm:$0xff]
    %v185 = vld [vmem:[#allocation2 + $0x290] sm:$0xff]
    %v186 = vld [vmem:[#allocation2 + $0x298] sm:$0xff]
    %v187 = vld [vmem:[#allocation2 + $0x2a0] sm:$0xff]
    %v188 = vld [vmem:[#allocation2 + $0x2a8] sm:$0xff]
    %v189 = vld [vmem:[#allocation2 + $0x2b0] sm:$0xff]
    %v190 = vld [vmem:[#allocation2 + $0x2b8] sm:$0xff]
    %v191 = vld [vmem:[#allocation2 + $0x2c0] sm:$0xff]
    %v192 = vld [vmem:[#allocation2 + $0x2c8] sm:$0xff]
    %v193 = vld [vmem:[#allocation2 + $0x2d0] sm:$0xff]
    %v194 = vld [vmem:[#allocation2 + $0x2d8] sm:$0xff]
    %v195 = vld [vmem:[#allocation2 + $0x2e0] sm:$0xff]
    %v196 = vld [vmem:[#allocation2 + $0x2e8] sm:$0xff]
    %v197 = vld [vmem:[#allocation2 + $0x2f0] sm:$0xff]
    %v198 = vld [vmem:[#allocation2 + $0x2f8] sm:$0xff]
    %v199 = vld [vmem:[#allocation2 + $0x300] sm:$0xff]
    %v200 = vld [vmem:[#allocation2 + $0x308] sm:$0xff]
    %v201 = vld [vmem:[#allocation2 + $0x310] sm:$0xff]
    %v202 = vld [vmem:[#allocation2 + $0x318] sm:$0xff]
    %v203 = vld [vmem:[#allocation2 + $0x320] sm:$0xff]
    %v204 = vld [vmem:[#allocation2 + $0x328] sm:$0xff]
    %v205 = vld [vmem:[#allocation2 + $0x330] sm:$0xff]
    %v206 = vld [vmem:[#allocation2 + $0x338] sm:$0xff]
    %v207 = vld [vmem:[#allocation2 + $0x340] sm:$0xff]
    %v208 = vld [vmem:[#allocation2 + $0x348] sm:$0xff]
    %v209 = vld [vmem:[#allocation2 + $0x350] sm:$0xff]
    %v210 = vld [vmem:[#allocation2 + $0x358] sm:$0xff]
    %v211 = vld [vmem:[#allocation2 + $0x360] sm:$0xff]
    %v212 = vld [vmem:[#allocation2 + $0x368] sm:$0xff]
    %v213 = vld [vmem:[#allocation2 + $0x370] sm:$0xff]
    %v214 = vld [vmem:[#allocation2 + $0x378] sm:$0xff]
    %v215 = vld [vmem:[#allocation2 + $0x380] sm:$0xff]
    %v216 = vld [vmem:[#allocation2 + $0x388] sm:$0xff]
    %v217 = vld [vmem:[#allocation2 + $0x390] sm:$0xff]
    %v218 = vld [vmem:[#allocation2 + $0x398] sm:$0xff]
    %v219 = vld [vmem:[#allocation2 + $0x3a0] sm:$0xff]
    %v220 = vld [vmem:[#allocation2 + $0x3a8] sm:$0xff]
    %v221 = vld [vmem:[#allocation2 + $0x3b0] sm:$0xff]
    %v222 = vld [vmem:[#allocation2 + $0x3b8] sm:$0xff]
    %v223 = vld [vmem:[#allocation2 + $0x3c0] sm:$0xff]
    %v224 = vld [vmem:[#allocation2 + $0x3c8] sm:$0xff]
    %v225 = vld [vmem:[#allocation2 + $0x3d0] sm:$0xff]
    %v226 = vld [vmem:[#allocation2 + $0x3d8] sm:$0xff]
    %v227 = vld [vmem:[#allocation2 + $0x3e0] sm:$0xff]
    %v228 = vld [vmem:[#allocation2 + $0x3e8] sm:$0xff]
    %v229 = vld [vmem:[#allocation2 + $0x3f0] sm:$0xff]
    %v230 = vld [vmem:[#allocation2 + $0x3f8] sm:$0xff]
    %v231 = vld [vmem:[#allocation4] sm:$0xf]
    %v233 = vlaneseq
    %v234 = vshrl.u32 %v233, 7
    %v235 = vsub.s32 0, %v234
    %v236 = vrot.slane %v231, %v235
    %v237 = vlaneseq
    %v238 = vshrl.u32 %v237, 7
    %v239 = vsub.s32 1, %v238
    %v240 = vrot.slane %v231, %v239
    %v241 = vlaneseq
    %v242 = vshrl.u32 %v241, 7
    %v243 = vsub.s32 2, %v242
    %v244 = vrot.slane %v231, %v243
    %v245 = vlaneseq
    %v246 = vshrl.u32 %v245, 7
    %v247 = vsub.s32 3, %v246
    %v248 = vrot.slane %v231, %v247
    %v255 = vunpack.c.l.b16 %v101
    %v256 = vunpack.c.h.b16 %v101
    %v257 = vunpack.c.l.b16 %v102
    %v258 = vunpack.c.h.b16 %v102
    %v259 = vpack.c.b16 %v255, %v255
    %v260 = vpack.c.b16 %v256, %v256
    %v261 = vpack.c.b16 %v257, %v257
    %v262 = vpack.c.b16 %v258, %v258
    %v395 = vunpack.c.l.b16 %v103
    %v396 = vunpack.c.h.b16 %v103
    %v397 = vunpack.c.l.b16 %v104
    %v398 = vunpack.c.h.b16 %v104
    %v399 = vunpack.c.l.b16 %v105
    %v400 = vunpack.c.h.b16 %v105
    %v401 = vunpack.c.l.b16 %v106
    %v402 = vunpack.c.h.b16 %v106
    %v403 = vunpack.c.l.b16 %v107
    %v404 = vunpack.c.h.b16 %v107
    %v405 = vunpack.c.l.b16 %v108
    %v406 = vunpack.c.h.b16 %v108
    %v407 = vunpack.c.l.b16 %v109
    %v408 = vunpack.c.h.b16 %v109
    %v409 = vunpack.c.l.b16 %v110
    %v410 = vunpack.c.h.b16 %v110
    %v411 = vunpack.c.l.b16 %v111
    %v412 = vunpack.c.h.b16 %v111
    %v413 = vunpack.c.l.b16 %v112
    %v414 = vunpack.c.h.b16 %v112
    %v415 = vunpack.c.l.b16 %v113
    %v416 = vunpack.c.h.b16 %v113
    %v417 = vunpack.c.l.b16 %v114
    %v418 = vunpack.c.h.b16 %v114
    %v419 = vunpack.c.l.b16 %v115
    %v420 = vunpack.c.h.b16 %v115
    %v421 = vunpack.c.l.b16 %v116
    %v422 = vunpack.c.h.b16 %v116
    %v423 = vunpack.c.l.b16 %v117
    %v424 = vunpack.c.h.b16 %v117
    %v425 = vunpack.c.l.b16 %v118
    %v426 = vunpack.c.h.b16 %v118
    %v427 = vunpack.c.l.b16 %v119
    %v428 = vunpack.c.h.b16 %v119
    %v429 = vunpack.c.l.b16 %v120
    %v430 = vunpack.c.h.b16 %v120
    %v431 = vunpack.c.l.b16 %v121
    %v432 = vunpack.c.h.b16 %v121
    %v433 = vunpack.c.l.b16 %v122
    %v434 = vunpack.c.h.b16 %v122
    %v435 = vunpack.c.l.b16 %v123
    %v436 = vunpack.c.h.b16 %v123
    %v437 = vunpack.c.l.b16 %v124
    %v438 = vunpack.c.h.b16 %v124
    %v439 = vunpack.c.l.b16 %v125
    %v440 = vunpack.c.h.b16 %v125
    %v441 = vunpack.c.l.b16 %v126
    %v442 = vunpack.c.h.b16 %v126
    %v443 = vunpack.c.l.b16 %v127
    %v444 = vunpack.c.h.b16 %v127
    %v445 = vunpack.c.l.b16 %v128
    %v446 = vunpack.c.h.b16 %v128
    %v447 = vunpack.c.l.b16 %v129
    %v448 = vunpack.c.h.b16 %v129
    %v449 = vunpack.c.l.b16 %v130
    %v450 = vunpack.c.h.b16 %v130
    %v451 = vunpack.c.l.b16 %v131
    %v452 = vunpack.c.h.b16 %v131
    %v453 = vunpack.c.l.b16 %v132
    %v454 = vunpack.c.h.b16 %v132
    %v455 = vunpack.c.l.b16 %v133
    %v456 = vunpack.c.h.b16 %v133
    %v457 = vunpack.c.l.b16 %v134
    %v458 = vunpack.c.h.b16 %v134
    %v459 = vunpack.c.l.b16 %v135
    %v460 = vunpack.c.h.b16 %v135
    %v461 = vunpack.c.l.b16 %v136
    %v462 = vunpack.c.h.b16 %v136
    %v463 = vunpack.c.l.b16 %v137
    %v464 = vunpack.c.h.b16 %v137
    %v465 = vunpack.c.l.b16 %v138
    %v466 = vunpack.c.h.b16 %v138
    %v467 = vunpack.c.l.b16 %v139
    %v468 = vunpack.c.h.b16 %v139
    %v469 = vunpack.c.l.b16 %v140
    %v470 = vunpack.c.h.b16 %v140
    %v471 = vunpack.c.l.b16 %v141
    %v472 = vunpack.c.h.b16 %v141
    %v473 = vunpack.c.l.b16 %v142
    %v474 = vunpack.c.h.b16 %v142
    %v475 = vunpack.c.l.b16 %v143
    %v476 = vunpack.c.h.b16 %v143
    %v477 = vunpack.c.l.b16 %v144
    %v478 = vunpack.c.h.b16 %v144
    %v479 = vunpack.c.l.b16 %v145
    %v480 = vunpack.c.h.b16 %v145
    %v481 = vunpack.c.l.b16 %v146
    %v482 = vunpack.c.h.b16 %v146
    %v483 = vunpack.c.l.b16 %v147
    %v484 = vunpack.c.h.b16 %v147
    %v485 = vunpack.c.l.b16 %v148
    %v486 = vunpack.c.h.b16 %v148
    %v487 = vunpack.c.l.b16 %v149
    %v488 = vunpack.c.h.b16 %v149
    %v489 = vunpack.c.l.b16 %v150
    %v490 = vunpack.c.h.b16 %v150
    %v491 = vunpack.c.l.b16 %v151
    %v492 = vunpack.c.h.b16 %v151
    %v493 = vunpack.c.l.b16 %v152
    %v494 = vunpack.c.h.b16 %v152
    %v495 = vunpack.c.l.b16 %v153
    %v496 = vunpack.c.h.b16 %v153
    %v497 = vunpack.c.l.b16 %v154
    %v498 = vunpack.c.h.b16 %v154
    %v499 = vunpack.c.l.b16 %v155
    %v500 = vunpack.c.h.b16 %v155
    %v501 = vunpack.c.l.b16 %v156
    %v502 = vunpack.c.h.b16 %v156
    %v503 = vunpack.c.l.b16 %v157
    %v504 = vunpack.c.h.b16 %v157
    %v505 = vunpack.c.l.b16 %v158
    %v506 = vunpack.c.h.b16 %v158
    %v507 = vunpack.c.l.b16 %v159
    %v508 = vunpack.c.h.b16 %v159
    %v509 = vunpack.c.l.b16 %v160
    %v510 = vunpack.c.h.b16 %v160
    %v511 = vunpack.c.l.b16 %v161
    %v512 = vunpack.c.h.b16 %v161
    %v513 = vunpack.c.l.b16 %v162
    %v514 = vunpack.c.h.b16 %v162
    %v515 = vunpack.c.l.b16 %v163
    %v516 = vunpack.c.h.b16 %v163
    %v517 = vunpack.c.l.b16 %v164
    %v518 = vunpack.c.h.b16 %v164
    %v519 = vunpack.c.l.b16 %v165
    %v520 = vunpack.c.h.b16 %v165
    %v521 = vunpack.c.l.b16 %v166
    %v522 = vunpack.c.h.b16 %v166
    %v523 = vunpack.c.l.b16 %v167
    %v524 = vunpack.c.h.b16 %v167
    %v525 = vunpack.c.l.b16 %v168
    %v526 = vunpack.c.h.b16 %v168
    %v527 = vunpack.c.l.b16 %v169
    %v528 = vunpack.c.h.b16 %v169
    %v529 = vunpack.c.l.b16 %v170
    %v530 = vunpack.c.h.b16 %v170
    %v531 = vunpack.c.l.b16 %v171
    %v532 = vunpack.c.h.b16 %v171
    %v533 = vunpack.c.l.b16 %v172
    %v534 = vunpack.c.h.b16 %v172
    %v535 = vunpack.c.l.b16 %v173
    %v536 = vunpack.c.h.b16 %v173
    %v537 = vunpack.c.l.b16 %v174
    %v538 = vunpack.c.h.b16 %v174
    %v539 = vunpack.c.l.b16 %v175
    %v540 = vunpack.c.h.b16 %v175
    %v541 = vunpack.c.l.b16 %v176
    %v542 = vunpack.c.h.b16 %v176
    %v543 = vunpack.c.l.b16 %v177
    %v544 = vunpack.c.h.b16 %v177
    %v545 = vunpack.c.l.b16 %v178
    %v546 = vunpack.c.h.b16 %v178
    %v547 = vunpack.c.l.b16 %v179
    %v548 = vunpack.c.h.b16 %v179
    %v549 = vunpack.c.l.b16 %v180
    %v550 = vunpack.c.h.b16 %v180
    %v551 = vunpack.c.l.b16 %v181
    %v552 = vunpack.c.h.b16 %v181
    %v553 = vunpack.c.l.b16 %v182
    %v554 = vunpack.c.h.b16 %v182
    %v555 = vunpack.c.l.b16 %v183
    %v556 = vunpack.c.h.b16 %v183
    %v557 = vunpack.c.l.b16 %v184
    %v558 = vunpack.c.h.b16 %v184
    %v559 = vunpack.c.l.b16 %v185
    %v560 = vunpack.c.h.b16 %v185
    %v561 = vunpack.c.l.b16 %v186
    %v562 = vunpack.c.h.b16 %v186
    %v563 = vunpack.c.l.b16 %v187
    %v564 = vunpack.c.h.b16 %v187
    %v565 = vunpack.c.l.b16 %v188
    %v566 = vunpack.c.h.b16 %v188
    %v567 = vunpack.c.l.b16 %v189
    %v568 = vunpack.c.h.b16 %v189
    %v569 = vunpack.c.l.b16 %v190
    %v570 = vunpack.c.h.b16 %v190
    %v571 = vunpack.c.l.b16 %v191
    %v572 = vunpack.c.h.b16 %v191
    %v573 = vunpack.c.l.b16 %v192
    %v574 = vunpack.c.h.b16 %v192
    %v575 = vunpack.c.l.b16 %v193
    %v576 = vunpack.c.h.b16 %v193
    %v577 = vunpack.c.l.b16 %v194
    %v578 = vunpack.c.h.b16 %v194
    %v579 = vunpack.c.l.b16 %v195
    %v580 = vunpack.c.h.b16 %v195
    %v581 = vunpack.c.l.b16 %v196
    %v582 = vunpack.c.h.b16 %v196
    %v583 = vunpack.c.l.b16 %v197
    %v584 = vunpack.c.h.b16 %v197
    %v585 = vunpack.c.l.b16 %v198
    %v586 = vunpack.c.h.b16 %v198
    %v587 = vunpack.c.l.b16 %v199
    %v588 = vunpack.c.h.b16 %v199
    %v589 = vunpack.c.l.b16 %v200
    %v590 = vunpack.c.h.b16 %v200
    %v591 = vunpack.c.l.b16 %v201
    %v592 = vunpack.c.h.b16 %v201
    %v593 = vunpack.c.l.b16 %v202
    %v594 = vunpack.c.h.b16 %v202
    %v595 = vunpack.c.l.b16 %v203
    %v596 = vunpack.c.h.b16 %v203
    %v597 = vunpack.c.l.b16 %v204
    %v598 = vunpack.c.h.b16 %v204
    %v599 = vunpack.c.l.b16 %v205
    %v600 = vunpack.c.h.b16 %v205
    %v601 = vunpack.c.l.b16 %v206
    %v602 = vunpack.c.h.b16 %v206
    %v603 = vunpack.c.l.b16 %v207
    %v604 = vunpack.c.h.b16 %v207
    %v605 = vunpack.c.l.b16 %v208
    %v606 = vunpack.c.h.b16 %v208
    %v607 = vunpack.c.l.b16 %v209
    %v608 = vunpack.c.h.b16 %v209
    %v609 = vunpack.c.l.b16 %v210
    %v610 = vunpack.c.h.b16 %v210
    %v611 = vunpack.c.l.b16 %v211
    %v612 = vunpack.c.h.b16 %v211
    %v613 = vunpack.c.l.b16 %v212
    %v614 = vunpack.c.h.b16 %v212
    %v615 = vunpack.c.l.b16 %v213
    %v616 = vunpack.c.h.b16 %v213
    %v617 = vunpack.c.l.b16 %v214
    %v618 = vunpack.c.h.b16 %v214
    %v619 = vunpack.c.l.b16 %v215
    %v620 = vunpack.c.h.b16 %v215
    %v621 = vunpack.c.l.b16 %v216
    %v622 = vunpack.c.h.b16 %v216
    %v623 = vunpack.c.l.b16 %v217
    %v624 = vunpack.c.h.b16 %v217
    %v625 = vunpack.c.l.b16 %v218
    %v626 = vunpack.c.h.b16 %v218
    %v627 = vunpack.c.l.b16 %v219
    %v628 = vunpack.c.h.b16 %v219
    %v629 = vunpack.c.l.b16 %v220
    %v630 = vunpack.c.h.b16 %v220
    %v631 = vunpack.c.l.b16 %v221
    %v632 = vunpack.c.h.b16 %v221
    %v633 = vunpack.c.l.b16 %v222
    %v634 = vunpack.c.h.b16 %v222
    %v635 = vunpack.c.l.b16 %v223
    %v636 = vunpack.c.h.b16 %v223
    %v637 = vunpack.c.l.b16 %v224
    %v638 = vunpack.c.h.b16 %v224
    %v639 = vunpack.c.l.b16 %v225
    %v640 = vunpack.c.h.b16 %v225
    %v641 = vunpack.c.l.b16 %v226
    %v642 = vunpack.c.h.b16 %v226
    %v643 = vunpack.c.l.b16 %v227
    %v644 = vunpack.c.h.b16 %v227
    %v645 = vunpack.c.l.b16 %v228
    %v646 = vunpack.c.h.b16 %v228
    %v647 = vunpack.c.l.b16 %v229
    %v648 = vunpack.c.h.b16 %v229
    %v649 = vunpack.c.l.b16 %v230
    %v650 = vunpack.c.h.b16 %v230
    %v651 = vpack.c.b16 %v399, %v395
    %v652 = vpack.c.b16 %v400, %v396
    %v653 = vpack.c.b16 %v401, %v397
    %v654 = vpack.c.b16 %v402, %v398
    %v655 = vpack.c.b16 %v407, %v403
    %v656 = vpack.c.b16 %v408, %v404
    %v657 = vpack.c.b16 %v409, %v405
    %v658 = vpack.c.b16 %v410, %v406
    %v659 = vpack.c.b16 %v415, %v411
    %v660 = vpack.c.b16 %v416, %v412
    %v661 = vpack.c.b16 %v417, %v413
    %v662 = vpack.c.b16 %v418, %v414
    %v663 = vpack.c.b16 %v423, %v419
    %v664 = vpack.c.b16 %v424, %v420
    %v665 = vpack.c.b16 %v425, %v421
    %v666 = vpack.c.b16 %v426, %v422
    %v667 = vpack.c.b16 %v431, %v427
    %v668 = vpack.c.b16 %v432, %v428
    %v669 = vpack.c.b16 %v433, %v429
    %v670 = vpack.c.b16 %v434, %v430
    %v671 = vpack.c.b16 %v439, %v435
    %v672 = vpack.c.b16 %v440, %v436
    %v673 = vpack.c.b16 %v441, %v437
    %v674 = vpack.c.b16 %v442, %v438
    %v675 = vpack.c.b16 %v447, %v443
    %v676 = vpack.c.b16 %v448, %v444
    %v677 = vpack.c.b16 %v449, %v445
    %v678 = vpack.c.b16 %v450, %v446
    %v679 = vpack.c.b16 %v455, %v451
    %v680 = vpack.c.b16 %v456, %v452
    %v681 = vpack.c.b16 %v457, %v453
    %v682 = vpack.c.b16 %v458, %v454
    %v683 = vpack.c.b16 %v463, %v459
    %v684 = vpack.c.b16 %v464, %v460
    %v685 = vpack.c.b16 %v465, %v461
    %v686 = vpack.c.b16 %v466, %v462
    %v687 = vpack.c.b16 %v471, %v467
    %v688 = vpack.c.b16 %v472, %v468
    %v689 = vpack.c.b16 %v473, %v469
    %v690 = vpack.c.b16 %v474, %v470
    %v691 = vpack.c.b16 %v479, %v475
    %v692 = vpack.c.b16 %v480, %v476
    %v693 = vpack.c.b16 %v481, %v477
    %v694 = vpack.c.b16 %v482, %v478
    %v695 = vpack.c.b16 %v487, %v483
    %v696 = vpack.c.b16 %v488, %v484
    %v697 = vpack.c.b16 %v489, %v485
    %v698 = vpack.c.b16 %v490, %v486
    %v699 = vpack.c.b16 %v495, %v491
    %v700 = vpack.c.b16 %v496, %v492
    %v701 = vpack.c.b16 %v497, %v493
    %v702 = vpack.c.b16 %v498, %v494
    %v703 = vpack.c.b16 %v503, %v499
    %v704 = vpack.c.b16 %v504, %v500
    %v705 = vpack.c.b16 %v505, %v501
    %v706 = vpack.c.b16 %v506, %v502
    %v707 = vpack.c.b16 %v511, %v507
    %v708 = vpack.c.b16 %v512, %v508
    %v709 = vpack.c.b16 %v513, %v509
    %v710 = vpack.c.b16 %v514, %v510
    %v711 = vpack.c.b16 %v519, %v515
    %v712 = vpack.c.b16 %v520, %v516
    %v713 = vpack.c.b16 %v521, %v517
    %v714 = vpack.c.b16 %v522, %v518
    %v715 = vpack.c.b16 %v527, %v523
    %v716 = vpack.c.b16 %v528, %v524
    %v717 = vpack.c.b16 %v529, %v525
    %v718 = vpack.c.b16 %v530, %v526
    %v719 = vpack.c.b16 %v535, %v531
    %v720 = vpack.c.b16 %v536, %v532
    %v721 = vpack.c.b16 %v537, %v533
    %v722 = vpack.c.b16 %v538, %v534
    %v723 = vpack.c.b16 %v543, %v539
    %v724 = vpack.c.b16 %v544, %v540
    %v725 = vpack.c.b16 %v545, %v541
    %v726 = vpack.c.b16 %v546, %v542
    %v727 = vpack.c.b16 %v551, %v547
    %v728 = vpack.c.b16 %v552, %v548
    %v729 = vpack.c.b16 %v553, %v549
    %v730 = vpack.c.b16 %v554, %v550
    %v731 = vpack.c.b16 %v559, %v555
    %v732 = vpack.c.b16 %v560, %v556
    %v733 = vpack.c.b16 %v561, %v557
    %v734 = vpack.c.b16 %v562, %v558
    %v735 = vpack.c.b16 %v567, %v563
    %v736 = vpack.c.b16 %v568, %v564
    %v737 = vpack.c.b16 %v569, %v565
    %v738 = vpack.c.b16 %v570, %v566
    %v739 = vpack.c.b16 %v575, %v571
    %v740 = vpack.c.b16 %v576, %v572
    %v741 = vpack.c.b16 %v577, %v573
    %v742 = vpack.c.b16 %v578, %v574
    %v743 = vpack.c.b16 %v583, %v579
    %v744 = vpack.c.b16 %v584, %v580
    %v745 = vpack.c.b16 %v585, %v581
    %v746 = vpack.c.b16 %v586, %v582
    %v747 = vpack.c.b16 %v591, %v587
    %v748 = vpack.c.b16 %v592, %v588
    %v749 = vpack.c.b16 %v593, %v589
    %v750 = vpack.c.b16 %v594, %v590
    %v751 = vpack.c.b16 %v599, %v595
    %v752 = vpack.c.b16 %v600, %v596
    %v753 = vpack.c.b16 %v601, %v597
    %v754 = vpack.c.b16 %v602, %v598
    %v755 = vpack.c.b16 %v607, %v603
    %v756 = vpack.c.b16 %v608, %v604
    %v757 = vpack.c.b16 %v609, %v605
    %v758 = vpack.c.b16 %v610, %v606
    %v759 = vpack.c.b16 %v615, %v611
    %v760 = vpack.c.b16 %v616, %v612
    %v761 = vpack.c.b16 %v617, %v613
    %v762 = vpack.c.b16 %v618, %v614
    %v763 = vpack.c.b16 %v623, %v619
    %v764 = vpack.c.b16 %v624, %v620
    %v765 = vpack.c.b16 %v625, %v621
    %v766 = vpack.c.b16 %v626, %v622
    %v767 = vpack.c.b16 %v631, %v627
    %v768 = vpack.c.b16 %v632, %v628
    %v769 = vpack.c.b16 %v633, %v629
    %v770 = vpack.c.b16 %v634, %v630
    %v771 = vpack.c.b16 %v639, %v635
    %v772 = vpack.c.b16 %v640, %v636
    %v773 = vpack.c.b16 %v641, %v637
    %v774 = vpack.c.b16 %v642, %v638
    %v775 = vpack.c.b16 %v647, %v643
    %v776 = vpack.c.b16 %v648, %v644
    %v777 = vpack.c.b16 %v649, %v645
    %v778 = vpack.c.b16 %v650, %v646
    %907 = vmatprep.subr.bf16.mxu0 %v680
    %908 = vmatpush1.bf16.msra.mxu0 %v679
    %909 = vmatprep.subr.bf16.mxu0 %v676
    %910 = vmatpush1.bf16.msra.mxu0 %v675
    %911 = vmatprep.subr.bf16.mxu0 %v672
    %912 = vmatpush1.bf16.msra.mxu0 %v671
    %913 = vmatprep.subr.bf16.mxu0 %v668
    %914 = vmatpush1.bf16.msra.mxu0 %v667
    %915 = vmatprep.subr.bf16.mxu0 %v664
    %916 = vmatpush1.bf16.msra.mxu0 %v663
    %917 = vmatprep.subr.bf16.mxu0 %v660
    %918 = vmatpush1.bf16.msra.mxu0 %v659
    %919 = vmatprep.subr.bf16.mxu0 %v656
    %920 = vmatpush1.bf16.msra.mxu0 %v655
    %921 = vmatprep.subr.bf16.mxu0 %v652
    %922 = vmatpush1.bf16.msra.mxu0 %v651
    %923 = vmatprep.subr.bf16.mxu0 %v712
    %924 = vmatpush2.bf16.msra.mxu0 %v711
    %925 = vmatprep.subr.bf16.mxu0 %v708
    %926 = vmatpush2.bf16.msra.mxu0 %v707
    %927 = vmatprep.subr.bf16.mxu0 %v704
    %928 = vmatpush2.bf16.msra.mxu0 %v703
    %929 = vmatprep.subr.bf16.mxu0 %v700
    %930 = vmatpush2.bf16.msra.mxu0 %v699
    %931 = vmatprep.subr.bf16.mxu0 %v696
    %932 = vmatpush2.bf16.msra.mxu0 %v695
    %933 = vmatprep.subr.bf16.mxu0 %v692
    %934 = vmatpush2.bf16.msra.mxu0 %v691
    %935 = vmatprep.subr.bf16.mxu0 %v688
    %936 = vmatpush2.bf16.msra.mxu0 %v687
    %937 = vmatprep.subr.bf16.mxu0 %v684
    %938 = vmatpush2.bf16.msra.mxu0 %v683
    %939 = vmatprep.mubr.bf16.mxu0 %v260
    %940 = vmatmul.mubr.bf16.gmra.mxu0 %v259
    %v941 = vpop.f32.mrf.mxu0
    %v942 = vadd.f32 %v236, %v941
    %v943 = vpop.f32.mrf.mxu0
    %v944 = vadd.f32 %v240, %v943
    %v945 = vpop.f32.mrf.mxu0
    %v946 = vpop.f32.mrf.mxu0
    %947 = vdwg.mxu0
    %948 = vmatprep.subr.bf16.mxu0 %v744
    %949 = vmatpush1.bf16.msra.mxu0 %v743
    %950 = vmatprep.subr.bf16.mxu0 %v740
    %951 = vmatpush1.bf16.msra.mxu0 %v739
    %952 = vmatprep.subr.bf16.mxu0 %v736
    %953 = vmatpush1.bf16.msra.mxu0 %v735
    %954 = vmatprep.subr.bf16.mxu0 %v732
    %955 = vmatpush1.bf16.msra.mxu0 %v731
    %956 = vmatprep.subr.bf16.mxu0 %v728
    %957 = vmatpush1.bf16.msra.mxu0 %v727
    %958 = vmatprep.subr.bf16.mxu0 %v724
    %959 = vmatpush1.bf16.msra.mxu0 %v723
    %960 = vmatprep.subr.bf16.mxu0 %v720
    %961 = vmatpush1.bf16.msra.mxu0 %v719
    %962 = vmatprep.subr.bf16.mxu0 %v716
    %963 = vmatpush1.bf16.msra.mxu0 %v715
    %964 = vmatprep.subr.bf16.mxu0 %v776
    %965 = vmatpush2.bf16.msra.mxu0 %v775
    %966 = vmatprep.subr.bf16.mxu0 %v772
    %967 = vmatpush2.bf16.msra.mxu0 %v771
    %968 = vmatprep.subr.bf16.mxu0 %v768
    %969 = vmatpush2.bf16.msra.mxu0 %v767
    %970 = vmatprep.subr.bf16.mxu0 %v764
    %971 = vmatpush2.bf16.msra.mxu0 %v763
    %972 = vmatprep.subr.bf16.mxu0 %v760
    %973 = vmatpush2.bf16.msra.mxu0 %v759
    %974 = vmatprep.subr.bf16.mxu0 %v756
    %975 = vmatpush2.bf16.msra.mxu0 %v755
    %976 = vmatprep.subr.bf16.mxu0 %v752
    %977 = vmatpush2.bf16.msra.mxu0 %v751
    %978 = vmatprep.subr.bf16.mxu0 %v748
    %979 = vmatpush2.bf16.msra.mxu0 %v747
    %980 = vmatprep.mubr.bf16.mxu0 %v262
    %981 = vmatmul.mubr.bf16.gmra.mxu0 %v261
    %v982 = vpop.f32.mrf.mxu0
    %v983 = vadd.f32 %v942, %v982
    %v984 = vpop.f32.mrf.mxu0
    %v985 = vadd.f32 %v944, %v984
    %v986 = vpop.f32.mrf.mxu0
    %v987 = vpop.f32.mrf.mxu0
    %988 = vdwg.mxu0
    %989 = vmatprep.subr.bf16.mxu0 %v682
    %990 = vmatpush1.bf16.msra.mxu0 %v681
    %991 = vmatprep.subr.bf16.mxu0 %v678
    %992 = vmatpush1.bf16.msra.mxu0 %v677
    %993 = vmatprep.subr.bf16.mxu0 %v674
    %994 = vmatpush1.bf16.msra.mxu0 %v673
    %995 = vmatprep.subr.bf16.mxu0 %v670
    %996 = vmatpush1.bf16.msra.mxu0 %v669
    %997 = vmatprep.subr.bf16.mxu0 %v666
    %998 = vmatpush1.bf16.msra.mxu0 %v665
    %999 = vmatprep.subr.bf16.mxu0 %v662
    %1000 = vmatpush1.bf16.msra.mxu0 %v661
    %1001 = vmatprep.subr.bf16.mxu0 %v658
    %1002 = vmatpush1.bf16.msra.mxu0 %v657
    %1003 = vmatprep.subr.bf16.mxu0 %v654
    %1004 = vmatpush1.bf16.msra.mxu0 %v653
    %1005 = vmatprep.subr.bf16.mxu0 %v714
    %1006 = vmatpush2.bf16.msra.mxu0 %v713
    %1007 = vmatprep.subr.bf16.mxu0 %v710
    %1008 = vmatpush2.bf16.msra.mxu0 %v709
    %1009 = vmatprep.subr.bf16.mxu0 %v706
    %1010 = vmatpush2.bf16.msra.mxu0 %v705
    %1011 = vmatprep.subr.bf16.mxu0 %v702
    %1012 = vmatpush2.bf16.msra.mxu0 %v701
    %1013 = vmatprep.subr.bf16.mxu0 %v698
    %1014 = vmatpush2.bf16.msra.mxu0 %v697
    %1015 = vmatprep.subr.bf16.mxu0 %v694
    %1016 = vmatpush2.bf16.msra.mxu0 %v693
    %1017 = vmatprep.subr.bf16.mxu0 %v690
    %1018 = vmatpush2.bf16.msra.mxu0 %v689
    %1019 = vmatprep.subr.bf16.mxu0 %v686
    %1020 = vmatpush2.bf16.msra.mxu0 %v685
    %1021 = vmatprep.mubr.bf16.mxu0 %v260
    %1022 = vmatmul.mubr.bf16.gmra.mxu0 %v259
    %v1023 = vpop.f32.mrf.mxu0
    %v1024 = vadd.f32 %v244, %v1023
    %v1025 = vpop.f32.mrf.mxu0
    %v1026 = vadd.f32 %v248, %v1025
    %v1027 = vpop.f32.mrf.mxu0
    %v1028 = vpop.f32.mrf.mxu0
    %1029 = vdwg.mxu0
    %1030 = vmatprep.subr.bf16.mxu0 %v746
    %1031 = vmatpush1.bf16.msra.mxu0 %v745
    %1032 = vmatprep.subr.bf16.mxu0 %v742
    %1033 = vmatpush1.bf16.msra.mxu0 %v741
    %1034 = vmatprep.subr.bf16.mxu0 %v738
    %1035 = vmatpush1.bf16.msra.mxu0 %v737
    %1036 = vmatprep.subr.bf16.mxu0 %v734
    %1037 = vmatpush1.bf16.msra.mxu0 %v733
    %1038 = vmatprep.subr.bf16.mxu0 %v730
    %1039 = vmatpush1.bf16.msra.mxu0 %v729
    %1040 = vmatprep.subr.bf16.mxu0 %v726
    %1041 = vmatpush1.bf16.msra.mxu0 %v725
    %1042 = vmatprep.subr.bf16.mxu0 %v722
    %1043 = vmatpush1.bf16.msra.mxu0 %v721
    %1044 = vmatprep.subr.bf16.mxu0 %v718
    %1045 = vmatpush1.bf16.msra.mxu0 %v717
    %1046 = vmatprep.subr.bf16.mxu0 %v778
    %1047 = vmatpush2.bf16.msra.mxu0 %v777
    %1048 = vmatprep.subr.bf16.mxu0 %v774
    %1049 = vmatpush2.bf16.msra.mxu0 %v773
    %1050 = vmatprep.subr.bf16.mxu0 %v770
    %1051 = vmatpush2.bf16.msra.mxu0 %v769
    %1052 = vmatprep.subr.bf16.mxu0 %v766
    %1053 = vmatpush2.bf16.msra.mxu0 %v765
    %1054 = vmatprep.subr.bf16.mxu0 %v762
    %1055 = vmatpush2.bf16.msra.mxu0 %v761
    %1056 = vmatprep.subr.bf16.mxu0 %v758
    %1057 = vmatpush2.bf16.msra.mxu0 %v757
    %1058 = vmatprep.subr.bf16.mxu0 %v754
    %1059 = vmatpush2.bf16.msra.mxu0 %v753
    %1060 = vmatprep.subr.bf16.mxu0 %v750
    %1061 = vmatpush2.bf16.msra.mxu0 %v749
    %1062 = vmatprep.mubr.bf16.mxu0 %v262
    %1063 = vmatmul.mubr.bf16.gmra.mxu0 %v261
    %v1064 = vpop.f32.mrf.mxu0
    %v1065 = vadd.f32 %v1024, %v1064
    %v1066 = vpop.f32.mrf.mxu0
    %v1067 = vadd.f32 %v1026, %v1066
    %v1068 = vpop.f32.mrf.mxu0
    %v1069 = vpop.f32.mrf.mxu0
    %1070 = vdwg.mxu0
    %vm1071 = vcmp.gt.f32.partialorder %v983, 0.0
    %vm1072 = vcmp.gt.f32.partialorder %v985, 0.0
    %vm1073 = vcmp.gt.f32.partialorder %v1065, 0.0
    %vm1074 = vcmp.gt.f32.partialorder %v1067, 0.0
    %v1075 = vmul.f32 %v983, 0.01
    %v1076 = vmul.f32 %v985, 0.01
    %v1077 = vmul.f32 %v1065, 0.01
    %v1078 = vmul.f32 %v1067, 0.01
    %v1079 = vsel %vm1071, %v983, %v1075
    %v1080 = vsel %vm1072, %v985, %v1076
    %v1081 = vsel %vm1073, %v1065, %v1077
    %v1082 = vsel %vm1074, %v1067, %v1078
    %v1083 = vpack.c.bf16 %v1079, %v1079
    %v1084 = vpack.c.bf16 %v1080, %v1080
    %v1085 = vpack.c.bf16 %v1081, %v1081
    %v1086 = vpack.c.bf16 %v1082, %v1082
    %v1087 = vld [vmem:[#allocation6] sm:$0xf]
    %vm1088 = vcmask 64512
    %v1090 = vsel %vm1088, %v1087, 0
    %vm1092 = vcmask 1043456
    %v1094 = vsel %vm1092, %v1083, 0
    %v1097 = vsel %vm1092, %v1084, 0
    %v1100 = vsel %vm1092, %v1085, 0
    %v1103 = vsel %vm1092, %v1086, 0
    %1105 = vmatprep.subr.bf16.mxu0 0
    %1106 = vmatpush1.bf16.msra.mxu0 0
    %1107 = vmatprep.subr.bf16.mxu0 0
    %1108 = vmatpush1.bf16.msra.mxu0 0
    %1109 = vmatprep.subr.bf16.mxu0 0
    %1110 = vmatpush1.bf16.msra.mxu0 0
    %1111 = vmatprep.subr.bf16.mxu0 0
    %1112 = vmatpush1.bf16.msra.mxu0 0
    %1113 = vmatprep.subr.bf16.mxu0 0
    %1114 = vmatpush1.bf16.msra.mxu0 0
    %1115 = vmatprep.subr.bf16.mxu0 0
    %1116 = vmatpush1.bf16.msra.mxu0 0
    %1117 = vmatprep.subr.bf16.mxu0 0
    %1118 = vmatpush1.bf16.msra.mxu0 0
    %1119 = vmatprep.subr.bf16.mxu0 %v1097
    %1120 = vmatpush1.bf16.msra.mxu0 %v1094
    %1121 = vmatprep.subr.bf16.mxu0 0
    %1122 = vmatpush2.bf16.msra.mxu0 0
    %1123 = vmatprep.subr.bf16.mxu0 0
    %1124 = vmatpush2.bf16.msra.mxu0 0
    %1125 = vmatprep.subr.bf16.mxu0 0
    %1126 = vmatpush2.bf16.msra.mxu0 0
    %1127 = vmatprep.subr.bf16.mxu0 0
    %1128 = vmatpush2.bf16.msra.mxu0 0
    %1129 = vmatprep.subr.bf16.mxu0 0
    %1130 = vmatpush2.bf16.msra.mxu0 0
    %1131 = vmatprep.subr.bf16.mxu0 0
    %1132 = vmatpush2.bf16.msra.mxu0 0
    %1133 = vmatprep.subr.bf16.mxu0 0
    %1134 = vmatpush2.bf16.msra.mxu0 0
    %1135 = vmatprep.subr.bf16.mxu0 0
    %1136 = vmatpush2.bf16.msra.mxu0 0
    %1137 = vmatprep.mubr.bf16.mxu0 0
    %1138 = vmatmul.mubr.bf16.gmra.mxu0 %v1090
    %v1139 = vpop.f32.mrf.mxu0
    %v1140 = vadd.f32 0.0, %v1139
    %v1141 = vpop.f32.mrf.mxu0
    %v1142 = vadd.f32 0.0, %v1141
    %v1143 = vpop.f32.mrf.mxu0
    %v1144 = vpop.f32.mrf.mxu0
    %1145 = vdwg.mxu0
    %1146 = vmatprep.subr.bf16.mxu0 0
    %1147 = vmatpush1.bf16.msra.mxu0 0
    %1148 = vmatprep.subr.bf16.mxu0 0
    %1149 = vmatpush1.bf16.msra.mxu0 0
    %1150 = vmatprep.subr.bf16.mxu0 0
    %1151 = vmatpush1.bf16.msra.mxu0 0
    %1152 = vmatprep.subr.bf16.mxu0 0
    %1153 = vmatpush1.bf16.msra.mxu0 0
    %1154 = vmatprep.subr.bf16.mxu0 0
    %1155 = vmatpush1.bf16.msra.mxu0 0
    %1156 = vmatprep.subr.bf16.mxu0 0
    %1157 = vmatpush1.bf16.msra.mxu0 0
    %1158 = vmatprep.subr.bf16.mxu0 0
    %1159 = vmatpush1.bf16.msra.mxu0 0
    %1160 = vmatprep.subr.bf16.mxu0 %v1103
    %1161 = vmatpush1.bf16.msra.mxu0 %v1100
    %1162 = vmatprep.subr.bf16.mxu0 0
    %1163 = vmatpush2.bf16.msra.mxu0 0
    %1164 = vmatprep.subr.bf16.mxu0 0
    %1165 = vmatpush2.bf16.msra.mxu0 0
    %1166 = vmatprep.subr.bf16.mxu0 0
    %1167 = vmatpush2.bf16.msra.mxu0 0
    %1168 = vmatprep.subr.bf16.mxu0 0
    %1169 = vmatpush2.bf16.msra.mxu0 0
    %1170 = vmatprep.subr.bf16.mxu0 0
    %1171 = vmatpush2.bf16.msra.mxu0 0
    %1172 = vmatprep.subr.bf16.mxu0 0
    %1173 = vmatpush2.bf16.msra.mxu0 0
    %1174 = vmatprep.subr.bf16.mxu0 0
    %1175 = vmatpush2.bf16.msra.mxu0 0
    %1176 = vmatprep.subr.bf16.mxu0 0
    %1177 = vmatpush2.bf16.msra.mxu0 0
    %1178 = vmatprep.mubr.bf16.mxu0 0
    %1179 = vmatmul.mubr.bf16.gmra.mxu0 %v1090
    %v1180 = vpop.f32.mrf.mxu0
    %v1181 = vadd.f32 0.0, %v1180
    %v1182 = vpop.f32.mrf.mxu0
    %v1183 = vadd.f32 0.0, %v1182
    %v1184 = vpop.f32.mrf.mxu0
    %v1185 = vpop.f32.mrf.mxu0
    %1186 = vdwg.mxu0
    %v1187 = vpack.c.bf16 %v1140, %v1140
    %v1188 = vpack.c.bf16 %v1142, %v1142
    %v1189 = vpack.c.bf16 %v1181, %v1181
    %v1190 = vpack.c.bf16 %v1183, %v1183
    %v1191 = vld [vmem:[#allocation7] sm:$0xf]
    %v1193 = vsel %vm1088, %v1191, 0
    %1195 = vmatprep.subr.bf16.mxu0 0
    %1196 = vmatpush1.bf16.msra.mxu0 0
    %1197 = vmatprep.subr.bf16.mxu0 0
    %1198 = vmatpush1.bf16.msra.mxu0 0
    %1199 = vmatprep.subr.bf16.mxu0 0
    %1200 = vmatpush1.bf16.msra.mxu0 0
    %1201 = vmatprep.subr.bf16.mxu0 0
    %1202 = vmatpush1.bf16.msra.mxu0 0
    %1203 = vmatprep.subr.bf16.mxu0 0
    %1204 = vmatpush1.bf16.msra.mxu0 0
    %1205 = vmatprep.subr.bf16.mxu0 0
    %1206 = vmatpush1.bf16.msra.mxu0 0
    %1207 = vmatprep.subr.bf16.mxu0 0
    %1208 = vmatpush1.bf16.msra.mxu0 0
    %1209 = vmatprep.subr.bf16.mxu0 %v1097
    %1210 = vmatpush1.bf16.msra.mxu0 %v1094
    %1211 = vmatprep.subr.bf16.mxu0 0
    %1212 = vmatpush2.bf16.msra.mxu0 0
    %1213 = vmatprep.subr.bf16.mxu0 0
    %1214 = vmatpush2.bf16.msra.mxu0 0
    %1215 = vmatprep.subr.bf16.mxu0 0
    %1216 = vmatpush2.bf16.msra.mxu0 0
    %1217 = vmatprep.subr.bf16.mxu0 0
    %1218 = vmatpush2.bf16.msra.mxu0 0
    %1219 = vmatprep.subr.bf16.mxu0 0
    %1220 = vmatpush2.bf16.msra.mxu0 0
    %1221 = vmatprep.subr.bf16.mxu0 0
    %1222 = vmatpush2.bf16.msra.mxu0 0
    %1223 = vmatprep.subr.bf16.mxu0 0
    %1224 = vmatpush2.bf16.msra.mxu0 0
    %1225 = vmatprep.subr.bf16.mxu0 0
    %1226 = vmatpush2.bf16.msra.mxu0 0
    %1227 = vmatprep.mubr.bf16.mxu0 0
    %1228 = vmatmul.mubr.bf16.gmra.mxu0 %v1193
    %v1229 = vpop.f32.mrf.mxu0
    %v1230 = vadd.f32 0.0, %v1229
    %v1231 = vpop.f32.mrf.mxu0
    %v1232 = vadd.f32 0.0, %v1231
    %v1233 = vpop.f32.mrf.mxu0
    %v1234 = vpop.f32.mrf.mxu0
    %1235 = vdwg.mxu0
    %1236 = vmatprep.subr.bf16.mxu0 0
    %1237 = vmatpush1.bf16.msra.mxu0 0
    %1238 = vmatprep.subr.bf16.mxu0 0
    %1239 = vmatpush1.bf16.msra.mxu0 0
    %1240 = vmatprep.subr.bf16.mxu0 0
    %1241 = vmatpush1.bf16.msra.mxu0 0
    %1242 = vmatprep.subr.bf16.mxu0 0
    %1243 = vmatpush1.bf16.msra.mxu0 0
    %1244 = vmatprep.subr.bf16.mxu0 0
    %1245 = vmatpush1.bf16.msra.mxu0 0
    %1246 = vmatprep.subr.bf16.mxu0 0
    %1247 = vmatpush1.bf16.msra.mxu0 0
    %1248 = vmatprep.subr.bf16.mxu0 0
    %1249 = vmatpush1.bf16.msra.mxu0 0
    %1250 = vmatprep.subr.bf16.mxu0 %v1103
    %1251 = vmatpush1.bf16.msra.mxu0 %v1100
    %1252 = vmatprep.subr.bf16.mxu0 0
    %1253 = vmatpush2.bf16.msra.mxu0 0
    %1254 = vmatprep.subr.bf16.mxu0 0
    %1255 = vmatpush2.bf16.msra.mxu0 0
    %1256 = vmatprep.subr.bf16.mxu0 0
    %1257 = vmatpush2.bf16.msra.mxu0 0
    %1258 = vmatprep.subr.bf16.mxu0 0
    %1259 = vmatpush2.bf16.msra.mxu0 0
    %1260 = vmatprep.subr.bf16.mxu0 0
    %1261 = vmatpush2.bf16.msra.mxu0 0
    %1262 = vmatprep.subr.bf16.mxu0 0
    %1263 = vmatpush2.bf16.msra.mxu0 0
    %1264 = vmatprep.subr.bf16.mxu0 0
    %1265 = vmatpush2.bf16.msra.mxu0 0
    %1266 = vmatprep.subr.bf16.mxu0 0
    %1267 = vmatpush2.bf16.msra.mxu0 0
    %1268 = vmatprep.mubr.bf16.mxu0 0
    %1269 = vmatmul.mubr.bf16.gmra.mxu0 %v1193
    %v1270 = vpop.f32.mrf.mxu0
    %v1271 = vadd.f32 0.0, %v1270
    %v1272 = vpop.f32.mrf.mxu0
    %v1273 = vadd.f32 0.0, %v1272
    %v1274 = vpop.f32.mrf.mxu0
    %v1275 = vpop.f32.mrf.mxu0
    %1276 = vdwg.mxu0
    %v1277 = vpack.c.bf16 %v1230, %v1230
    %v1278 = vpack.c.bf16 %v1232, %v1232
    %v1279 = vpack.c.bf16 %v1271, %v1271
    %v1280 = vpack.c.bf16 %v1273, %v1273
    %v1281 = vld [vmem:[#allocation9] sm:$0xff]
    %v1282 = vld [vmem:[#allocation9 + $0x8] sm:$0xff]
    %v1283 = vld [vmem:[#allocation9 + $0x10] sm:$0xff]
    %v1284 = vld [vmem:[#allocation9 + $0x18] sm:$0xff]
    %v1285 = vld [vmem:[#allocation9 + $0x20] sm:$0xff]
    %v1286 = vld [vmem:[#allocation9 + $0x28] sm:$0xff]
    %v1287 = vld [vmem:[#allocation9 + $0x30] sm:$0xff]
    %v1288 = vld [vmem:[#allocation9 + $0x38] sm:$0xff]
    %v1289 = vld [vmem:[#allocation9 + $0x40] sm:$0xff]
    %v1290 = vld [vmem:[#allocation9 + $0x48] sm:$0xff]
    %v1291 = vld [vmem:[#allocation9 + $0x50] sm:$0xff]
    %v1292 = vld [vmem:[#allocation9 + $0x58] sm:$0xff]
    %v1293 = vld [vmem:[#allocation9 + $0x60] sm:$0xff]
    %v1294 = vld [vmem:[#allocation9 + $0x68] sm:$0xff]
    %v1295 = vld [vmem:[#allocation9 + $0x70] sm:$0xff]
    %v1296 = vld [vmem:[#allocation9 + $0x78] sm:$0xff]
    %v1297 = vld [vmem:[#allocation9 + $0x80] sm:$0xff]
    %v1298 = vld [vmem:[#allocation9 + $0x88] sm:$0xff]
    %v1299 = vld [vmem:[#allocation9 + $0x90] sm:$0xff]
    %v1300 = vld [vmem:[#allocation9 + $0x98] sm:$0xff]
    %v1301 = vld [vmem:[#allocation9 + $0xa0] sm:$0xff]
    %v1302 = vld [vmem:[#allocation9 + $0xa8] sm:$0xff]
    %v1303 = vld [vmem:[#allocation9 + $0xb0] sm:$0xff]
    %v1304 = vld [vmem:[#allocation9 + $0xb8] sm:$0xff]
    %v1305 = vld [vmem:[#allocation9 + $0xc0] sm:$0xff]
    %v1306 = vld [vmem:[#allocation9 + $0xc8] sm:$0xff]
    %v1307 = vld [vmem:[#allocation9 + $0xd0] sm:$0xff]
    %v1308 = vld [vmem:[#allocation9 + $0xd8] sm:$0xff]
    %v1309 = vld [vmem:[#allocation9 + $0xe0] sm:$0xff]
    %v1310 = vld [vmem:[#allocation9 + $0xe8] sm:$0xff]
    %v1311 = vld [vmem:[#allocation9 + $0xf0] sm:$0xff]
    %v1312 = vld [vmem:[#allocation9 + $0xf8] sm:$0xff]
    %v1313 = vld [vmem:[#allocation9 + $0x100] sm:$0xff]
    %v1314 = vld [vmem:[#allocation9 + $0x108] sm:$0xff]
    %v1315 = vld [vmem:[#allocation9 + $0x110] sm:$0xff]
    %v1316 = vld [vmem:[#allocation9 + $0x118] sm:$0xff]
    %v1317 = vld [vmem:[#allocation9 + $0x120] sm:$0xff]
    %v1318 = vld [vmem:[#allocation9 + $0x128] sm:$0xff]
    %v1319 = vld [vmem:[#allocation9 + $0x130] sm:$0xff]
    %v1320 = vld [vmem:[#allocation9 + $0x138] sm:$0xff]
    %v1321 = vld [vmem:[#allocation9 + $0x140] sm:$0xff]
    %v1322 = vld [vmem:[#allocation9 + $0x148] sm:$0xff]
    %v1323 = vld [vmem:[#allocation9 + $0x150] sm:$0xff]
    %v1324 = vld [vmem:[#allocation9 + $0x158] sm:$0xff]
    %v1325 = vld [vmem:[#allocation9 + $0x160] sm:$0xff]
    %v1326 = vld [vmem:[#allocation9 + $0x168] sm:$0xff]
    %v1327 = vld [vmem:[#allocation9 + $0x170] sm:$0xff]
    %v1328 = vld [vmem:[#allocation9 + $0x178] sm:$0xff]
    %v1329 = vld [vmem:[#allocation9 + $0x180] sm:$0xff]
    %v1330 = vld [vmem:[#allocation9 + $0x188] sm:$0xff]
    %v1331 = vld [vmem:[#allocation9 + $0x190] sm:$0xff]
    %v1332 = vld [vmem:[#allocation9 + $0x198] sm:$0xff]
    %v1333 = vld [vmem:[#allocation9 + $0x1a0] sm:$0xff]
    %v1334 = vld [vmem:[#allocation9 + $0x1a8] sm:$0xff]
    %v1335 = vld [vmem:[#allocation9 + $0x1b0] sm:$0xff]
    %v1336 = vld [vmem:[#allocation9 + $0x1b8] sm:$0xff]
    %v1337 = vld [vmem:[#allocation9 + $0x1c0] sm:$0xff]
    %v1338 = vld [vmem:[#allocation9 + $0x1c8] sm:$0xff]
    %v1339 = vld [vmem:[#allocation9 + $0x1d0] sm:$0xff]
    %v1340 = vld [vmem:[#allocation9 + $0x1d8] sm:$0xff]
    %v1341 = vld [vmem:[#allocation9 + $0x1e0] sm:$0xff]
    %v1342 = vld [vmem:[#allocation9 + $0x1e8] sm:$0xff]
    %v1343 = vld [vmem:[#allocation9 + $0x1f0] sm:$0xff]
    %v1344 = vld [vmem:[#allocation9 + $0x1f8] sm:$0xff]
    %v1345 = vld [vmem:[#allocation9 + $0x200] sm:$0xff]
    %v1346 = vld [vmem:[#allocation9 + $0x208] sm:$0xff]
    %v1347 = vld [vmem:[#allocation9 + $0x210] sm:$0xff]
    %v1348 = vld [vmem:[#allocation9 + $0x218] sm:$0xff]
    %v1349 = vld [vmem:[#allocation9 + $0x220] sm:$0xff]
    %v1350 = vld [vmem:[#allocation9 + $0x228] sm:$0xff]
    %v1351 = vld [vmem:[#allocation9 + $0x230] sm:$0xff]
    %v1352 = vld [vmem:[#allocation9 + $0x238] sm:$0xff]
    %v1353 = vld [vmem:[#allocation9 + $0x240] sm:$0xff]
    %v1354 = vld [vmem:[#allocation9 + $0x248] sm:$0xff]
    %v1355 = vld [vmem:[#allocation9 + $0x250] sm:$0xff]
    %v1356 = vld [vmem:[#allocation9 + $0x258] sm:$0xff]
    %v1357 = vld [vmem:[#allocation9 + $0x260] sm:$0xff]
    %v1358 = vld [vmem:[#allocation9 + $0x268] sm:$0xff]
    %v1359 = vld [vmem:[#allocation9 + $0x270] sm:$0xff]
    %v1360 = vld [vmem:[#allocation9 + $0x278] sm:$0xff]
    %v1361 = vld [vmem:[#allocation9 + $0x280] sm:$0xff]
    %v1362 = vld [vmem:[#allocation9 + $0x288] sm:$0xff]
    %v1363 = vld [vmem:[#allocation9 + $0x290] sm:$0xff]
    %v1364 = vld [vmem:[#allocation9 + $0x298] sm:$0xff]
    %v1365 = vld [vmem:[#allocation9 + $0x2a0] sm:$0xff]
    %v1366 = vld [vmem:[#allocation9 + $0x2a8] sm:$0xff]
    %v1367 = vld [vmem:[#allocation9 + $0x2b0] sm:$0xff]
    %v1368 = vld [vmem:[#allocation9 + $0x2b8] sm:$0xff]
    %v1369 = vld [vmem:[#allocation9 + $0x2c0] sm:$0xff]
    %v1370 = vld [vmem:[#allocation9 + $0x2c8] sm:$0xff]
    %v1371 = vld [vmem:[#allocation9 + $0x2d0] sm:$0xff]
    %v1372 = vld [vmem:[#allocation9 + $0x2d8] sm:$0xff]
    %v1373 = vld [vmem:[#allocation9 + $0x2e0] sm:$0xff]
    %v1374 = vld [vmem:[#allocation9 + $0x2e8] sm:$0xff]
    %v1375 = vld [vmem:[#allocation9 + $0x2f0] sm:$0xff]
    %v1376 = vld [vmem:[#allocation9 + $0x2f8] sm:$0xff]
    %v1377 = vld [vmem:[#allocation9 + $0x300] sm:$0xff]
    %v1378 = vld [vmem:[#allocation9 + $0x308] sm:$0xff]
    %v1379 = vld [vmem:[#allocation9 + $0x310] sm:$0xff]
    %v1380 = vld [vmem:[#allocation9 + $0x318] sm:$0xff]
    %v1381 = vld [vmem:[#allocation9 + $0x320] sm:$0xff]
    %v1382 = vld [vmem:[#allocation9 + $0x328] sm:$0xff]
    %v1383 = vld [vmem:[#allocation9 + $0x330] sm:$0xff]
    %v1384 = vld [vmem:[#allocation9 + $0x338] sm:$0xff]
    %v1385 = vld [vmem:[#allocation9 + $0x340] sm:$0xff]
    %v1386 = vld [vmem:[#allocation9 + $0x348] sm:$0xff]
    %v1387 = vld [vmem:[#allocation9 + $0x350] sm:$0xff]
    %v1388 = vld [vmem:[#allocation9 + $0x358] sm:$0xff]
    %v1389 = vld [vmem:[#allocation9 + $0x360] sm:$0xff]
    %v1390 = vld [vmem:[#allocation9 + $0x368] sm:$0xff]
    %v1391 = vld [vmem:[#allocation9 + $0x370] sm:$0xff]
    %v1392 = vld [vmem:[#allocation9 + $0x378] sm:$0xff]
    %v1393 = vld [vmem:[#allocation9 + $0x380] sm:$0xff]
    %v1394 = vld [vmem:[#allocation9 + $0x388] sm:$0xff]
    %v1395 = vld [vmem:[#allocation9 + $0x390] sm:$0xff]
    %v1396 = vld [vmem:[#allocation9 + $0x398] sm:$0xff]
    %v1397 = vld [vmem:[#allocation9 + $0x3a0] sm:$0xff]
    %v1398 = vld [vmem:[#allocation9 + $0x3a8] sm:$0xff]
    %v1399 = vld [vmem:[#allocation9 + $0x3b0] sm:$0xff]
    %v1400 = vld [vmem:[#allocation9 + $0x3b8] sm:$0xff]
    %v1401 = vld [vmem:[#allocation9 + $0x3c0] sm:$0xff]
    %v1402 = vld [vmem:[#allocation9 + $0x3c8] sm:$0xff]
    %v1403 = vld [vmem:[#allocation9 + $0x3d0] sm:$0xff]
    %v1404 = vld [vmem:[#allocation9 + $0x3d8] sm:$0xff]
    %v1405 = vld [vmem:[#allocation9 + $0x3e0] sm:$0xff]
    %v1406 = vld [vmem:[#allocation9 + $0x3e8] sm:$0xff]
    %v1407 = vld [vmem:[#allocation9 + $0x3f0] sm:$0xff]
    %v1408 = vld [vmem:[#allocation9 + $0x3f8] sm:$0xff]
    %v1409 = vld [vmem:[#allocation9 + $0x400] sm:$0xff]
    %v1410 = vld [vmem:[#allocation9 + $0x408] sm:$0xff]
    %v1411 = vld [vmem:[#allocation9 + $0x410] sm:$0xff]
    %v1412 = vld [vmem:[#allocation9 + $0x418] sm:$0xff]
    %v1413 = vld [vmem:[#allocation9 + $0x420] sm:$0xff]
    %v1414 = vld [vmem:[#allocation9 + $0x428] sm:$0xff]
    %v1415 = vld [vmem:[#allocation9 + $0x430] sm:$0xff]
    %v1416 = vld [vmem:[#allocation9 + $0x438] sm:$0xff]
    %v1417 = vld [vmem:[#allocation9 + $0x440] sm:$0xff]
    %v1418 = vld [vmem:[#allocation9 + $0x448] sm:$0xff]
    %v1419 = vld [vmem:[#allocation9 + $0x450] sm:$0xff]
    %v1420 = vld [vmem:[#allocation9 + $0x458] sm:$0xff]
    %v1421 = vld [vmem:[#allocation9 + $0x460] sm:$0xff]
    %v1422 = vld [vmem:[#allocation9 + $0x468] sm:$0xff]
    %v1423 = vld [vmem:[#allocation9 + $0x470] sm:$0xff]
    %v1424 = vld [vmem:[#allocation9 + $0x478] sm:$0xff]
    %v1425 = vld [vmem:[#allocation9 + $0x480] sm:$0xff]
    %v1426 = vld [vmem:[#allocation9 + $0x488] sm:$0xff]
    %v1427 = vld [vmem:[#allocation9 + $0x490] sm:$0xff]
    %v1428 = vld [vmem:[#allocation9 + $0x498] sm:$0xff]
    %v1429 = vld [vmem:[#allocation9 + $0x4a0] sm:$0xff]
    %v1430 = vld [vmem:[#allocation9 + $0x4a8] sm:$0xff]
    %v1431 = vld [vmem:[#allocation9 + $0x4b0] sm:$0xff]
    %v1432 = vld [vmem:[#allocation9 + $0x4b8] sm:$0xff]
    %v1433 = vld [vmem:[#allocation9 + $0x4c0] sm:$0xff]
    %v1434 = vld [vmem:[#allocation9 + $0x4c8] sm:$0xff]
    %v1435 = vld [vmem:[#allocation9 + $0x4d0] sm:$0xff]
    %v1436 = vld [vmem:[#allocation9 + $0x4d8] sm:$0xff]
    %v1437 = vld [vmem:[#allocation9 + $0x4e0] sm:$0xff]
    %v1438 = vld [vmem:[#allocation9 + $0x4e8] sm:$0xff]
    %v1439 = vld [vmem:[#allocation9 + $0x4f0] sm:$0xff]
    %v1440 = vld [vmem:[#allocation9 + $0x4f8] sm:$0xff]
    %v1441 = vld [vmem:[#allocation9 + $0x500] sm:$0xff]
    %v1442 = vld [vmem:[#allocation9 + $0x508] sm:$0xff]
    %v1443 = vld [vmem:[#allocation9 + $0x510] sm:$0xff]
    %v1444 = vld [vmem:[#allocation9 + $0x518] sm:$0xff]
    %v1445 = vld [vmem:[#allocation9 + $0x520] sm:$0xff]
    %v1446 = vld [vmem:[#allocation9 + $0x528] sm:$0xff]
    %v1447 = vld [vmem:[#allocation9 + $0x530] sm:$0xff]
    %v1448 = vld [vmem:[#allocation9 + $0x538] sm:$0xff]
    %v1449 = vld [vmem:[#allocation9 + $0x540] sm:$0xff]
    %v1450 = vld [vmem:[#allocation9 + $0x548] sm:$0xff]
    %v1451 = vld [vmem:[#allocation9 + $0x550] sm:$0xff]
    %v1452 = vld [vmem:[#allocation9 + $0x558] sm:$0xff]
    %v1453 = vld [vmem:[#allocation9 + $0x560] sm:$0xff]
    %v1454 = vld [vmem:[#allocation9 + $0x568] sm:$0xff]
    %v1455 = vld [vmem:[#allocation9 + $0x570] sm:$0xff]
    %v1456 = vld [vmem:[#allocation9 + $0x578] sm:$0xff]
    %v1457 = vld [vmem:[#allocation9 + $0x580] sm:$0xff]
    %v1458 = vld [vmem:[#allocation9 + $0x588] sm:$0xff]
    %v1459 = vld [vmem:[#allocation9 + $0x590] sm:$0xff]
    %v1460 = vld [vmem:[#allocation9 + $0x598] sm:$0xff]
    %v1461 = vld [vmem:[#allocation9 + $0x5a0] sm:$0xff]
    %v1462 = vld [vmem:[#allocation9 + $0x5a8] sm:$0xff]
    %v1463 = vld [vmem:[#allocation9 + $0x5b0] sm:$0xff]
    %v1464 = vld [vmem:[#allocation9 + $0x5b8] sm:$0xff]
    %v1465 = vld [vmem:[#allocation9 + $0x5c0] sm:$0xff]
    %v1466 = vld [vmem:[#allocation9 + $0x5c8] sm:$0xff]
    %v1467 = vld [vmem:[#allocation9 + $0x5d0] sm:$0xff]
    %v1468 = vld [vmem:[#allocation9 + $0x5d8] sm:$0xff]
    %v1469 = vld [vmem:[#allocation9 + $0x5e0] sm:$0xff]
    %v1470 = vld [vmem:[#allocation9 + $0x5e8] sm:$0xff]
    %v1471 = vld [vmem:[#allocation9 + $0x5f0] sm:$0xff]
    %v1472 = vld [vmem:[#allocation9 + $0x5f8] sm:$0xff]
    %v1473 = vld [vmem:[#allocation9 + $0x600] sm:$0xff]
    %v1474 = vld [vmem:[#allocation9 + $0x608] sm:$0xff]
    %v1475 = vld [vmem:[#allocation9 + $0x610] sm:$0xff]
    %v1476 = vld [vmem:[#allocation9 + $0x618] sm:$0xff]
    %v1477 = vld [vmem:[#allocation9 + $0x620] sm:$0xff]
    %v1478 = vld [vmem:[#allocation9 + $0x628] sm:$0xff]
    %v1479 = vld [vmem:[#allocation9 + $0x630] sm:$0xff]
    %v1480 = vld [vmem:[#allocation9 + $0x638] sm:$0xff]
    %v1481 = vld [vmem:[#allocation9 + $0x640] sm:$0xff]
    %v1482 = vld [vmem:[#allocation9 + $0x648] sm:$0xff]
    %v1483 = vld [vmem:[#allocation9 + $0x650] sm:$0xff]
    %v1484 = vld [vmem:[#allocation9 + $0x658] sm:$0xff]
    %v1485 = vld [vmem:[#allocation9 + $0x660] sm:$0xff]
    %v1486 = vld [vmem:[#allocation9 + $0x668] sm:$0xff]
    %v1487 = vld [vmem:[#allocation9 + $0x670] sm:$0xff]
    %v1488 = vld [vmem:[#allocation9 + $0x678] sm:$0xff]
    %v1489 = vld [vmem:[#allocation9 + $0x680] sm:$0xff]
    %v1490 = vld [vmem:[#allocation9 + $0x688] sm:$0xff]
    %v1491 = vld [vmem:[#allocation9 + $0x690] sm:$0xff]
    %v1492 = vld [vmem:[#allocation9 + $0x698] sm:$0xff]
    %v1493 = vld [vmem:[#allocation9 + $0x6a0] sm:$0xff]
    %v1494 = vld [vmem:[#allocation9 + $0x6a8] sm:$0xff]
    %v1495 = vld [vmem:[#allocation9 + $0x6b0] sm:$0xff]
    %v1496 = vld [vmem:[#allocation9 + $0x6b8] sm:$0xff]
    %v1497 = vld [vmem:[#allocation9 + $0x6c0] sm:$0xff]
    %v1498 = vld [vmem:[#allocation9 + $0x6c8] sm:$0xff]
    %v1499 = vld [vmem:[#allocation9 + $0x6d0] sm:$0xff]
    %v1500 = vld [vmem:[#allocation9 + $0x6d8] sm:$0xff]
    %v1501 = vld [vmem:[#allocation9 + $0x6e0] sm:$0xff]
    %v1502 = vld [vmem:[#allocation9 + $0x6e8] sm:$0xff]
    %v1503 = vld [vmem:[#allocation9 + $0x6f0] sm:$0xff]
    %v1504 = vld [vmem:[#allocation9 + $0x6f8] sm:$0xff]
    %v1505 = vld [vmem:[#allocation9 + $0x700] sm:$0xff]
    %v1506 = vld [vmem:[#allocation9 + $0x708] sm:$0xff]
    %v1507 = vld [vmem:[#allocation9 + $0x710] sm:$0xff]
    %v1508 = vld [vmem:[#allocation9 + $0x718] sm:$0xff]
    %v1509 = vld [vmem:[#allocation9 + $0x720] sm:$0xff]
    %v1510 = vld [vmem:[#allocation9 + $0x728] sm:$0xff]
    %v1511 = vld [vmem:[#allocation9 + $0x730] sm:$0xff]
    %v1512 = vld [vmem:[#allocation9 + $0x738] sm:$0xff]
    %v1513 = vld [vmem:[#allocation9 + $0x740] sm:$0xff]
    %v1514 = vld [vmem:[#allocation9 + $0x748] sm:$0xff]
    %v1515 = vld [vmem:[#allocation9 + $0x750] sm:$0xff]
    %v1516 = vld [vmem:[#allocation9 + $0x758] sm:$0xff]
    %v1517 = vld [vmem:[#allocation9 + $0x760] sm:$0xff]
    %v1518 = vld [vmem:[#allocation9 + $0x768] sm:$0xff]
    %v1519 = vld [vmem:[#allocation9 + $0x770] sm:$0xff]
    %v1520 = vld [vmem:[#allocation9 + $0x778] sm:$0xff]
    %v1521 = vld [vmem:[#allocation9 + $0x780] sm:$0xff]
    %v1522 = vld [vmem:[#allocation9 + $0x788] sm:$0xff]
    %v1523 = vld [vmem:[#allocation9 + $0x790] sm:$0xff]
    %v1524 = vld [vmem:[#allocation9 + $0x798] sm:$0xff]
    %v1525 = vld [vmem:[#allocation9 + $0x7a0] sm:$0xff]
    %v1526 = vld [vmem:[#allocation9 + $0x7a8] sm:$0xff]
    %v1527 = vld [vmem:[#allocation9 + $0x7b0] sm:$0xff]
    %v1528 = vld [vmem:[#allocation9 + $0x7b8] sm:$0xff]
    %v1529 = vld [vmem:[#allocation9 + $0x7c0] sm:$0xff]
    %v1530 = vld [vmem:[#allocation9 + $0x7c8] sm:$0xff]
    %v1531 = vld [vmem:[#allocation9 + $0x7d0] sm:$0xff]
    %v1532 = vld [vmem:[#allocation9 + $0x7d8] sm:$0xff]
    %v1533 = vld [vmem:[#allocation9 + $0x7e0] sm:$0xff]
    %v1534 = vld [vmem:[#allocation9 + $0x7e8] sm:$0xff]
    %v1535 = vld [vmem:[#allocation9 + $0x7f0] sm:$0xff]
    %v1536 = vld [vmem:[#allocation9 + $0x7f8] sm:$0xff]
    %v1537 = vld [vmem:[#allocation9 + $0x800] sm:$0xff]
    %v1538 = vld [vmem:[#allocation9 + $0x808] sm:$0xff]
    %v1539 = vld [vmem:[#allocation9 + $0x810] sm:$0xff]
    %v1540 = vld [vmem:[#allocation9 + $0x818] sm:$0xff]
    %v1541 = vld [vmem:[#allocation9 + $0x820] sm:$0xff]
    %v1542 = vld [vmem:[#allocation9 + $0x828] sm:$0xff]
    %v1543 = vld [vmem:[#allocation9 + $0x830] sm:$0xff]
    %v1544 = vld [vmem:[#allocation9 + $0x838] sm:$0xff]
    %v1545 = vld [vmem:[#allocation9 + $0x840] sm:$0xff]
    %v1546 = vld [vmem:[#allocation9 + $0x848] sm:$0xff]
    %v1547 = vld [vmem:[#allocation9 + $0x850] sm:$0xff]
    %v1548 = vld [vmem:[#allocation9 + $0x858] sm:$0xff]
    %v1549 = vld [vmem:[#allocation9 + $0x860] sm:$0xff]
    %v1550 = vld [vmem:[#allocation9 + $0x868] sm:$0xff]
    %v1551 = vld [vmem:[#allocation9 + $0x870] sm:$0xff]
    %v1552 = vld [vmem:[#allocation9 + $0x878] sm:$0xff]
    %v1553 = vld [vmem:[#allocation9 + $0x880] sm:$0xff]
    %v1554 = vld [vmem:[#allocation9 + $0x888] sm:$0xff]
    %v1555 = vld [vmem:[#allocation9 + $0x890] sm:$0xff]
    %v1556 = vld [vmem:[#allocation9 + $0x898] sm:$0xff]
    %v1557 = vld [vmem:[#allocation9 + $0x8a0] sm:$0xff]
    %v1558 = vld [vmem:[#allocation9 + $0x8a8] sm:$0xff]
    %v1559 = vld [vmem:[#allocation9 + $0x8b0] sm:$0xff]
    %v1560 = vld [vmem:[#allocation9 + $0x8b8] sm:$0xff]
    %v1561 = vld [vmem:[#allocation9 + $0x8c0] sm:$0xff]
    %v1562 = vld [vmem:[#allocation9 + $0x8c8] sm:$0xff]
    %v1563 = vld [vmem:[#allocation9 + $0x8d0] sm:$0xff]
    %v1564 = vld [vmem:[#allocation9 + $0x8d8] sm:$0xff]
    %v1565 = vld [vmem:[#allocation9 + $0x8e0] sm:$0xff]
    %v1566 = vld [vmem:[#allocation9 + $0x8e8] sm:$0xff]
    %v1567 = vld [vmem:[#allocation9 + $0x8f0] sm:$0xff]
    %v1568 = vld [vmem:[#allocation9 + $0x8f8] sm:$0xff]
    %v1569 = vld [vmem:[#allocation9 + $0x900] sm:$0xff]
    %v1570 = vld [vmem:[#allocation9 + $0x908] sm:$0xff]
    %v1571 = vld [vmem:[#allocation9 + $0x910] sm:$0xff]
    %v1572 = vld [vmem:[#allocation9 + $0x918] sm:$0xff]
    %v1573 = vld [vmem:[#allocation9 + $0x920] sm:$0xff]
    %v1574 = vld [vmem:[#allocation9 + $0x928] sm:$0xff]
    %v1575 = vld [vmem:[#allocation9 + $0x930] sm:$0xff]
    %v1576 = vld [vmem:[#allocation9 + $0x938] sm:$0xff]
    %v1577 = vld [vmem:[#allocation9 + $0x940] sm:$0xff]
    %v1578 = vld [vmem:[#allocation9 + $0x948] sm:$0xff]
    %v1579 = vld [vmem:[#allocation9 + $0x950] sm:$0xff]
    %v1580 = vld [vmem:[#allocation9 + $0x958] sm:$0xff]
    %v1581 = vld [vmem:[#allocation9 + $0x960] sm:$0xff]
    %v1582 = vld [vmem:[#allocation9 + $0x968] sm:$0xff]
    %v1583 = vld [vmem:[#allocation9 + $0x970] sm:$0xff]
    %v1584 = vld [vmem:[#allocation9 + $0x978] sm:$0xff]
    %v1585 = vld [vmem:[#allocation9 + $0x980] sm:$0xff]
    %v1586 = vld [vmem:[#allocation9 + $0x988] sm:$0xff]
    %v1587 = vld [vmem:[#allocation9 + $0x990] sm:$0xff]
    %v1588 = vld [vmem:[#allocation9 + $0x998] sm:$0xff]
    %v1589 = vld [vmem:[#allocation9 + $0x9a0] sm:$0xff]
    %v1590 = vld [vmem:[#allocation9 + $0x9a8] sm:$0xff]
    %v1591 = vld [vmem:[#allocation9 + $0x9b0] sm:$0xff]
    %v1592 = vld [vmem:[#allocation9 + $0x9b8] sm:$0xff]
    %v1593 = vld [vmem:[#allocation9 + $0x9c0] sm:$0xff]
    %v1594 = vld [vmem:[#allocation9 + $0x9c8] sm:$0xff]
    %v1595 = vld [vmem:[#allocation9 + $0x9d0] sm:$0xff]
    %v1596 = vld [vmem:[#allocation9 + $0x9d8] sm:$0xff]
    %v1597 = vld [vmem:[#allocation9 + $0x9e0] sm:$0xff]
    %v1598 = vld [vmem:[#allocation9 + $0x9e8] sm:$0xff]
    %v1599 = vld [vmem:[#allocation9 + $0x9f0] sm:$0xff]
    %v1600 = vld [vmem:[#allocation9 + $0x9f8] sm:$0xff]
    %v1601 = vld [vmem:[#allocation9 + $0xa00] sm:$0xff]
    %v1602 = vld [vmem:[#allocation9 + $0xa08] sm:$0xff]
    %v1603 = vld [vmem:[#allocation9 + $0xa10] sm:$0xff]
    %v1604 = vld [vmem:[#allocation9 + $0xa18] sm:$0xff]
    %v1605 = vld [vmem:[#allocation9 + $0xa20] sm:$0xff]
    %v1606 = vld [vmem:[#allocation9 + $0xa28] sm:$0xff]
    %v1607 = vld [vmem:[#allocation9 + $0xa30] sm:$0xff]
    %v1608 = vld [vmem:[#allocation9 + $0xa38] sm:$0xff]
    %v1609 = vld [vmem:[#allocation9 + $0xa40] sm:$0xff]
    %v1610 = vld [vmem:[#allocation9 + $0xa48] sm:$0xff]
    %v1611 = vld [vmem:[#allocation9 + $0xa50] sm:$0xff]
    %v1612 = vld [vmem:[#allocation9 + $0xa58] sm:$0xff]
    %v1613 = vld [vmem:[#allocation9 + $0xa60] sm:$0xff]
    %v1614 = vld [vmem:[#allocation9 + $0xa68] sm:$0xff]
    %v1615 = vld [vmem:[#allocation9 + $0xa70] sm:$0xff]
    %v1616 = vld [vmem:[#allocation9 + $0xa78] sm:$0xff]
    %v1617 = vld [vmem:[#allocation9 + $0xa80] sm:$0xff]
    %v1618 = vld [vmem:[#allocation9 + $0xa88] sm:$0xff]
    %v1619 = vld [vmem:[#allocation9 + $0xa90] sm:$0xff]
    %v1620 = vld [vmem:[#allocation9 + $0xa98] sm:$0xff]
    %v1621 = vld [vmem:[#allocation9 + $0xaa0] sm:$0xff]
    %v1622 = vld [vmem:[#allocation9 + $0xaa8] sm:$0xff]
    %v1623 = vld [vmem:[#allocation9 + $0xab0] sm:$0xff]
    %v1624 = vld [vmem:[#allocation9 + $0xab8] sm:$0xff]
    %v1625 = vld [vmem:[#allocation9 + $0xac0] sm:$0xff]
    %v1626 = vld [vmem:[#allocation9 + $0xac8] sm:$0xff]
    %v1627 = vld [vmem:[#allocation9 + $0xad0] sm:$0xff]
    %v1628 = vld [vmem:[#allocation9 + $0xad8] sm:$0xff]
    %v1629 = vld [vmem:[#allocation9 + $0xae0] sm:$0xff]
    %v1630 = vld [vmem:[#allocation9 + $0xae8] sm:$0xff]
    %v1631 = vld [vmem:[#allocation9 + $0xaf0] sm:$0xff]
    %v1632 = vld [vmem:[#allocation9 + $0xaf8] sm:$0xff]
    %v1633 = vld [vmem:[#allocation9 + $0xb00] sm:$0xff]
    %v1634 = vld [vmem:[#allocation9 + $0xb08] sm:$0xff]
    %v1635 = vld [vmem:[#allocation9 + $0xb10] sm:$0xff]
    %v1636 = vld [vmem:[#allocation9 + $0xb18] sm:$0xff]
    %v1637 = vld [vmem:[#allocation9 + $0xb20] sm:$0xff]
    %v1638 = vld [vmem:[#allocation9 + $0xb28] sm:$0xff]
    %v1639 = vld [vmem:[#allocation9 + $0xb30] sm:$0xff]
    %v1640 = vld [vmem:[#allocation9 + $0xb38] sm:$0xff]
    %v1641 = vld [vmem:[#allocation9 + $0xb40] sm:$0xff]
    %v1642 = vld [vmem:[#allocation9 + $0xb48] sm:$0xff]
    %v1643 = vld [vmem:[#allocation9 + $0xb50] sm:$0xff]
    %v1644 = vld [vmem:[#allocation9 + $0xb58] sm:$0xff]
    %v1645 = vld [vmem:[#allocation9 + $0xb60] sm:$0xff]
    %v1646 = vld [vmem:[#allocation9 + $0xb68] sm:$0xff]
    %v1647 = vld [vmem:[#allocation9 + $0xb70] sm:$0xff]
    %v1648 = vld [vmem:[#allocation9 + $0xb78] sm:$0xff]
    %v1649 = vld [vmem:[#allocation9 + $0xb80] sm:$0xff]
    %v1650 = vld [vmem:[#allocation9 + $0xb88] sm:$0xff]
    %v1651 = vld [vmem:[#allocation9 + $0xb90] sm:$0xff]
    %v1652 = vld [vmem:[#allocation9 + $0xb98] sm:$0xff]
    %v1653 = vld [vmem:[#allocation9 + $0xba0] sm:$0xff]
    %v1654 = vld [vmem:[#allocation9 + $0xba8] sm:$0xff]
    %v1655 = vld [vmem:[#allocation9 + $0xbb0] sm:$0xff]
    %v1656 = vld [vmem:[#allocation9 + $0xbb8] sm:$0xff]
    %v1657 = vld [vmem:[#allocation9 + $0xbc0] sm:$0xff]
    %v1658 = vld [vmem:[#allocation9 + $0xbc8] sm:$0xff]
    %v1659 = vld [vmem:[#allocation9 + $0xbd0] sm:$0xff]
    %v1660 = vld [vmem:[#allocation9 + $0xbd8] sm:$0xff]
    %v1661 = vld [vmem:[#allocation9 + $0xbe0] sm:$0xff]
    %v1662 = vld [vmem:[#allocation9 + $0xbe8] sm:$0xff]
    %v1663 = vld [vmem:[#allocation9 + $0xbf0] sm:$0xff]
    %v1664 = vld [vmem:[#allocation9 + $0xbf8] sm:$0xff]
    %v1665 = vld [vmem:[#allocation10] sm:$0xf]
    %v1667 = vlaneseq
    %v1668 = vshrl.u32 %v1667, 7
    %v1669 = vsub.s32 0, %v1668
    %v1670 = vrot.slane %v1665, %v1669
    %v1671 = vlaneseq
    %v1672 = vshrl.u32 %v1671, 7
    %v1673 = vsub.s32 1, %v1672
    %v1674 = vrot.slane %v1665, %v1673
    %v1675 = vlaneseq
    %v1676 = vshrl.u32 %v1675, 7
    %v1677 = vsub.s32 2, %v1676
    %v1678 = vrot.slane %v1665, %v1677
    %v1679 = vlaneseq
    %v1680 = vshrl.u32 %v1679, 7
    %v1681 = vsub.s32 3, %v1680
    %v1682 = vrot.slane %v1665, %v1681
    %v2071 = vunpack.c.l.b16 %v1281
    %v2072 = vunpack.c.h.b16 %v1281
    %v2073 = vunpack.c.l.b16 %v1282
    %v2074 = vunpack.c.h.b16 %v1282
    %v2075 = vunpack.c.l.b16 %v1283
    %v2076 = vunpack.c.h.b16 %v1283
    %v2077 = vunpack.c.l.b16 %v1284
    %v2078 = vunpack.c.h.b16 %v1284
    %v2079 = vunpack.c.l.b16 %v1285
    %v2080 = vunpack.c.h.b16 %v1285
    %v2081 = vunpack.c.l.b16 %v1286
    %v2082 = vunpack.c.h.b16 %v1286
    %v2083 = vunpack.c.l.b16 %v1287
    %v2084 = vunpack.c.h.b16 %v1287
    %v2085 = vunpack.c.l.b16 %v1288
    %v2086 = vunpack.c.h.b16 %v1288
    %v2087 = vunpack.c.l.b16 %v1289
    %v2088 = vunpack.c.h.b16 %v1289
    %v2089 = vunpack.c.l.b16 %v1290
    %v2090 = vunpack.c.h.b16 %v1290
    %v2091 = vunpack.c.l.b16 %v1291
    %v2092 = vunpack.c.h.b16 %v1291
    %v2093 = vunpack.c.l.b16 %v1292
    %v2094 = vunpack.c.h.b16 %v1292
    %v2095 = vunpack.c.l.b16 %v1293
    %v2096 = vunpack.c.h.b16 %v1293
    %v2097 = vunpack.c.l.b16 %v1294
    %v2098 = vunpack.c.h.b16 %v1294
    %v2099 = vunpack.c.l.b16 %v1295
    %v2100 = vunpack.c.h.b16 %v1295
    %v2101 = vunpack.c.l.b16 %v1296
    %v2102 = vunpack.c.h.b16 %v1296
    %v2103 = vunpack.c.l.b16 %v1297
    %v2104 = vunpack.c.h.b16 %v1297
    %v2105 = vunpack.c.l.b16 %v1298
    %v2106 = vunpack.c.h.b16 %v1298
    %v2107 = vunpack.c.l.b16 %v1299
    %v2108 = vunpack.c.h.b16 %v1299
    %v2109 = vunpack.c.l.b16 %v1300
    %v2110 = vunpack.c.h.b16 %v1300
    %v2111 = vunpack.c.l.b16 %v1301
    %v2112 = vunpack.c.h.b16 %v1301
    %v2113 = vunpack.c.l.b16 %v1302
    %v2114 = vunpack.c.h.b16 %v1302
    %v2115 = vunpack.c.l.b16 %v1303
    %v2116 = vunpack.c.h.b16 %v1303
    %v2117 = vunpack.c.l.b16 %v1304
    %v2118 = vunpack.c.h.b16 %v1304
    %v2119 = vunpack.c.l.b16 %v1305
    %v2120 = vunpack.c.h.b16 %v1305
    %v2121 = vunpack.c.l.b16 %v1306
    %v2122 = vunpack.c.h.b16 %v1306
    %v2123 = vunpack.c.l.b16 %v1307
    %v2124 = vunpack.c.h.b16 %v1307
    %v2125 = vunpack.c.l.b16 %v1308
    %v2126 = vunpack.c.h.b16 %v1308
    %v2127 = vunpack.c.l.b16 %v1309
    %v2128 = vunpack.c.h.b16 %v1309
    %v2129 = vunpack.c.l.b16 %v1310
    %v2130 = vunpack.c.h.b16 %v1310
    %v2131 = vunpack.c.l.b16 %v1311
    %v2132 = vunpack.c.h.b16 %v1311
    %v2133 = vunpack.c.l.b16 %v1312
    %v2134 = vunpack.c.h.b16 %v1312
    %v2135 = vunpack.c.l.b16 %v1313
    %v2136 = vunpack.c.h.b16 %v1313
    %v2137 = vunpack.c.l.b16 %v1314
    %v2138 = vunpack.c.h.b16 %v1314
    %v2139 = vunpack.c.l.b16 %v1315
    %v2140 = vunpack.c.h.b16 %v1315
    %v2141 = vunpack.c.l.b16 %v1316
    %v2142 = vunpack.c.h.b16 %v1316
    %v2143 = vunpack.c.l.b16 %v1317
    %v2144 = vunpack.c.h.b16 %v1317
    %v2145 = vunpack.c.l.b16 %v1318
    %v2146 = vunpack.c.h.b16 %v1318
    %v2147 = vunpack.c.l.b16 %v1319
    %v2148 = vunpack.c.h.b16 %v1319
    %v2149 = vunpack.c.l.b16 %v1320
    %v2150 = vunpack.c.h.b16 %v1320
    %v2151 = vunpack.c.l.b16 %v1321
    %v2152 = vunpack.c.h.b16 %v1321
    %v2153 = vunpack.c.l.b16 %v1322
    %v2154 = vunpack.c.h.b16 %v1322
    %v2155 = vunpack.c.l.b16 %v1323
    %v2156 = vunpack.c.h.b16 %v1323
    %v2157 = vunpack.c.l.b16 %v1324
    %v2158 = vunpack.c.h.b16 %v1324
    %v2159 = vunpack.c.l.b16 %v1325
    %v2160 = vunpack.c.h.b16 %v1325
    %v2161 = vunpack.c.l.b16 %v1326
    %v2162 = vunpack.c.h.b16 %v1326
    %v2163 = vunpack.c.l.b16 %v1327
    %v2164 = vunpack.c.h.b16 %v1327
    %v2165 = vunpack.c.l.b16 %v1328
    %v2166 = vunpack.c.h.b16 %v1328
    %v2167 = vunpack.c.l.b16 %v1329
    %v2168 = vunpack.c.h.b16 %v1329
    %v2169 = vunpack.c.l.b16 %v1330
    %v2170 = vunpack.c.h.b16 %v1330
    %v2171 = vunpack.c.l.b16 %v1331
    %v2172 = vunpack.c.h.b16 %v1331
    %v2173 = vunpack.c.l.b16 %v1332
    %v2174 = vunpack.c.h.b16 %v1332
    %v2175 = vunpack.c.l.b16 %v1333
    %v2176 = vunpack.c.h.b16 %v1333
    %v2177 = vunpack.c.l.b16 %v1334
    %v2178 = vunpack.c.h.b16 %v1334
    %v2179 = vunpack.c.l.b16 %v1335
    %v2180 = vunpack.c.h.b16 %v1335
    %v2181 = vunpack.c.l.b16 %v1336
    %v2182 = vunpack.c.h.b16 %v1336
    %v2183 = vunpack.c.l.b16 %v1337
    %v2184 = vunpack.c.h.b16 %v1337
    %v2185 = vunpack.c.l.b16 %v1338
    %v2186 = vunpack.c.h.b16 %v1338
    %v2187 = vunpack.c.l.b16 %v1339
    %v2188 = vunpack.c.h.b16 %v1339
    %v2189 = vunpack.c.l.b16 %v1340
    %v2190 = vunpack.c.h.b16 %v1340
    %v2191 = vunpack.c.l.b16 %v1341
    %v2192 = vunpack.c.h.b16 %v1341
    %v2193 = vunpack.c.l.b16 %v1342
    %v2194 = vunpack.c.h.b16 %v1342
    %v2195 = vunpack.c.l.b16 %v1343
    %v2196 = vunpack.c.h.b16 %v1343
    %v2197 = vunpack.c.l.b16 %v1344
    %v2198 = vunpack.c.h.b16 %v1344
    %v2199 = vunpack.c.l.b16 %v1345
    %v2200 = vunpack.c.h.b16 %v1345
    %v2201 = vunpack.c.l.b16 %v1346
    %v2202 = vunpack.c.h.b16 %v1346
    %v2203 = vunpack.c.l.b16 %v1347
    %v2204 = vunpack.c.h.b16 %v1347
    %v2205 = vunpack.c.l.b16 %v1348
    %v2206 = vunpack.c.h.b16 %v1348
    %v2207 = vunpack.c.l.b16 %v1349
    %v2208 = vunpack.c.h.b16 %v1349
    %v2209 = vunpack.c.l.b16 %v1350
    %v2210 = vunpack.c.h.b16 %v1350
    %v2211 = vunpack.c.l.b16 %v1351
    %v2212 = vunpack.c.h.b16 %v1351
    %v2213 = vunpack.c.l.b16 %v1352
    %v2214 = vunpack.c.h.b16 %v1352
    %v2215 = vunpack.c.l.b16 %v1353
    %v2216 = vunpack.c.h.b16 %v1353
    %v2217 = vunpack.c.l.b16 %v1354
    %v2218 = vunpack.c.h.b16 %v1354
    %v2219 = vunpack.c.l.b16 %v1355
    %v2220 = vunpack.c.h.b16 %v1355
    %v2221 = vunpack.c.l.b16 %v1356
    %v2222 = vunpack.c.h.b16 %v1356
    %v2223 = vunpack.c.l.b16 %v1357
    %v2224 = vunpack.c.h.b16 %v1357
    %v2225 = vunpack.c.l.b16 %v1358
    %v2226 = vunpack.c.h.b16 %v1358
    %v2227 = vunpack.c.l.b16 %v1359
    %v2228 = vunpack.c.h.b16 %v1359
    %v2229 = vunpack.c.l.b16 %v1360
    %v2230 = vunpack.c.h.b16 %v1360
    %v2231 = vunpack.c.l.b16 %v1361
    %v2232 = vunpack.c.h.b16 %v1361
    %v2233 = vunpack.c.l.b16 %v1362
    %v2234 = vunpack.c.h.b16 %v1362
    %v2235 = vunpack.c.l.b16 %v1363
    %v2236 = vunpack.c.h.b16 %v1363
    %v2237 = vunpack.c.l.b16 %v1364
    %v2238 = vunpack.c.h.b16 %v1364
    %v2239 = vunpack.c.l.b16 %v1365
    %v2240 = vunpack.c.h.b16 %v1365
    %v2241 = vunpack.c.l.b16 %v1366
    %v2242 = vunpack.c.h.b16 %v1366
    %v2243 = vunpack.c.l.b16 %v1367
    %v2244 = vunpack.c.h.b16 %v1367
    %v2245 = vunpack.c.l.b16 %v1368
    %v2246 = vunpack.c.h.b16 %v1368
    %v2247 = vunpack.c.l.b16 %v1369
    %v2248 = vunpack.c.h.b16 %v1369
    %v2249 = vunpack.c.l.b16 %v1370
    %v2250 = vunpack.c.h.b16 %v1370
    %v2251 = vunpack.c.l.b16 %v1371
    %v2252 = vunpack.c.h.b16 %v1371
    %v2253 = vunpack.c.l.b16 %v1372
    %v2254 = vunpack.c.h.b16 %v1372
    %v2255 = vunpack.c.l.b16 %v1373
    %v2256 = vunpack.c.h.b16 %v1373
    %v2257 = vunpack.c.l.b16 %v1374
    %v2258 = vunpack.c.h.b16 %v1374
    %v2259 = vunpack.c.l.b16 %v1375
    %v2260 = vunpack.c.h.b16 %v1375
    %v2261 = vunpack.c.l.b16 %v1376
    %v2262 = vunpack.c.h.b16 %v1376
    %v2263 = vunpack.c.l.b16 %v1377
    %v2264 = vunpack.c.h.b16 %v1377
    %v2265 = vunpack.c.l.b16 %v1378
    %v2266 = vunpack.c.h.b16 %v1378
    %v2267 = vunpack.c.l.b16 %v1379
    %v2268 = vunpack.c.h.b16 %v1379
    %v2269 = vunpack.c.l.b16 %v1380
    %v2270 = vunpack.c.h.b16 %v1380
    %v2271 = vunpack.c.l.b16 %v1381
    %v2272 = vunpack.c.h.b16 %v1381
    %v2273 = vunpack.c.l.b16 %v1382
    %v2274 = vunpack.c.h.b16 %v1382
    %v2275 = vunpack.c.l.b16 %v1383
    %v2276 = vunpack.c.h.b16 %v1383
    %v2277 = vunpack.c.l.b16 %v1384
    %v2278 = vunpack.c.h.b16 %v1384
    %v2279 = vunpack.c.l.b16 %v1385
    %v2280 = vunpack.c.h.b16 %v1385
    %v2281 = vunpack.c.l.b16 %v1386
    %v2282 = vunpack.c.h.b16 %v1386
    %v2283 = vunpack.c.l.b16 %v1387
    %v2284 = vunpack.c.h.b16 %v1387
    %v2285 = vunpack.c.l.b16 %v1388
    %v2286 = vunpack.c.h.b16 %v1388
    %v2287 = vunpack.c.l.b16 %v1389
    %v2288 = vunpack.c.h.b16 %v1389
    %v2289 = vunpack.c.l.b16 %v1390
    %v2290 = vunpack.c.h.b16 %v1390
    %v2291 = vunpack.c.l.b16 %v1391
    %v2292 = vunpack.c.h.b16 %v1391
    %v2293 = vunpack.c.l.b16 %v1392
    %v2294 = vunpack.c.h.b16 %v1392
    %v2295 = vunpack.c.l.b16 %v1393
    %v2296 = vunpack.c.h.b16 %v1393
    %v2297 = vunpack.c.l.b16 %v1394
    %v2298 = vunpack.c.h.b16 %v1394
    %v2299 = vunpack.c.l.b16 %v1395
    %v2300 = vunpack.c.h.b16 %v1395
    %v2301 = vunpack.c.l.b16 %v1396
    %v2302 = vunpack.c.h.b16 %v1396
    %v2303 = vunpack.c.l.b16 %v1397
    %v2304 = vunpack.c.h.b16 %v1397
    %v2305 = vunpack.c.l.b16 %v1398
    %v2306 = vunpack.c.h.b16 %v1398
    %v2307 = vunpack.c.l.b16 %v1399
    %v2308 = vunpack.c.h.b16 %v1399
    %v2309 = vunpack.c.l.b16 %v1400
    %v2310 = vunpack.c.h.b16 %v1400
    %v2311 = vunpack.c.l.b16 %v1401
    %v2312 = vunpack.c.h.b16 %v1401
    %v2313 = vunpack.c.l.b16 %v1402
    %v2314 = vunpack.c.h.b16 %v1402
    %v2315 = vunpack.c.l.b16 %v1403
    %v2316 = vunpack.c.h.b16 %v1403
    %v2317 = vunpack.c.l.b16 %v1404
    %v2318 = vunpack.c.h.b16 %v1404
    %v2319 = vunpack.c.l.b16 %v1405
    %v2320 = vunpack.c.h.b16 %v1405
    %v2321 = vunpack.c.l.b16 %v1406
    %v2322 = vunpack.c.h.b16 %v1406
    %v2323 = vunpack.c.l.b16 %v1407
    %v2324 = vunpack.c.h.b16 %v1407
    %v2325 = vunpack.c.l.b16 %v1408
    %v2326 = vunpack.c.h.b16 %v1408
    %v2327 = vunpack.c.l.b16 %v1409
    %v2328 = vunpack.c.h.b16 %v1409
    %v2329 = vunpack.c.l.b16 %v1410
    %v2330 = vunpack.c.h.b16 %v1410
    %v2331 = vunpack.c.l.b16 %v1411
    %v2332 = vunpack.c.h.b16 %v1411
    %v2333 = vunpack.c.l.b16 %v1412
    %v2334 = vunpack.c.h.b16 %v1412
    %v2335 = vunpack.c.l.b16 %v1413
    %v2336 = vunpack.c.h.b16 %v1413
    %v2337 = vunpack.c.l.b16 %v1414
    %v2338 = vunpack.c.h.b16 %v1414
    %v2339 = vunpack.c.l.b16 %v1415
    %v2340 = vunpack.c.h.b16 %v1415
    %v2341 = vunpack.c.l.b16 %v1416
    %v2342 = vunpack.c.h.b16 %v1416
    %v2343 = vunpack.c.l.b16 %v1417
    %v2344 = vunpack.c.h.b16 %v1417
    %v2345 = vunpack.c.l.b16 %v1418
    %v2346 = vunpack.c.h.b16 %v1418
    %v2347 = vunpack.c.l.b16 %v1419
    %v2348 = vunpack.c.h.b16 %v1419
    %v2349 = vunpack.c.l.b16 %v1420
    %v2350 = vunpack.c.h.b16 %v1420
    %v2351 = vunpack.c.l.b16 %v1421
    %v2352 = vunpack.c.h.b16 %v1421
    %v2353 = vunpack.c.l.b16 %v1422
    %v2354 = vunpack.c.h.b16 %v1422
    %v2355 = vunpack.c.l.b16 %v1423
    %v2356 = vunpack.c.h.b16 %v1423
    %v2357 = vunpack.c.l.b16 %v1424
    %v2358 = vunpack.c.h.b16 %v1424
    %v2359 = vunpack.c.l.b16 %v1425
    %v2360 = vunpack.c.h.b16 %v1425
    %v2361 = vunpack.c.l.b16 %v1426
    %v2362 = vunpack.c.h.b16 %v1426
    %v2363 = vunpack.c.l.b16 %v1427
    %v2364 = vunpack.c.h.b16 %v1427
    %v2365 = vunpack.c.l.b16 %v1428
    %v2366 = vunpack.c.h.b16 %v1428
    %v2367 = vunpack.c.l.b16 %v1429
    %v2368 = vunpack.c.h.b16 %v1429
    %v2369 = vunpack.c.l.b16 %v1430
    %v2370 = vunpack.c.h.b16 %v1430
    %v2371 = vunpack.c.l.b16 %v1431
    %v2372 = vunpack.c.h.b16 %v1431
    %v2373 = vunpack.c.l.b16 %v1432
    %v2374 = vunpack.c.h.b16 %v1432
    %v2375 = vunpack.c.l.b16 %v1433
    %v2376 = vunpack.c.h.b16 %v1433
    %v2377 = vunpack.c.l.b16 %v1434
    %v2378 = vunpack.c.h.b16 %v1434
    %v2379 = vunpack.c.l.b16 %v1435
    %v2380 = vunpack.c.h.b16 %v1435
    %v2381 = vunpack.c.l.b16 %v1436
    %v2382 = vunpack.c.h.b16 %v1436
    %v2383 = vunpack.c.l.b16 %v1437
    %v2384 = vunpack.c.h.b16 %v1437
    %v2385 = vunpack.c.l.b16 %v1438
    %v2386 = vunpack.c.h.b16 %v1438
    %v2387 = vunpack.c.l.b16 %v1439
    %v2388 = vunpack.c.h.b16 %v1439
    %v2389 = vunpack.c.l.b16 %v1440
    %v2390 = vunpack.c.h.b16 %v1440
    %v2391 = vunpack.c.l.b16 %v1441
    %v2392 = vunpack.c.h.b16 %v1441
    %v2393 = vunpack.c.l.b16 %v1442
    %v2394 = vunpack.c.h.b16 %v1442
    %v2395 = vunpack.c.l.b16 %v1443
    %v2396 = vunpack.c.h.b16 %v1443
    %v2397 = vunpack.c.l.b16 %v1444
    %v2398 = vunpack.c.h.b16 %v1444
    %v2399 = vunpack.c.l.b16 %v1445
    %v2400 = vunpack.c.h.b16 %v1445
    %v2401 = vunpack.c.l.b16 %v1446
    %v2402 = vunpack.c.h.b16 %v1446
    %v2403 = vunpack.c.l.b16 %v1447
    %v2404 = vunpack.c.h.b16 %v1447
    %v2405 = vunpack.c.l.b16 %v1448
    %v2406 = vunpack.c.h.b16 %v1448
    %v2407 = vunpack.c.l.b16 %v1449
    %v2408 = vunpack.c.h.b16 %v1449
    %v2409 = vunpack.c.l.b16 %v1450
    %v2410 = vunpack.c.h.b16 %v1450
    %v2411 = vunpack.c.l.b16 %v1451
    %v2412 = vunpack.c.h.b16 %v1451
    %v2413 = vunpack.c.l.b16 %v1452
    %v2414 = vunpack.c.h.b16 %v1452
    %v2415 = vunpack.c.l.b16 %v1453
    %v2416 = vunpack.c.h.b16 %v1453
    %v2417 = vunpack.c.l.b16 %v1454
    %v2418 = vunpack.c.h.b16 %v1454
    %v2419 = vunpack.c.l.b16 %v1455
    %v2420 = vunpack.c.h.b16 %v1455
    %v2421 = vunpack.c.l.b16 %v1456
    %v2422 = vunpack.c.h.b16 %v1456
    %v2423 = vunpack.c.l.b16 %v1457
    %v2424 = vunpack.c.h.b16 %v1457
    %v2425 = vunpack.c.l.b16 %v1458
    %v2426 = vunpack.c.h.b16 %v1458
    %v2427 = vunpack.c.l.b16 %v1459
    %v2428 = vunpack.c.h.b16 %v1459
    %v2429 = vunpack.c.l.b16 %v1460
    %v2430 = vunpack.c.h.b16 %v1460
    %v2431 = vunpack.c.l.b16 %v1461
    %v2432 = vunpack.c.h.b16 %v1461
    %v2433 = vunpack.c.l.b16 %v1462
    %v2434 = vunpack.c.h.b16 %v1462
    %v2435 = vunpack.c.l.b16 %v1463
    %v2436 = vunpack.c.h.b16 %v1463
    %v2437 = vunpack.c.l.b16 %v1464
    %v2438 = vunpack.c.h.b16 %v1464
    %v2439 = vunpack.c.l.b16 %v1465
    %v2440 = vunpack.c.h.b16 %v1465
    %v2441 = vunpack.c.l.b16 %v1466
    %v2442 = vunpack.c.h.b16 %v1466
    %v2443 = vunpack.c.l.b16 %v1467
    %v2444 = vunpack.c.h.b16 %v1467
    %v2445 = vunpack.c.l.b16 %v1468
    %v2446 = vunpack.c.h.b16 %v1468
    %v2447 = vunpack.c.l.b16 %v1469
    %v2448 = vunpack.c.h.b16 %v1469
    %v2449 = vunpack.c.l.b16 %v1470
    %v2450 = vunpack.c.h.b16 %v1470
    %v2451 = vunpack.c.l.b16 %v1471
    %v2452 = vunpack.c.h.b16 %v1471
    %v2453 = vunpack.c.l.b16 %v1472
    %v2454 = vunpack.c.h.b16 %v1472
    %v2455 = vunpack.c.l.b16 %v1473
    %v2456 = vunpack.c.h.b16 %v1473
    %v2457 = vunpack.c.l.b16 %v1474
    %v2458 = vunpack.c.h.b16 %v1474
    %v2459 = vunpack.c.l.b16 %v1475
    %v2460 = vunpack.c.h.b16 %v1475
    %v2461 = vunpack.c.l.b16 %v1476
    %v2462 = vunpack.c.h.b16 %v1476
    %v2463 = vunpack.c.l.b16 %v1477
    %v2464 = vunpack.c.h.b16 %v1477
    %v2465 = vunpack.c.l.b16 %v1478
    %v2466 = vunpack.c.h.b16 %v1478
    %v2467 = vunpack.c.l.b16 %v1479
    %v2468 = vunpack.c.h.b16 %v1479
    %v2469 = vunpack.c.l.b16 %v1480
    %v2470 = vunpack.c.h.b16 %v1480
    %v2471 = vunpack.c.l.b16 %v1481
    %v2472 = vunpack.c.h.b16 %v1481
    %v2473 = vunpack.c.l.b16 %v1482
    %v2474 = vunpack.c.h.b16 %v1482
    %v2475 = vunpack.c.l.b16 %v1483
    %v2476 = vunpack.c.h.b16 %v1483
    %v2477 = vunpack.c.l.b16 %v1484
    %v2478 = vunpack.c.h.b16 %v1484
    %v2479 = vunpack.c.l.b16 %v1485
    %v2480 = vunpack.c.h.b16 %v1485
    %v2481 = vunpack.c.l.b16 %v1486
    %v2482 = vunpack.c.h.b16 %v1486
    %v2483 = vunpack.c.l.b16 %v1487
    %v2484 = vunpack.c.h.b16 %v1487
    %v2485 = vunpack.c.l.b16 %v1488
    %v2486 = vunpack.c.h.b16 %v1488
    %v2487 = vunpack.c.l.b16 %v1489
    %v2488 = vunpack.c.h.b16 %v1489
    %v2489 = vunpack.c.l.b16 %v1490
    %v2490 = vunpack.c.h.b16 %v1490
    %v2491 = vunpack.c.l.b16 %v1491
    %v2492 = vunpack.c.h.b16 %v1491
    %v2493 = vunpack.c.l.b16 %v1492
    %v2494 = vunpack.c.h.b16 %v1492
    %v2495 = vunpack.c.l.b16 %v1493
    %v2496 = vunpack.c.h.b16 %v1493
    %v2497 = vunpack.c.l.b16 %v1494
    %v2498 = vunpack.c.h.b16 %v1494
    %v2499 = vunpack.c.l.b16 %v1495
    %v2500 = vunpack.c.h.b16 %v1495
    %v2501 = vunpack.c.l.b16 %v1496
    %v2502 = vunpack.c.h.b16 %v1496
    %v2503 = vunpack.c.l.b16 %v1497
    %v2504 = vunpack.c.h.b16 %v1497
    %v2505 = vunpack.c.l.b16 %v1498
    %v2506 = vunpack.c.h.b16 %v1498
    %v2507 = vunpack.c.l.b16 %v1499
    %v2508 = vunpack.c.h.b16 %v1499
    %v2509 = vunpack.c.l.b16 %v1500
    %v2510 = vunpack.c.h.b16 %v1500
    %v2511 = vunpack.c.l.b16 %v1501
    %v2512 = vunpack.c.h.b16 %v1501
    %v2513 = vunpack.c.l.b16 %v1502
    %v2514 = vunpack.c.h.b16 %v1502
    %v2515 = vunpack.c.l.b16 %v1503
    %v2516 = vunpack.c.h.b16 %v1503
    %v2517 = vunpack.c.l.b16 %v1504
    %v2518 = vunpack.c.h.b16 %v1504
    %v2519 = vunpack.c.l.b16 %v1505
    %v2520 = vunpack.c.h.b16 %v1505
    %v2521 = vunpack.c.l.b16 %v1506
    %v2522 = vunpack.c.h.b16 %v1506
    %v2523 = vunpack.c.l.b16 %v1507
    %v2524 = vunpack.c.h.b16 %v1507
    %v2525 = vunpack.c.l.b16 %v1508
    %v2526 = vunpack.c.h.b16 %v1508
    %v2527 = vunpack.c.l.b16 %v1509
    %v2528 = vunpack.c.h.b16 %v1509
    %v2529 = vunpack.c.l.b16 %v1510
    %v2530 = vunpack.c.h.b16 %v1510
    %v2531 = vunpack.c.l.b16 %v1511
    %v2532 = vunpack.c.h.b16 %v1511
    %v2533 = vunpack.c.l.b16 %v1512
    %v2534 = vunpack.c.h.b16 %v1512
    %v2535 = vunpack.c.l.b16 %v1513
    %v2536 = vunpack.c.h.b16 %v1513
    %v2537 = vunpack.c.l.b16 %v1514
    %v2538 = vunpack.c.h.b16 %v1514
    %v2539 = vunpack.c.l.b16 %v1515
    %v2540 = vunpack.c.h.b16 %v1515
    %v2541 = vunpack.c.l.b16 %v1516
    %v2542 = vunpack.c.h.b16 %v1516
    %v2543 = vunpack.c.l.b16 %v1517
    %v2544 = vunpack.c.h.b16 %v1517
    %v2545 = vunpack.c.l.b16 %v1518
    %v2546 = vunpack.c.h.b16 %v1518
    %v2547 = vunpack.c.l.b16 %v1519
    %v2548 = vunpack.c.h.b16 %v1519
    %v2549 = vunpack.c.l.b16 %v1520
    %v2550 = vunpack.c.h.b16 %v1520
    %v2551 = vunpack.c.l.b16 %v1521
    %v2552 = vunpack.c.h.b16 %v1521
    %v2553 = vunpack.c.l.b16 %v1522
    %v2554 = vunpack.c.h.b16 %v1522
    %v2555 = vunpack.c.l.b16 %v1523
    %v2556 = vunpack.c.h.b16 %v1523
    %v2557 = vunpack.c.l.b16 %v1524
    %v2558 = vunpack.c.h.b16 %v1524
    %v2559 = vunpack.c.l.b16 %v1525
    %v2560 = vunpack.c.h.b16 %v1525
    %v2561 = vunpack.c.l.b16 %v1526
    %v2562 = vunpack.c.h.b16 %v1526
    %v2563 = vunpack.c.l.b16 %v1527
    %v2564 = vunpack.c.h.b16 %v1527
    %v2565 = vunpack.c.l.b16 %v1528
    %v2566 = vunpack.c.h.b16 %v1528
    %v2567 = vunpack.c.l.b16 %v1529
    %v2568 = vunpack.c.h.b16 %v1529
    %v2569 = vunpack.c.l.b16 %v1530
    %v2570 = vunpack.c.h.b16 %v1530
    %v2571 = vunpack.c.l.b16 %v1531
    %v2572 = vunpack.c.h.b16 %v1531
    %v2573 = vunpack.c.l.b16 %v1532
    %v2574 = vunpack.c.h.b16 %v1532
    %v2575 = vunpack.c.l.b16 %v1533
    %v2576 = vunpack.c.h.b16 %v1533
    %v2577 = vunpack.c.l.b16 %v1534
    %v2578 = vunpack.c.h.b16 %v1534
    %v2579 = vunpack.c.l.b16 %v1535
    %v2580 = vunpack.c.h.b16 %v1535
    %v2581 = vunpack.c.l.b16 %v1536
    %v2582 = vunpack.c.h.b16 %v1536
    %v2583 = vunpack.c.l.b16 %v1537
    %v2584 = vunpack.c.h.b16 %v1537
    %v2585 = vunpack.c.l.b16 %v1538
    %v2586 = vunpack.c.h.b16 %v1538
    %v2587 = vunpack.c.l.b16 %v1539
    %v2588 = vunpack.c.h.b16 %v1539
    %v2589 = vunpack.c.l.b16 %v1540
    %v2590 = vunpack.c.h.b16 %v1540
    %v2591 = vunpack.c.l.b16 %v1541
    %v2592 = vunpack.c.h.b16 %v1541
    %v2593 = vunpack.c.l.b16 %v1542
    %v2594 = vunpack.c.h.b16 %v1542
    %v2595 = vunpack.c.l.b16 %v1543
    %v2596 = vunpack.c.h.b16 %v1543
    %v2597 = vunpack.c.l.b16 %v1544
    %v2598 = vunpack.c.h.b16 %v1544
    %v2599 = vunpack.c.l.b16 %v1545
    %v2600 = vunpack.c.h.b16 %v1545
    %v2601 = vunpack.c.l.b16 %v1546
    %v2602 = vunpack.c.h.b16 %v1546
    %v2603 = vunpack.c.l.b16 %v1547
    %v2604 = vunpack.c.h.b16 %v1547
    %v2605 = vunpack.c.l.b16 %v1548
    %v2606 = vunpack.c.h.b16 %v1548
    %v2607 = vunpack.c.l.b16 %v1549
    %v2608 = vunpack.c.h.b16 %v1549
    %v2609 = vunpack.c.l.b16 %v1550
    %v2610 = vunpack.c.h.b16 %v1550
    %v2611 = vunpack.c.l.b16 %v1551
    %v2612 = vunpack.c.h.b16 %v1551
    %v2613 = vunpack.c.l.b16 %v1552
    %v2614 = vunpack.c.h.b16 %v1552
    %v2615 = vunpack.c.l.b16 %v1553
    %v2616 = vunpack.c.h.b16 %v1553
    %v2617 = vunpack.c.l.b16 %v1554
    %v2618 = vunpack.c.h.b16 %v1554
    %v2619 = vunpack.c.l.b16 %v1555
    %v2620 = vunpack.c.h.b16 %v1555
    %v2621 = vunpack.c.l.b16 %v1556
    %v2622 = vunpack.c.h.b16 %v1556
    %v2623 = vunpack.c.l.b16 %v1557
    %v2624 = vunpack.c.h.b16 %v1557
    %v2625 = vunpack.c.l.b16 %v1558
    %v2626 = vunpack.c.h.b16 %v1558
    %v2627 = vunpack.c.l.b16 %v1559
    %v2628 = vunpack.c.h.b16 %v1559
    %v2629 = vunpack.c.l.b16 %v1560
    %v2630 = vunpack.c.h.b16 %v1560
    %v2631 = vunpack.c.l.b16 %v1561
    %v2632 = vunpack.c.h.b16 %v1561
    %v2633 = vunpack.c.l.b16 %v1562
    %v2634 = vunpack.c.h.b16 %v1562
    %v2635 = vunpack.c.l.b16 %v1563
    %v2636 = vunpack.c.h.b16 %v1563
    %v2637 = vunpack.c.l.b16 %v1564
    %v2638 = vunpack.c.h.b16 %v1564
    %v2639 = vunpack.c.l.b16 %v1565
    %v2640 = vunpack.c.h.b16 %v1565
    %v2641 = vunpack.c.l.b16 %v1566
    %v2642 = vunpack.c.h.b16 %v1566
    %v2643 = vunpack.c.l.b16 %v1567
    %v2644 = vunpack.c.h.b16 %v1567
    %v2645 = vunpack.c.l.b16 %v1568
    %v2646 = vunpack.c.h.b16 %v1568
    %v2647 = vunpack.c.l.b16 %v1569
    %v2648 = vunpack.c.h.b16 %v1569
    %v2649 = vunpack.c.l.b16 %v1570
    %v2650 = vunpack.c.h.b16 %v1570
    %v2651 = vunpack.c.l.b16 %v1571
    %v2652 = vunpack.c.h.b16 %v1571
    %v2653 = vunpack.c.l.b16 %v1572
    %v2654 = vunpack.c.h.b16 %v1572
    %v2655 = vunpack.c.l.b16 %v1573
    %v2656 = vunpack.c.h.b16 %v1573
    %v2657 = vunpack.c.l.b16 %v1574
    %v2658 = vunpack.c.h.b16 %v1574
    %v2659 = vunpack.c.l.b16 %v1575
    %v2660 = vunpack.c.h.b16 %v1575
    %v2661 = vunpack.c.l.b16 %v1576
    %v2662 = vunpack.c.h.b16 %v1576
    %v2663 = vunpack.c.l.b16 %v1577
    %v2664 = vunpack.c.h.b16 %v1577
    %v2665 = vunpack.c.l.b16 %v1578
    %v2666 = vunpack.c.h.b16 %v1578
    %v2667 = vunpack.c.l.b16 %v1579
    %v2668 = vunpack.c.h.b16 %v1579
    %v2669 = vunpack.c.l.b16 %v1580
    %v2670 = vunpack.c.h.b16 %v1580
    %v2671 = vunpack.c.l.b16 %v1581
    %v2672 = vunpack.c.h.b16 %v1581
    %v2673 = vunpack.c.l.b16 %v1582
    %v2674 = vunpack.c.h.b16 %v1582
    %v2675 = vunpack.c.l.b16 %v1583
    %v2676 = vunpack.c.h.b16 %v1583
    %v2677 = vunpack.c.l.b16 %v1584
    %v2678 = vunpack.c.h.b16 %v1584
    %v2679 = vunpack.c.l.b16 %v1585
    %v2680 = vunpack.c.h.b16 %v1585
    %v2681 = vunpack.c.l.b16 %v1586
    %v2682 = vunpack.c.h.b16 %v1586
    %v2683 = vunpack.c.l.b16 %v1587
    %v2684 = vunpack.c.h.b16 %v1587
    %v2685 = vunpack.c.l.b16 %v1588
    %v2686 = vunpack.c.h.b16 %v1588
    %v2687 = vunpack.c.l.b16 %v1589
    %v2688 = vunpack.c.h.b16 %v1589
    %v2689 = vunpack.c.l.b16 %v1590
    %v2690 = vunpack.c.h.b16 %v1590
    %v2691 = vunpack.c.l.b16 %v1591
    %v2692 = vunpack.c.h.b16 %v1591
    %v2693 = vunpack.c.l.b16 %v1592
    %v2694 = vunpack.c.h.b16 %v1592
    %v2695 = vunpack.c.l.b16 %v1593
    %v2696 = vunpack.c.h.b16 %v1593
    %v2697 = vunpack.c.l.b16 %v1594
    %v2698 = vunpack.c.h.b16 %v1594
    %v2699 = vunpack.c.l.b16 %v1595
    %v2700 = vunpack.c.h.b16 %v1595
    %v2701 = vunpack.c.l.b16 %v1596
    %v2702 = vunpack.c.h.b16 %v1596
    %v2703 = vunpack.c.l.b16 %v1597
    %v2704 = vunpack.c.h.b16 %v1597
    %v2705 = vunpack.c.l.b16 %v1598
    %v2706 = vunpack.c.h.b16 %v1598
    %v2707 = vunpack.c.l.b16 %v1599
    %v2708 = vunpack.c.h.b16 %v1599
    %v2709 = vunpack.c.l.b16 %v1600
    %v2710 = vunpack.c.h.b16 %v1600
    %v2711 = vunpack.c.l.b16 %v1601
    %v2712 = vunpack.c.h.b16 %v1601
    %v2713 = vunpack.c.l.b16 %v1602
    %v2714 = vunpack.c.h.b16 %v1602
    %v2715 = vunpack.c.l.b16 %v1603
    %v2716 = vunpack.c.h.b16 %v1603
    %v2717 = vunpack.c.l.b16 %v1604
    %v2718 = vunpack.c.h.b16 %v1604
    %v2719 = vunpack.c.l.b16 %v1605
    %v2720 = vunpack.c.h.b16 %v1605
    %v2721 = vunpack.c.l.b16 %v1606
    %v2722 = vunpack.c.h.b16 %v1606
    %v2723 = vunpack.c.l.b16 %v1607
    %v2724 = vunpack.c.h.b16 %v1607
    %v2725 = vunpack.c.l.b16 %v1608
    %v2726 = vunpack.c.h.b16 %v1608
    %v2727 = vunpack.c.l.b16 %v1609
    %v2728 = vunpack.c.h.b16 %v1609
    %v2729 = vunpack.c.l.b16 %v1610
    %v2730 = vunpack.c.h.b16 %v1610
    %v2731 = vunpack.c.l.b16 %v1611
    %v2732 = vunpack.c.h.b16 %v1611
    %v2733 = vunpack.c.l.b16 %v1612
    %v2734 = vunpack.c.h.b16 %v1612
    %v2735 = vunpack.c.l.b16 %v1613
    %v2736 = vunpack.c.h.b16 %v1613
    %v2737 = vunpack.c.l.b16 %v1614
    %v2738 = vunpack.c.h.b16 %v1614
    %v2739 = vunpack.c.l.b16 %v1615
    %v2740 = vunpack.c.h.b16 %v1615
    %v2741 = vunpack.c.l.b16 %v1616
    %v2742 = vunpack.c.h.b16 %v1616
    %v2743 = vunpack.c.l.b16 %v1617
    %v2744 = vunpack.c.h.b16 %v1617
    %v2745 = vunpack.c.l.b16 %v1618
    %v2746 = vunpack.c.h.b16 %v1618
    %v2747 = vunpack.c.l.b16 %v1619
    %v2748 = vunpack.c.h.b16 %v1619
    %v2749 = vunpack.c.l.b16 %v1620
    %v2750 = vunpack.c.h.b16 %v1620
    %v2751 = vunpack.c.l.b16 %v1621
    %v2752 = vunpack.c.h.b16 %v1621
    %v2753 = vunpack.c.l.b16 %v1622
    %v2754 = vunpack.c.h.b16 %v1622
    %v2755 = vunpack.c.l.b16 %v1623
    %v2756 = vunpack.c.h.b16 %v1623
    %v2757 = vunpack.c.l.b16 %v1624
    %v2758 = vunpack.c.h.b16 %v1624
    %v2759 = vunpack.c.l.b16 %v1625
    %v2760 = vunpack.c.h.b16 %v1625
    %v2761 = vunpack.c.l.b16 %v1626
    %v2762 = vunpack.c.h.b16 %v1626
    %v2763 = vunpack.c.l.b16 %v1627
    %v2764 = vunpack.c.h.b16 %v1627
    %v2765 = vunpack.c.l.b16 %v1628
    %v2766 = vunpack.c.h.b16 %v1628
    %v2767 = vunpack.c.l.b16 %v1629
    %v2768 = vunpack.c.h.b16 %v1629
    %v2769 = vunpack.c.l.b16 %v1630
    %v2770 = vunpack.c.h.b16 %v1630
    %v2771 = vunpack.c.l.b16 %v1631
    %v2772 = vunpack.c.h.b16 %v1631
    %v2773 = vunpack.c.l.b16 %v1632
    %v2774 = vunpack.c.h.b16 %v1632
    %v2775 = vunpack.c.l.b16 %v1633
    %v2776 = vunpack.c.h.b16 %v1633
    %v2777 = vunpack.c.l.b16 %v1634
    %v2778 = vunpack.c.h.b16 %v1634
    %v2779 = vunpack.c.l.b16 %v1635
    %v2780 = vunpack.c.h.b16 %v1635
    %v2781 = vunpack.c.l.b16 %v1636
    %v2782 = vunpack.c.h.b16 %v1636
    %v2783 = vunpack.c.l.b16 %v1637
    %v2784 = vunpack.c.h.b16 %v1637
    %v2785 = vunpack.c.l.b16 %v1638
    %v2786 = vunpack.c.h.b16 %v1638
    %v2787 = vunpack.c.l.b16 %v1639
    %v2788 = vunpack.c.h.b16 %v1639
    %v2789 = vunpack.c.l.b16 %v1640
    %v2790 = vunpack.c.h.b16 %v1640
    %v2791 = vunpack.c.l.b16 %v1641
    %v2792 = vunpack.c.h.b16 %v1641
    %v2793 = vunpack.c.l.b16 %v1642
    %v2794 = vunpack.c.h.b16 %v1642
    %v2795 = vunpack.c.l.b16 %v1643
    %v2796 = vunpack.c.h.b16 %v1643
    %v2797 = vunpack.c.l.b16 %v1644
    %v2798 = vunpack.c.h.b16 %v1644
    %v2799 = vunpack.c.l.b16 %v1645
    %v2800 = vunpack.c.h.b16 %v1645
    %v2801 = vunpack.c.l.b16 %v1646
    %v2802 = vunpack.c.h.b16 %v1646
    %v2803 = vunpack.c.l.b16 %v1647
    %v2804 = vunpack.c.h.b16 %v1647
    %v2805 = vunpack.c.l.b16 %v1648
    %v2806 = vunpack.c.h.b16 %v1648
    %v2807 = vunpack.c.l.b16 %v1649
    %v2808 = vunpack.c.h.b16 %v1649
    %v2809 = vunpack.c.l.b16 %v1650
    %v2810 = vunpack.c.h.b16 %v1650
    %v2811 = vunpack.c.l.b16 %v1651
    %v2812 = vunpack.c.h.b16 %v1651
    %v2813 = vunpack.c.l.b16 %v1652
    %v2814 = vunpack.c.h.b16 %v1652
    %v2815 = vunpack.c.l.b16 %v1653
    %v2816 = vunpack.c.h.b16 %v1653
    %v2817 = vunpack.c.l.b16 %v1654
    %v2818 = vunpack.c.h.b16 %v1654
    %v2819 = vunpack.c.l.b16 %v1655
    %v2820 = vunpack.c.h.b16 %v1655
    %v2821 = vunpack.c.l.b16 %v1656
    %v2822 = vunpack.c.h.b16 %v1656
    %v2823 = vunpack.c.l.b16 %v1657
    %v2824 = vunpack.c.h.b16 %v1657
    %v2825 = vunpack.c.l.b16 %v1658
    %v2826 = vunpack.c.h.b16 %v1658
    %v2827 = vunpack.c.l.b16 %v1659
    %v2828 = vunpack.c.h.b16 %v1659
    %v2829 = vunpack.c.l.b16 %v1660
    %v2830 = vunpack.c.h.b16 %v1660
    %v2831 = vunpack.c.l.b16 %v1661
    %v2832 = vunpack.c.h.b16 %v1661
    %v2833 = vunpack.c.l.b16 %v1662
    %v2834 = vunpack.c.h.b16 %v1662
    %v2835 = vunpack.c.l.b16 %v1663
    %v2836 = vunpack.c.h.b16 %v1663
    %v2837 = vunpack.c.l.b16 %v1664
    %v2838 = vunpack.c.h.b16 %v1664
    %v2839 = vpack.c.b16 %v2075, %v2071
    %v2840 = vpack.c.b16 %v2076, %v2072
    %v2841 = vpack.c.b16 %v2077, %v2073
    %v2842 = vpack.c.b16 %v2078, %v2074
    %v2843 = vpack.c.b16 %v2083, %v2079
    %v2844 = vpack.c.b16 %v2084, %v2080
    %v2845 = vpack.c.b16 %v2085, %v2081
    %v2846 = vpack.c.b16 %v2086, %v2082
    %v2847 = vpack.c.b16 %v2091, %v2087
    %v2848 = vpack.c.b16 %v2092, %v2088
    %v2849 = vpack.c.b16 %v2093, %v2089
    %v2850 = vpack.c.b16 %v2094, %v2090
    %v2851 = vpack.c.b16 %v2099, %v2095
    %v2852 = vpack.c.b16 %v2100, %v2096
    %v2853 = vpack.c.b16 %v2101, %v2097
    %v2854 = vpack.c.b16 %v2102, %v2098
    %v2855 = vpack.c.b16 %v2107, %v2103
    %v2856 = vpack.c.b16 %v2108, %v2104
    %v2857 = vpack.c.b16 %v2109, %v2105
    %v2858 = vpack.c.b16 %v2110, %v2106
    %v2859 = vpack.c.b16 %v2115, %v2111
    %v2860 = vpack.c.b16 %v2116, %v2112
    %v2861 = vpack.c.b16 %v2117, %v2113
    %v2862 = vpack.c.b16 %v2118, %v2114
    %v2863 = vpack.c.b16 %v2123, %v2119
    %v2864 = vpack.c.b16 %v2124, %v2120
    %v2865 = vpack.c.b16 %v2125, %v2121
    %v2866 = vpack.c.b16 %v2126, %v2122
    %v2867 = vpack.c.b16 %v2131, %v2127
    %v2868 = vpack.c.b16 %v2132, %v2128
    %v2869 = vpack.c.b16 %v2133, %v2129
    %v2870 = vpack.c.b16 %v2134, %v2130
    %v2871 = vpack.c.b16 %v2139, %v2135
    %v2872 = vpack.c.b16 %v2140, %v2136
    %v2873 = vpack.c.b16 %v2141, %v2137
    %v2874 = vpack.c.b16 %v2142, %v2138
    %v2875 = vpack.c.b16 %v2147, %v2143
    %v2876 = vpack.c.b16 %v2148, %v2144
    %v2877 = vpack.c.b16 %v2149, %v2145
    %v2878 = vpack.c.b16 %v2150, %v2146
    %v2879 = vpack.c.b16 %v2155, %v2151
    %v2880 = vpack.c.b16 %v2156, %v2152
    %v2881 = vpack.c.b16 %v2157, %v2153
    %v2882 = vpack.c.b16 %v2158, %v2154
    %v2883 = vpack.c.b16 %v2163, %v2159
    %v2884 = vpack.c.b16 %v2164, %v2160
    %v2885 = vpack.c.b16 %v2165, %v2161
    %v2886 = vpack.c.b16 %v2166, %v2162
    %v2887 = vpack.c.b16 %v2171, %v2167
    %v2888 = vpack.c.b16 %v2172, %v2168
    %v2889 = vpack.c.b16 %v2173, %v2169
    %v2890 = vpack.c.b16 %v2174, %v2170
    %v2891 = vpack.c.b16 %v2179, %v2175
    %v2892 = vpack.c.b16 %v2180, %v2176
    %v2893 = vpack.c.b16 %v2181, %v2177
    %v2894 = vpack.c.b16 %v2182, %v2178
    %v2895 = vpack.c.b16 %v2187, %v2183
    %v2896 = vpack.c.b16 %v2188, %v2184
    %v2897 = vpack.c.b16 %v2189, %v2185
    %v2898 = vpack.c.b16 %v2190, %v2186
    %v2899 = vpack.c.b16 %v2195, %v2191
    %v2900 = vpack.c.b16 %v2196, %v2192
    %v2901 = vpack.c.b16 %v2197, %v2193
    %v2902 = vpack.c.b16 %v2198, %v2194
    %v2903 = vpack.c.b16 %v2203, %v2199
    %v2904 = vpack.c.b16 %v2204, %v2200
    %v2905 = vpack.c.b16 %v2205, %v2201
    %v2906 = vpack.c.b16 %v2206, %v2202
    %v2907 = vpack.c.b16 %v2211, %v2207
    %v2908 = vpack.c.b16 %v2212, %v2208
    %v2909 = vpack.c.b16 %v2213, %v2209
    %v2910 = vpack.c.b16 %v2214, %v2210
    %v2911 = vpack.c.b16 %v2219, %v2215
    %v2912 = vpack.c.b16 %v2220, %v2216
    %v2913 = vpack.c.b16 %v2221, %v2217
    %v2914 = vpack.c.b16 %v2222, %v2218
    %v2915 = vpack.c.b16 %v2227, %v2223
    %v2916 = vpack.c.b16 %v2228, %v2224
    %v2917 = vpack.c.b16 %v2229, %v2225
    %v2918 = vpack.c.b16 %v2230, %v2226
    %v2919 = vpack.c.b16 %v2235, %v2231
    %v2920 = vpack.c.b16 %v2236, %v2232
    %v2921 = vpack.c.b16 %v2237, %v2233
    %v2922 = vpack.c.b16 %v2238, %v2234
    %v2923 = vpack.c.b16 %v2243, %v2239
    %v2924 = vpack.c.b16 %v2244, %v2240
    %v2925 = vpack.c.b16 %v2245, %v2241
    %v2926 = vpack.c.b16 %v2246, %v2242
    %v2927 = vpack.c.b16 %v2251, %v2247
    %v2928 = vpack.c.b16 %v2252, %v2248
    %v2929 = vpack.c.b16 %v2253, %v2249
    %v2930 = vpack.c.b16 %v2254, %v2250
    %v2931 = vpack.c.b16 %v2259, %v2255
    %v2932 = vpack.c.b16 %v2260, %v2256
    %v2933 = vpack.c.b16 %v2261, %v2257
    %v2934 = vpack.c.b16 %v2262, %v2258
    %v2935 = vpack.c.b16 %v2267, %v2263
    %v2936 = vpack.c.b16 %v2268, %v2264
    %v2937 = vpack.c.b16 %v2269, %v2265
    %v2938 = vpack.c.b16 %v2270, %v2266
    %v2939 = vpack.c.b16 %v2275, %v2271
    %v2940 = vpack.c.b16 %v2276, %v2272
    %v2941 = vpack.c.b16 %v2277, %v2273
    %v2942 = vpack.c.b16 %v2278, %v2274
    %v2943 = vpack.c.b16 %v2283, %v2279
    %v2944 = vpack.c.b16 %v2284, %v2280
    %v2945 = vpack.c.b16 %v2285, %v2281
    %v2946 = vpack.c.b16 %v2286, %v2282
    %v2947 = vpack.c.b16 %v2291, %v2287
    %v2948 = vpack.c.b16 %v2292, %v2288
    %v2949 = vpack.c.b16 %v2293, %v2289
    %v2950 = vpack.c.b16 %v2294, %v2290
    %v2951 = vpack.c.b16 %v2299, %v2295
    %v2952 = vpack.c.b16 %v2300, %v2296
    %v2953 = vpack.c.b16 %v2301, %v2297
    %v2954 = vpack.c.b16 %v2302, %v2298
    %v2955 = vpack.c.b16 %v2307, %v2303
    %v2956 = vpack.c.b16 %v2308, %v2304
    %v2957 = vpack.c.b16 %v2309, %v2305
    %v2958 = vpack.c.b16 %v2310, %v2306
    %v2959 = vpack.c.b16 %v2315, %v2311
    %v2960 = vpack.c.b16 %v2316, %v2312
    %v2961 = vpack.c.b16 %v2317, %v2313
    %v2962 = vpack.c.b16 %v2318, %v2314
    %v2963 = vpack.c.b16 %v2323, %v2319
    %v2964 = vpack.c.b16 %v2324, %v2320
    %v2965 = vpack.c.b16 %v2325, %v2321
    %v2966 = vpack.c.b16 %v2326, %v2322
    %v2967 = vpack.c.b16 %v2331, %v2327
    %v2968 = vpack.c.b16 %v2332, %v2328
    %v2969 = vpack.c.b16 %v2333, %v2329
    %v2970 = vpack.c.b16 %v2334, %v2330
    %v2971 = vpack.c.b16 %v2339, %v2335
    %v2972 = vpack.c.b16 %v2340, %v2336
    %v2973 = vpack.c.b16 %v2341, %v2337
    %v2974 = vpack.c.b16 %v2342, %v2338
    %v2975 = vpack.c.b16 %v2347, %v2343
    %v2976 = vpack.c.b16 %v2348, %v2344
    %v2977 = vpack.c.b16 %v2349, %v2345
    %v2978 = vpack.c.b16 %v2350, %v2346
    %v2979 = vpack.c.b16 %v2355, %v2351
    %v2980 = vpack.c.b16 %v2356, %v2352
    %v2981 = vpack.c.b16 %v2357, %v2353
    %v2982 = vpack.c.b16 %v2358, %v2354
    %v2983 = vpack.c.b16 %v2363, %v2359
    %v2984 = vpack.c.b16 %v2364, %v2360
    %v2985 = vpack.c.b16 %v2365, %v2361
    %v2986 = vpack.c.b16 %v2366, %v2362
    %v2987 = vpack.c.b16 %v2371, %v2367
    %v2988 = vpack.c.b16 %v2372, %v2368
    %v2989 = vpack.c.b16 %v2373, %v2369
    %v2990 = vpack.c.b16 %v2374, %v2370
    %v2991 = vpack.c.b16 %v2379, %v2375
    %v2992 = vpack.c.b16 %v2380, %v2376
    %v2993 = vpack.c.b16 %v2381, %v2377
    %v2994 = vpack.c.b16 %v2382, %v2378
    %v2995 = vpack.c.b16 %v2387, %v2383
    %v2996 = vpack.c.b16 %v2388, %v2384
    %v2997 = vpack.c.b16 %v2389, %v2385
    %v2998 = vpack.c.b16 %v2390, %v2386
    %v2999 = vpack.c.b16 %v2395, %v2391
    %v3000 = vpack.c.b16 %v2396, %v2392
    %v3001 = vpack.c.b16 %v2397, %v2393
    %v3002 = vpack.c.b16 %v2398, %v2394
    %v3003 = vpack.c.b16 %v2403, %v2399
    %v3004 = vpack.c.b16 %v2404, %v2400
    %v3005 = vpack.c.b16 %v2405, %v2401
    %v3006 = vpack.c.b16 %v2406, %v2402
    %v3007 = vpack.c.b16 %v2411, %v2407
    %v3008 = vpack.c.b16 %v2412, %v2408
    %v3009 = vpack.c.b16 %v2413, %v2409
    %v3010 = vpack.c.b16 %v2414, %v2410
    %v3011 = vpack.c.b16 %v2419, %v2415
    %v3012 = vpack.c.b16 %v2420, %v2416
    %v3013 = vpack.c.b16 %v2421, %v2417
    %v3014 = vpack.c.b16 %v2422, %v2418
    %v3015 = vpack.c.b16 %v2427, %v2423
    %v3016 = vpack.c.b16 %v2428, %v2424
    %v3017 = vpack.c.b16 %v2429, %v2425
    %v3018 = vpack.c.b16 %v2430, %v2426
    %v3019 = vpack.c.b16 %v2435, %v2431
    %v3020 = vpack.c.b16 %v2436, %v2432
    %v3021 = vpack.c.b16 %v2437, %v2433
    %v3022 = vpack.c.b16 %v2438, %v2434
    %v3023 = vpack.c.b16 %v2443, %v2439
    %v3024 = vpack.c.b16 %v2444, %v2440
    %v3025 = vpack.c.b16 %v2445, %v2441
    %v3026 = vpack.c.b16 %v2446, %v2442
    %v3027 = vpack.c.b16 %v2451, %v2447
    %v3028 = vpack.c.b16 %v2452, %v2448
    %v3029 = vpack.c.b16 %v2453, %v2449
    %v3030 = vpack.c.b16 %v2454, %v2450
    %v3031 = vpack.c.b16 %v2459, %v2455
    %v3032 = vpack.c.b16 %v2460, %v2456
    %v3033 = vpack.c.b16 %v2461, %v2457
    %v3034 = vpack.c.b16 %v2462, %v2458
    %v3035 = vpack.c.b16 %v2467, %v2463
    %v3036 = vpack.c.b16 %v2468, %v2464
    %v3037 = vpack.c.b16 %v2469, %v2465
    %v3038 = vpack.c.b16 %v2470, %v2466
    %v3039 = vpack.c.b16 %v2475, %v2471
    %v3040 = vpack.c.b16 %v2476, %v2472
    %v3041 = vpack.c.b16 %v2477, %v2473
    %v3042 = vpack.c.b16 %v2478, %v2474
    %v3043 = vpack.c.b16 %v2483, %v2479
    %v3044 = vpack.c.b16 %v2484, %v2480
    %v3045 = vpack.c.b16 %v2485, %v2481
    %v3046 = vpack.c.b16 %v2486, %v2482
    %v3047 = vpack.c.b16 %v2491, %v2487
    %v3048 = vpack.c.b16 %v2492, %v2488
    %v3049 = vpack.c.b16 %v2493, %v2489
    %v3050 = vpack.c.b16 %v2494, %v2490
    %v3051 = vpack.c.b16 %v2499, %v2495
    %v3052 = vpack.c.b16 %v2500, %v2496
    %v3053 = vpack.c.b16 %v2501, %v2497
    %v3054 = vpack.c.b16 %v2502, %v2498
    %v3055 = vpack.c.b16 %v2507, %v2503
    %v3056 = vpack.c.b16 %v2508, %v2504
    %v3057 = vpack.c.b16 %v2509, %v2505
    %v3058 = vpack.c.b16 %v2510, %v2506
    %v3059 = vpack.c.b16 %v2515, %v2511
    %v3060 = vpack.c.b16 %v2516, %v2512
    %v3061 = vpack.c.b16 %v2517, %v2513
    %v3062 = vpack.c.b16 %v2518, %v2514
    %v3063 = vpack.c.b16 %v2523, %v2519
    %v3064 = vpack.c.b16 %v2524, %v2520
    %v3065 = vpack.c.b16 %v2525, %v2521
    %v3066 = vpack.c.b16 %v2526, %v2522
    %v3067 = vpack.c.b16 %v2531, %v2527
    %v3068 = vpack.c.b16 %v2532, %v2528
    %v3069 = vpack.c.b16 %v2533, %v2529
    %v3070 = vpack.c.b16 %v2534, %v2530
    %v3071 = vpack.c.b16 %v2539, %v2535
    %v3072 = vpack.c.b16 %v2540, %v2536
    %v3073 = vpack.c.b16 %v2541, %v2537
    %v3074 = vpack.c.b16 %v2542, %v2538
    %v3075 = vpack.c.b16 %v2547, %v2543
    %v3076 = vpack.c.b16 %v2548, %v2544
    %v3077 = vpack.c.b16 %v2549, %v2545
    %v3078 = vpack.c.b16 %v2550, %v2546
    %v3079 = vpack.c.b16 %v2555, %v2551
    %v3080 = vpack.c.b16 %v2556, %v2552
    %v3081 = vpack.c.b16 %v2557, %v2553
    %v3082 = vpack.c.b16 %v2558, %v2554
    %v3083 = vpack.c.b16 %v2563, %v2559
    %v3084 = vpack.c.b16 %v2564, %v2560
    %v3085 = vpack.c.b16 %v2565, %v2561
    %v3086 = vpack.c.b16 %v2566, %v2562
    %v3087 = vpack.c.b16 %v2571, %v2567
    %v3088 = vpack.c.b16 %v2572, %v2568
    %v3089 = vpack.c.b16 %v2573, %v2569
    %v3090 = vpack.c.b16 %v2574, %v2570
    %v3091 = vpack.c.b16 %v2579, %v2575
    %v3092 = vpack.c.b16 %v2580, %v2576
    %v3093 = vpack.c.b16 %v2581, %v2577
    %v3094 = vpack.c.b16 %v2582, %v2578
    %v3095 = vpack.c.b16 %v2587, %v2583
    %v3096 = vpack.c.b16 %v2588, %v2584
    %v3097 = vpack.c.b16 %v2589, %v2585
    %v3098 = vpack.c.b16 %v2590, %v2586
    %v3099 = vpack.c.b16 %v2595, %v2591
    %v3100 = vpack.c.b16 %v2596, %v2592
    %v3101 = vpack.c.b16 %v2597, %v2593
    %v3102 = vpack.c.b16 %v2598, %v2594
    %v3103 = vpack.c.b16 %v2603, %v2599
    %v3104 = vpack.c.b16 %v2604, %v2600
    %v3105 = vpack.c.b16 %v2605, %v2601
    %v3106 = vpack.c.b16 %v2606, %v2602
    %v3107 = vpack.c.b16 %v2611, %v2607
    %v3108 = vpack.c.b16 %v2612, %v2608
    %v3109 = vpack.c.b16 %v2613, %v2609
    %v3110 = vpack.c.b16 %v2614, %v2610
    %v3111 = vpack.c.b16 %v2619, %v2615
    %v3112 = vpack.c.b16 %v2620, %v2616
    %v3113 = vpack.c.b16 %v2621, %v2617
    %v3114 = vpack.c.b16 %v2622, %v2618
    %v3115 = vpack.c.b16 %v2627, %v2623
    %v3116 = vpack.c.b16 %v2628, %v2624
    %v3117 = vpack.c.b16 %v2629, %v2625
    %v3118 = vpack.c.b16 %v2630, %v2626
    %v3119 = vpack.c.b16 %v2635, %v2631
    %v3120 = vpack.c.b16 %v2636, %v2632
    %v3121 = vpack.c.b16 %v2637, %v2633
    %v3122 = vpack.c.b16 %v2638, %v2634
    %v3123 = vpack.c.b16 %v2643, %v2639
    %v3124 = vpack.c.b16 %v2644, %v2640
    %v3125 = vpack.c.b16 %v2645, %v2641
    %v3126 = vpack.c.b16 %v2646, %v2642
    %v3127 = vpack.c.b16 %v2651, %v2647
    %v3128 = vpack.c.b16 %v2652, %v2648
    %v3129 = vpack.c.b16 %v2653, %v2649
    %v3130 = vpack.c.b16 %v2654, %v2650
    %v3131 = vpack.c.b16 %v2659, %v2655
    %v3132 = vpack.c.b16 %v2660, %v2656
    %v3133 = vpack.c.b16 %v2661, %v2657
    %v3134 = vpack.c.b16 %v2662, %v2658
    %v3135 = vpack.c.b16 %v2667, %v2663
    %v3136 = vpack.c.b16 %v2668, %v2664
    %v3137 = vpack.c.b16 %v2669, %v2665
    %v3138 = vpack.c.b16 %v2670, %v2666
    %v3139 = vpack.c.b16 %v2675, %v2671
    %v3140 = vpack.c.b16 %v2676, %v2672
    %v3141 = vpack.c.b16 %v2677, %v2673
    %v3142 = vpack.c.b16 %v2678, %v2674
    %v3143 = vpack.c.b16 %v2683, %v2679
    %v3144 = vpack.c.b16 %v2684, %v2680
    %v3145 = vpack.c.b16 %v2685, %v2681
    %v3146 = vpack.c.b16 %v2686, %v2682
    %v3147 = vpack.c.b16 %v2691, %v2687
    %v3148 = vpack.c.b16 %v2692, %v2688
    %v3149 = vpack.c.b16 %v2693, %v2689
    %v3150 = vpack.c.b16 %v2694, %v2690
    %v3151 = vpack.c.b16 %v2699, %v2695
    %v3152 = vpack.c.b16 %v2700, %v2696
    %v3153 = vpack.c.b16 %v2701, %v2697
    %v3154 = vpack.c.b16 %v2702, %v2698
    %v3155 = vpack.c.b16 %v2707, %v2703
    %v3156 = vpack.c.b16 %v2708, %v2704
    %v3157 = vpack.c.b16 %v2709, %v2705
    %v3158 = vpack.c.b16 %v2710, %v2706
    %v3159 = vpack.c.b16 %v2715, %v2711
    %v3160 = vpack.c.b16 %v2716, %v2712
    %v3161 = vpack.c.b16 %v2717, %v2713
    %v3162 = vpack.c.b16 %v2718, %v2714
    %v3163 = vpack.c.b16 %v2723, %v2719
    %v3164 = vpack.c.b16 %v2724, %v2720
    %v3165 = vpack.c.b16 %v2725, %v2721
    %v3166 = vpack.c.b16 %v2726, %v2722
    %v3167 = vpack.c.b16 %v2731, %v2727
    %v3168 = vpack.c.b16 %v2732, %v2728
    %v3169 = vpack.c.b16 %v2733, %v2729
    %v3170 = vpack.c.b16 %v2734, %v2730
    %v3171 = vpack.c.b16 %v2739, %v2735
    %v3172 = vpack.c.b16 %v2740, %v2736
    %v3173 = vpack.c.b16 %v2741, %v2737
    %v3174 = vpack.c.b16 %v2742, %v2738
    %v3175 = vpack.c.b16 %v2747, %v2743
    %v3176 = vpack.c.b16 %v2748, %v2744
    %v3177 = vpack.c.b16 %v2749, %v2745
    %v3178 = vpack.c.b16 %v2750, %v2746
    %v3179 = vpack.c.b16 %v2755, %v2751
    %v3180 = vpack.c.b16 %v2756, %v2752
    %v3181 = vpack.c.b16 %v2757, %v2753
    %v3182 = vpack.c.b16 %v2758, %v2754
    %v3183 = vpack.c.b16 %v2763, %v2759
    %v3184 = vpack.c.b16 %v2764, %v2760
    %v3185 = vpack.c.b16 %v2765, %v2761
    %v3186 = vpack.c.b16 %v2766, %v2762
    %v3187 = vpack.c.b16 %v2771, %v2767
    %v3188 = vpack.c.b16 %v2772, %v2768
    %v3189 = vpack.c.b16 %v2773, %v2769
    %v3190 = vpack.c.b16 %v2774, %v2770
    %v3191 = vpack.c.b16 %v2779, %v2775
    %v3192 = vpack.c.b16 %v2780, %v2776
    %v3193 = vpack.c.b16 %v2781, %v2777
    %v3194 = vpack.c.b16 %v2782, %v2778
    %v3195 = vpack.c.b16 %v2787, %v2783
    %v3196 = vpack.c.b16 %v2788, %v2784
    %v3197 = vpack.c.b16 %v2789, %v2785
    %v3198 = vpack.c.b16 %v2790, %v2786
    %v3199 = vpack.c.b16 %v2795, %v2791
    %v3200 = vpack.c.b16 %v2796, %v2792
    %v3201 = vpack.c.b16 %v2797, %v2793
    %v3202 = vpack.c.b16 %v2798, %v2794
    %v3203 = vpack.c.b16 %v2803, %v2799
    %v3204 = vpack.c.b16 %v2804, %v2800
    %v3205 = vpack.c.b16 %v2805, %v2801
    %v3206 = vpack.c.b16 %v2806, %v2802
    %v3207 = vpack.c.b16 %v2811, %v2807
    %v3208 = vpack.c.b16 %v2812, %v2808
    %v3209 = vpack.c.b16 %v2813, %v2809
    %v3210 = vpack.c.b16 %v2814, %v2810
    %v3211 = vpack.c.b16 %v2819, %v2815
    %v3212 = vpack.c.b16 %v2820, %v2816
    %v3213 = vpack.c.b16 %v2821, %v2817
    %v3214 = vpack.c.b16 %v2822, %v2818
    %v3215 = vpack.c.b16 %v2827, %v2823
    %v3216 = vpack.c.b16 %v2828, %v2824
    %v3217 = vpack.c.b16 %v2829, %v2825
    %v3218 = vpack.c.b16 %v2830, %v2826
    %v3219 = vpack.c.b16 %v2835, %v2831
    %v3220 = vpack.c.b16 %v2836, %v2832
    %v3221 = vpack.c.b16 %v2837, %v2833
    %v3222 = vpack.c.b16 %v2838, %v2834
    %3607 = vmatprep.subr.bf16.mxu0 %v2868
    %3608 = vmatpush1.bf16.msra.mxu0 %v2867
    %3609 = vmatprep.subr.bf16.mxu0 %v2864
    %3610 = vmatpush1.bf16.msra.mxu0 %v2863
    %3611 = vmatprep.subr.bf16.mxu0 %v2860
    %3612 = vmatpush1.bf16.msra.mxu0 %v2859
    %3613 = vmatprep.subr.bf16.mxu0 %v2856
    %3614 = vmatpush1.bf16.msra.mxu0 %v2855
    %3615 = vmatprep.subr.bf16.mxu0 %v2852
    %3616 = vmatpush1.bf16.msra.mxu0 %v2851
    %3617 = vmatprep.subr.bf16.mxu0 %v2848
    %3618 = vmatpush1.bf16.msra.mxu0 %v2847
    %3619 = vmatprep.subr.bf16.mxu0 %v2844
    %3620 = vmatpush1.bf16.msra.mxu0 %v2843
    %3621 = vmatprep.subr.bf16.mxu0 %v2840
    %3622 = vmatpush1.bf16.msra.mxu0 %v2839
    %3623 = vmatprep.subr.bf16.mxu0 %v2900
    %3624 = vmatpush2.bf16.msra.mxu0 %v2899
    %3625 = vmatprep.subr.bf16.mxu0 %v2896
    %3626 = vmatpush2.bf16.msra.mxu0 %v2895
    %3627 = vmatprep.subr.bf16.mxu0 %v2892
    %3628 = vmatpush2.bf16.msra.mxu0 %v2891
    %3629 = vmatprep.subr.bf16.mxu0 %v2888
    %3630 = vmatpush2.bf16.msra.mxu0 %v2887
    %3631 = vmatprep.subr.bf16.mxu0 %v2884
    %3632 = vmatpush2.bf16.msra.mxu0 %v2883
    %3633 = vmatprep.subr.bf16.mxu0 %v2880
    %3634 = vmatpush2.bf16.msra.mxu0 %v2879
    %3635 = vmatprep.subr.bf16.mxu0 %v2876
    %3636 = vmatpush2.bf16.msra.mxu0 %v2875
    %3637 = vmatprep.subr.bf16.mxu0 %v2872
    %3638 = vmatpush2.bf16.msra.mxu0 %v2871
    %3639 = vmatprep.mubr.bf16.mxu0 %v1084
    %3640 = vmatmul.mubr.bf16.gmra.mxu0 %v1083
    %v3641 = vpop.f32.mrf.mxu0
    %v3642 = vadd.f32 %v1670, %v3641
    %v3643 = vpop.f32.mrf.mxu0
    %v3644 = vadd.f32 %v1674, %v3643
    %v3645 = vpop.f32.mrf.mxu0
    %v3646 = vpop.f32.mrf.mxu0
    %3647 = vdwg.mxu0
    %3648 = vmatprep.subr.bf16.mxu0 %v2932
    %3649 = vmatpush1.bf16.msra.mxu0 %v2931
    %3650 = vmatprep.subr.bf16.mxu0 %v2928
    %3651 = vmatpush1.bf16.msra.mxu0 %v2927
    %3652 = vmatprep.subr.bf16.mxu0 %v2924
    %3653 = vmatpush1.bf16.msra.mxu0 %v2923
    %3654 = vmatprep.subr.bf16.mxu0 %v2920
    %3655 = vmatpush1.bf16.msra.mxu0 %v2919
    %3656 = vmatprep.subr.bf16.mxu0 %v2916
    %3657 = vmatpush1.bf16.msra.mxu0 %v2915
    %3658 = vmatprep.subr.bf16.mxu0 %v2912
    %3659 = vmatpush1.bf16.msra.mxu0 %v2911
    %3660 = vmatprep.subr.bf16.mxu0 %v2908
    %3661 = vmatpush1.bf16.msra.mxu0 %v2907
    %3662 = vmatprep.subr.bf16.mxu0 %v2904
    %3663 = vmatpush1.bf16.msra.mxu0 %v2903
    %3664 = vmatprep.subr.bf16.mxu0 %v2964
    %3665 = vmatpush2.bf16.msra.mxu0 %v2963
    %3666 = vmatprep.subr.bf16.mxu0 %v2960
    %3667 = vmatpush2.bf16.msra.mxu0 %v2959
    %3668 = vmatprep.subr.bf16.mxu0 %v2956
    %3669 = vmatpush2.bf16.msra.mxu0 %v2955
    %3670 = vmatprep.subr.bf16.mxu0 %v2952
    %3671 = vmatpush2.bf16.msra.mxu0 %v2951
    %3672 = vmatprep.subr.bf16.mxu0 %v2948
    %3673 = vmatpush2.bf16.msra.mxu0 %v2947
    %3674 = vmatprep.subr.bf16.mxu0 %v2944
    %3675 = vmatpush2.bf16.msra.mxu0 %v2943
    %3676 = vmatprep.subr.bf16.mxu0 %v2940
    %3677 = vmatpush2.bf16.msra.mxu0 %v2939
    %3678 = vmatprep.subr.bf16.mxu0 %v2936
    %3679 = vmatpush2.bf16.msra.mxu0 %v2935
    %3680 = vmatprep.mubr.bf16.mxu0 %v1086
    %3681 = vmatmul.mubr.bf16.gmra.mxu0 %v1085
    %v3682 = vpop.f32.mrf.mxu0
    %v3683 = vadd.f32 %v3642, %v3682
    %v3684 = vpop.f32.mrf.mxu0
    %v3685 = vadd.f32 %v3644, %v3684
    %v3686 = vpop.f32.mrf.mxu0
    %v3687 = vpop.f32.mrf.mxu0
    %3688 = vdwg.mxu0
    %3689 = vmatprep.subr.bf16.mxu0 %v2996
    %3690 = vmatpush1.bf16.msra.mxu0 %v2995
    %3691 = vmatprep.subr.bf16.mxu0 %v2992
    %3692 = vmatpush1.bf16.msra.mxu0 %v2991
    %3693 = vmatprep.subr.bf16.mxu0 %v2988
    %3694 = vmatpush1.bf16.msra.mxu0 %v2987
    %3695 = vmatprep.subr.bf16.mxu0 %v2984
    %3696 = vmatpush1.bf16.msra.mxu0 %v2983
    %3697 = vmatprep.subr.bf16.mxu0 %v2980
    %3698 = vmatpush1.bf16.msra.mxu0 %v2979
    %3699 = vmatprep.subr.bf16.mxu0 %v2976
    %3700 = vmatpush1.bf16.msra.mxu0 %v2975
    %3701 = vmatprep.subr.bf16.mxu0 %v2972
    %3702 = vmatpush1.bf16.msra.mxu0 %v2971
    %3703 = vmatprep.subr.bf16.mxu0 %v2968
    %3704 = vmatpush1.bf16.msra.mxu0 %v2967
    %3705 = vmatprep.subr.bf16.mxu0 %v3028
    %3706 = vmatpush2.bf16.msra.mxu0 %v3027
    %3707 = vmatprep.subr.bf16.mxu0 %v3024
    %3708 = vmatpush2.bf16.msra.mxu0 %v3023
    %3709 = vmatprep.subr.bf16.mxu0 %v3020
    %3710 = vmatpush2.bf16.msra.mxu0 %v3019
    %3711 = vmatprep.subr.bf16.mxu0 %v3016
    %3712 = vmatpush2.bf16.msra.mxu0 %v3015
    %3713 = vmatprep.subr.bf16.mxu0 %v3012
    %3714 = vmatpush2.bf16.msra.mxu0 %v3011
    %3715 = vmatprep.subr.bf16.mxu0 %v3008
    %3716 = vmatpush2.bf16.msra.mxu0 %v3007
    %3717 = vmatprep.subr.bf16.mxu0 %v3004
    %3718 = vmatpush2.bf16.msra.mxu0 %v3003
    %3719 = vmatprep.subr.bf16.mxu0 %v3000
    %3720 = vmatpush2.bf16.msra.mxu0 %v2999
    %3721 = vmatprep.mubr.bf16.mxu0 %v1188
    %3722 = vmatmul.mubr.bf16.gmra.mxu0 %v1187
    %v3723 = vpop.f32.mrf.mxu0
    %v3724 = vadd.f32 %v3683, %v3723
    %v3725 = vpop.f32.mrf.mxu0
    %v3726 = vadd.f32 %v3685, %v3725
    %v3727 = vpop.f32.mrf.mxu0
    %v3728 = vpop.f32.mrf.mxu0
    %3729 = vdwg.mxu0
    %3730 = vmatprep.subr.bf16.mxu0 %v3060
    %3731 = vmatpush1.bf16.msra.mxu0 %v3059
    %3732 = vmatprep.subr.bf16.mxu0 %v3056
    %3733 = vmatpush1.bf16.msra.mxu0 %v3055
    %3734 = vmatprep.subr.bf16.mxu0 %v3052
    %3735 = vmatpush1.bf16.msra.mxu0 %v3051
    %3736 = vmatprep.subr.bf16.mxu0 %v3048
    %3737 = vmatpush1.bf16.msra.mxu0 %v3047
    %3738 = vmatprep.subr.bf16.mxu0 %v3044
    %3739 = vmatpush1.bf16.msra.mxu0 %v3043
    %3740 = vmatprep.subr.bf16.mxu0 %v3040
    %3741 = vmatpush1.bf16.msra.mxu0 %v3039
    %3742 = vmatprep.subr.bf16.mxu0 %v3036
    %3743 = vmatpush1.bf16.msra.mxu0 %v3035
    %3744 = vmatprep.subr.bf16.mxu0 %v3032
    %3745 = vmatpush1.bf16.msra.mxu0 %v3031
    %3746 = vmatprep.subr.bf16.mxu0 %v3092
    %3747 = vmatpush2.bf16.msra.mxu0 %v3091
    %3748 = vmatprep.subr.bf16.mxu0 %v3088
    %3749 = vmatpush2.bf16.msra.mxu0 %v3087
    %3750 = vmatprep.subr.bf16.mxu0 %v3084
    %3751 = vmatpush2.bf16.msra.mxu0 %v3083
    %3752 = vmatprep.subr.bf16.mxu0 %v3080
    %3753 = vmatpush2.bf16.msra.mxu0 %v3079
    %3754 = vmatprep.subr.bf16.mxu0 %v3076
    %3755 = vmatpush2.bf16.msra.mxu0 %v3075
    %3756 = vmatprep.subr.bf16.mxu0 %v3072
    %3757 = vmatpush2.bf16.msra.mxu0 %v3071
    %3758 = vmatprep.subr.bf16.mxu0 %v3068
    %3759 = vmatpush2.bf16.msra.mxu0 %v3067
    %3760 = vmatprep.subr.bf16.mxu0 %v3064
    %3761 = vmatpush2.bf16.msra.mxu0 %v3063
    %3762 = vmatprep.mubr.bf16.mxu0 %v1190
    %3763 = vmatmul.mubr.bf16.gmra.mxu0 %v1189
    %v3764 = vpop.f32.mrf.mxu0
    %v3765 = vadd.f32 %v3724, %v3764
    %v3766 = vpop.f32.mrf.mxu0
    %v3767 = vadd.f32 %v3726, %v3766
    %v3768 = vpop.f32.mrf.mxu0
    %v3769 = vpop.f32.mrf.mxu0
    %3770 = vdwg.mxu0
    %3771 = vmatprep.subr.bf16.mxu0 %v3124
    %3772 = vmatpush1.bf16.msra.mxu0 %v3123
    %3773 = vmatprep.subr.bf16.mxu0 %v3120
    %3774 = vmatpush1.bf16.msra.mxu0 %v3119
    %3775 = vmatprep.subr.bf16.mxu0 %v3116
    %3776 = vmatpush1.bf16.msra.mxu0 %v3115
    %3777 = vmatprep.subr.bf16.mxu0 %v3112
    %3778 = vmatpush1.bf16.msra.mxu0 %v3111
    %3779 = vmatprep.subr.bf16.mxu0 %v3108
    %3780 = vmatpush1.bf16.msra.mxu0 %v3107
    %3781 = vmatprep.subr.bf16.mxu0 %v3104
    %3782 = vmatpush1.bf16.msra.mxu0 %v3103
    %3783 = vmatprep.subr.bf16.mxu0 %v3100
    %3784 = vmatpush1.bf16.msra.mxu0 %v3099
    %3785 = vmatprep.subr.bf16.mxu0 %v3096
    %3786 = vmatpush1.bf16.msra.mxu0 %v3095
    %3787 = vmatprep.subr.bf16.mxu0 %v3156
    %3788 = vmatpush2.bf16.msra.mxu0 %v3155
    %3789 = vmatprep.subr.bf16.mxu0 %v3152
    %3790 = vmatpush2.bf16.msra.mxu0 %v3151
    %3791 = vmatprep.subr.bf16.mxu0 %v3148
    %3792 = vmatpush2.bf16.msra.mxu0 %v3147
    %3793 = vmatprep.subr.bf16.mxu0 %v3144
    %3794 = vmatpush2.bf16.msra.mxu0 %v3143
    %3795 = vmatprep.subr.bf16.mxu0 %v3140
    %3796 = vmatpush2.bf16.msra.mxu0 %v3139
    %3797 = vmatprep.subr.bf16.mxu0 %v3136
    %3798 = vmatpush2.bf16.msra.mxu0 %v3135
    %3799 = vmatprep.subr.bf16.mxu0 %v3132
    %3800 = vmatpush2.bf16.msra.mxu0 %v3131
    %3801 = vmatprep.subr.bf16.mxu0 %v3128
    %3802 = vmatpush2.bf16.msra.mxu0 %v3127
    %3803 = vmatprep.mubr.bf16.mxu0 %v1278
    %3804 = vmatmul.mubr.bf16.gmra.mxu0 %v1277
    %v3805 = vpop.f32.mrf.mxu0
    %v3806 = vadd.f32 %v3765, %v3805
    %v3807 = vpop.f32.mrf.mxu0
    %v3808 = vadd.f32 %v3767, %v3807
    %v3809 = vpop.f32.mrf.mxu0
    %v3810 = vpop.f32.mrf.mxu0
    %3811 = vdwg.mxu0
    %3812 = vmatprep.subr.bf16.mxu0 %v3188
    %3813 = vmatpush1.bf16.msra.mxu0 %v3187
    %3814 = vmatprep.subr.bf16.mxu0 %v3184
    %3815 = vmatpush1.bf16.msra.mxu0 %v3183
    %3816 = vmatprep.subr.bf16.mxu0 %v3180
    %3817 = vmatpush1.bf16.msra.mxu0 %v3179
    %3818 = vmatprep.subr.bf16.mxu0 %v3176
    %3819 = vmatpush1.bf16.msra.mxu0 %v3175
    %3820 = vmatprep.subr.bf16.mxu0 %v3172
    %3821 = vmatpush1.bf16.msra.mxu0 %v3171
    %3822 = vmatprep.subr.bf16.mxu0 %v3168
    %3823 = vmatpush1.bf16.msra.mxu0 %v3167
    %3824 = vmatprep.subr.bf16.mxu0 %v3164
    %3825 = vmatpush1.bf16.msra.mxu0 %v3163
    %3826 = vmatprep.subr.bf16.mxu0 %v3160
    %3827 = vmatpush1.bf16.msra.mxu0 %v3159
    %3828 = vmatprep.subr.bf16.mxu0 %v3220
    %3829 = vmatpush2.bf16.msra.mxu0 %v3219
    %3830 = vmatprep.subr.bf16.mxu0 %v3216
    %3831 = vmatpush2.bf16.msra.mxu0 %v3215
    %3832 = vmatprep.subr.bf16.mxu0 %v3212
    %3833 = vmatpush2.bf16.msra.mxu0 %v3211
    %3834 = vmatprep.subr.bf16.mxu0 %v3208
    %3835 = vmatpush2.bf16.msra.mxu0 %v3207
    %3836 = vmatprep.subr.bf16.mxu0 %v3204
    %3837 = vmatpush2.bf16.msra.mxu0 %v3203
    %3838 = vmatprep.subr.bf16.mxu0 %v3200
    %3839 = vmatpush2.bf16.msra.mxu0 %v3199
    %3840 = vmatprep.subr.bf16.mxu0 %v3196
    %3841 = vmatpush2.bf16.msra.mxu0 %v3195
    %3842 = vmatprep.subr.bf16.mxu0 %v3192
    %3843 = vmatpush2.bf16.msra.mxu0 %v3191
    %3844 = vmatprep.mubr.bf16.mxu0 %v1280
    %3845 = vmatmul.mubr.bf16.gmra.mxu0 %v1279
    %v3846 = vpop.f32.mrf.mxu0
    %v3847 = vadd.f32 %v3806, %v3846
    %v3848 = vpop.f32.mrf.mxu0
    %v3849 = vadd.f32 %v3808, %v3848
    %v3850 = vpop.f32.mrf.mxu0
    %v3851 = vpop.f32.mrf.mxu0
    %3852 = vdwg.mxu0
    %3853 = vmatprep.subr.bf16.mxu0 %v2870
    %3854 = vmatpush1.bf16.msra.mxu0 %v2869
    %3855 = vmatprep.subr.bf16.mxu0 %v2866
    %3856 = vmatpush1.bf16.msra.mxu0 %v2865
    %3857 = vmatprep.subr.bf16.mxu0 %v2862
    %3858 = vmatpush1.bf16.msra.mxu0 %v2861
    %3859 = vmatprep.subr.bf16.mxu0 %v2858
    %3860 = vmatpush1.bf16.msra.mxu0 %v2857
    %3861 = vmatprep.subr.bf16.mxu0 %v2854
    %3862 = vmatpush1.bf16.msra.mxu0 %v2853
    %3863 = vmatprep.subr.bf16.mxu0 %v2850
    %3864 = vmatpush1.bf16.msra.mxu0 %v2849
    %3865 = vmatprep.subr.bf16.mxu0 %v2846
    %3866 = vmatpush1.bf16.msra.mxu0 %v2845
    %3867 = vmatprep.subr.bf16.mxu0 %v2842
    %3868 = vmatpush1.bf16.msra.mxu0 %v2841
    %3869 = vmatprep.subr.bf16.mxu0 %v2902
    %3870 = vmatpush2.bf16.msra.mxu0 %v2901
    %3871 = vmatprep.subr.bf16.mxu0 %v2898
    %3872 = vmatpush2.bf16.msra.mxu0 %v2897
    %3873 = vmatprep.subr.bf16.mxu0 %v2894
    %3874 = vmatpush2.bf16.msra.mxu0 %v2893
    %3875 = vmatprep.subr.bf16.mxu0 %v2890
    %3876 = vmatpush2.bf16.msra.mxu0 %v2889
    %3877 = vmatprep.subr.bf16.mxu0 %v2886
    %3878 = vmatpush2.bf16.msra.mxu0 %v2885
    %3879 = vmatprep.subr.bf16.mxu0 %v2882
    %3880 = vmatpush2.bf16.msra.mxu0 %v2881
    %3881 = vmatprep.subr.bf16.mxu0 %v2878
    %3882 = vmatpush2.bf16.msra.mxu0 %v2877
    %3883 = vmatprep.subr.bf16.mxu0 %v2874
    %3884 = vmatpush2.bf16.msra.mxu0 %v2873
    %3885 = vmatprep.mubr.bf16.mxu0 %v1084
    %3886 = vmatmul.mubr.bf16.gmra.mxu0 %v1083
    %v3887 = vpop.f32.mrf.mxu0
    %v3888 = vadd.f32 %v1678, %v3887
    %v3889 = vpop.f32.mrf.mxu0
    %v3890 = vadd.f32 %v1682, %v3889
    %v3891 = vpop.f32.mrf.mxu0
    %v3892 = vpop.f32.mrf.mxu0
    %3893 = vdwg.mxu0
    %3894 = vmatprep.subr.bf16.mxu0 %v2934
    %3895 = vmatpush1.bf16.msra.mxu0 %v2933
    %3896 = vmatprep.subr.bf16.mxu0 %v2930
    %3897 = vmatpush1.bf16.msra.mxu0 %v2929
    %3898 = vmatprep.subr.bf16.mxu0 %v2926
    %3899 = vmatpush1.bf16.msra.mxu0 %v2925
    %3900 = vmatprep.subr.bf16.mxu0 %v2922
    %3901 = vmatpush1.bf16.msra.mxu0 %v2921
    %3902 = vmatprep.subr.bf16.mxu0 %v2918
    %3903 = vmatpush1.bf16.msra.mxu0 %v2917
    %3904 = vmatprep.subr.bf16.mxu0 %v2914
    %3905 = vmatpush1.bf16.msra.mxu0 %v2913
    %3906 = vmatprep.subr.bf16.mxu0 %v2910
    %3907 = vmatpush1.bf16.msra.mxu0 %v2909
    %3908 = vmatprep.subr.bf16.mxu0 %v2906
    %3909 = vmatpush1.bf16.msra.mxu0 %v2905
    %3910 = vmatprep.subr.bf16.mxu0 %v2966
    %3911 = vmatpush2.bf16.msra.mxu0 %v2965
    %3912 = vmatprep.subr.bf16.mxu0 %v2962
    %3913 = vmatpush2.bf16.msra.mxu0 %v2961
    %3914 = vmatprep.subr.bf16.mxu0 %v2958
    %3915 = vmatpush2.bf16.msra.mxu0 %v2957
    %3916 = vmatprep.subr.bf16.mxu0 %v2954
    %3917 = vmatpush2.bf16.msra.mxu0 %v2953
    %3918 = vmatprep.subr.bf16.mxu0 %v2950
    %3919 = vmatpush2.bf16.msra.mxu0 %v2949
    %3920 = vmatprep.subr.bf16.mxu0 %v2946
    %3921 = vmatpush2.bf16.msra.mxu0 %v2945
    %3922 = vmatprep.subr.bf16.mxu0 %v2942
    %3923 = vmatpush2.bf16.msra.mxu0 %v2941
    %3924 = vmatprep.subr.bf16.mxu0 %v2938
    %3925 = vmatpush2.bf16.msra.mxu0 %v2937
    %3926 = vmatprep.mubr.bf16.mxu0 %v1086
    %3927 = vmatmul.mubr.bf16.gmra.mxu0 %v1085
    %v3928 = vpop.f32.mrf.mxu0
    %v3929 = vadd.f32 %v3888, %v3928
    %v3930 = vpop.f32.mrf.mxu0
    %v3931 = vadd.f32 %v3890, %v3930
    %v3932 = vpop.f32.mrf.mxu0
    %v3933 = vpop.f32.mrf.mxu0
    %3934 = vdwg.mxu0
    %3935 = vmatprep.subr.bf16.mxu0 %v2998
    %3936 = vmatpush1.bf16.msra.mxu0 %v2997
    %3937 = vmatprep.subr.bf16.mxu0 %v2994
    %3938 = vmatpush1.bf16.msra.mxu0 %v2993
    %3939 = vmatprep.subr.bf16.mxu0 %v2990
    %3940 = vmatpush1.bf16.msra.mxu0 %v2989
    %3941 = vmatprep.subr.bf16.mxu0 %v2986
    %3942 = vmatpush1.bf16.msra.mxu0 %v2985
    %3943 = vmatprep.subr.bf16.mxu0 %v2982
    %3944 = vmatpush1.bf16.msra.mxu0 %v2981
    %3945 = vmatprep.subr.bf16.mxu0 %v2978
    %3946 = vmatpush1.bf16.msra.mxu0 %v2977
    %3947 = vmatprep.subr.bf16.mxu0 %v2974
    %3948 = vmatpush1.bf16.msra.mxu0 %v2973
    %3949 = vmatprep.subr.bf16.mxu0 %v2970
    %3950 = vmatpush1.bf16.msra.mxu0 %v2969
    %3951 = vmatprep.subr.bf16.mxu0 %v3030
    %3952 = vmatpush2.bf16.msra.mxu0 %v3029
    %3953 = vmatprep.subr.bf16.mxu0 %v3026
    %3954 = vmatpush2.bf16.msra.mxu0 %v3025
    %3955 = vmatprep.subr.bf16.mxu0 %v3022
    %3956 = vmatpush2.bf16.msra.mxu0 %v3021
    %3957 = vmatprep.subr.bf16.mxu0 %v3018
    %3958 = vmatpush2.bf16.msra.mxu0 %v3017
    %3959 = vmatprep.subr.bf16.mxu0 %v3014
    %3960 = vmatpush2.bf16.msra.mxu0 %v3013
    %3961 = vmatprep.subr.bf16.mxu0 %v3010
    %3962 = vmatpush2.bf16.msra.mxu0 %v3009
    %3963 = vmatprep.subr.bf16.mxu0 %v3006
    %3964 = vmatpush2.bf16.msra.mxu0 %v3005
    %3965 = vmatprep.subr.bf16.mxu0 %v3002
    %3966 = vmatpush2.bf16.msra.mxu0 %v3001
    %3967 = vmatprep.mubr.bf16.mxu0 %v1188
    %3968 = vmatmul.mubr.bf16.gmra.mxu0 %v1187
    %v3969 = vpop.f32.mrf.mxu0
    %v3970 = vadd.f32 %v3929, %v3969
    %v3971 = vpop.f32.mrf.mxu0
    %v3972 = vadd.f32 %v3931, %v3971
    %v3973 = vpop.f32.mrf.mxu0
    %v3974 = vpop.f32.mrf.mxu0
    %3975 = vdwg.mxu0
    %3976 = vmatprep.subr.bf16.mxu0 %v3062
    %3977 = vmatpush1.bf16.msra.mxu0 %v3061
    %3978 = vmatprep.subr.bf16.mxu0 %v3058
    %3979 = vmatpush1.bf16.msra.mxu0 %v3057
    %3980 = vmatprep.subr.bf16.mxu0 %v3054
    %3981 = vmatpush1.bf16.msra.mxu0 %v3053
    %3982 = vmatprep.subr.bf16.mxu0 %v3050
    %3983 = vmatpush1.bf16.msra.mxu0 %v3049
    %3984 = vmatprep.subr.bf16.mxu0 %v3046
    %3985 = vmatpush1.bf16.msra.mxu0 %v3045
    %3986 = vmatprep.subr.bf16.mxu0 %v3042
    %3987 = vmatpush1.bf16.msra.mxu0 %v3041
    %3988 = vmatprep.subr.bf16.mxu0 %v3038
    %3989 = vmatpush1.bf16.msra.mxu0 %v3037
    %3990 = vmatprep.subr.bf16.mxu0 %v3034
    %3991 = vmatpush1.bf16.msra.mxu0 %v3033
    %3992 = vmatprep.subr.bf16.mxu0 %v3094
    %3993 = vmatpush2.bf16.msra.mxu0 %v3093
    %3994 = vmatprep.subr.bf16.mxu0 %v3090
    %3995 = vmatpush2.bf16.msra.mxu0 %v3089
    %3996 = vmatprep.subr.bf16.mxu0 %v3086
    %3997 = vmatpush2.bf16.msra.mxu0 %v3085
    %3998 = vmatprep.subr.bf16.mxu0 %v3082
    %3999 = vmatpush2.bf16.msra.mxu0 %v3081
    %4000 = vmatprep.subr.bf16.mxu0 %v3078
    %4001 = vmatpush2.bf16.msra.mxu0 %v3077
    %4002 = vmatprep.subr.bf16.mxu0 %v3074
    %4003 = vmatpush2.bf16.msra.mxu0 %v3073
    %4004 = vmatprep.subr.bf16.mxu0 %v3070
    %4005 = vmatpush2.bf16.msra.mxu0 %v3069
    %4006 = vmatprep.subr.bf16.mxu0 %v3066
    %4007 = vmatpush2.bf16.msra.mxu0 %v3065
    %4008 = vmatprep.mubr.bf16.mxu0 %v1190
    %4009 = vmatmul.mubr.bf16.gmra.mxu0 %v1189
    %v4010 = vpop.f32.mrf.mxu0
    %v4011 = vadd.f32 %v3970, %v4010
    %v4012 = vpop.f32.mrf.mxu0
    %v4013 = vadd.f32 %v3972, %v4012
    %v4014 = vpop.f32.mrf.mxu0
    %v4015 = vpop.f32.mrf.mxu0
    %4016 = vdwg.mxu0
    %4017 = vmatprep.subr.bf16.mxu0 %v3126
    %4018 = vmatpush1.bf16.msra.mxu0 %v3125
    %4019 = vmatprep.subr.bf16.mxu0 %v3122
    %4020 = vmatpush1.bf16.msra.mxu0 %v3121
    %4021 = vmatprep.subr.bf16.mxu0 %v3118
    %4022 = vmatpush1.bf16.msra.mxu0 %v3117
    %4023 = vmatprep.subr.bf16.mxu0 %v3114
    %4024 = vmatpush1.bf16.msra.mxu0 %v3113
    %4025 = vmatprep.subr.bf16.mxu0 %v3110
    %4026 = vmatpush1.bf16.msra.mxu0 %v3109
    %4027 = vmatprep.subr.bf16.mxu0 %v3106
    %4028 = vmatpush1.bf16.msra.mxu0 %v3105
    %4029 = vmatprep.subr.bf16.mxu0 %v3102
    %4030 = vmatpush1.bf16.msra.mxu0 %v3101
    %4031 = vmatprep.subr.bf16.mxu0 %v3098
    %4032 = vmatpush1.bf16.msra.mxu0 %v3097
    %4033 = vmatprep.subr.bf16.mxu0 %v3158
    %4034 = vmatpush2.bf16.msra.mxu0 %v3157
    %4035 = vmatprep.subr.bf16.mxu0 %v3154
    %4036 = vmatpush2.bf16.msra.mxu0 %v3153
    %4037 = vmatprep.subr.bf16.mxu0 %v3150
    %4038 = vmatpush2.bf16.msra.mxu0 %v3149
    %4039 = vmatprep.subr.bf16.mxu0 %v3146
    %4040 = vmatpush2.bf16.msra.mxu0 %v3145
    %4041 = vmatprep.subr.bf16.mxu0 %v3142
    %4042 = vmatpush2.bf16.msra.mxu0 %v3141
    %4043 = vmatprep.subr.bf16.mxu0 %v3138
    %4044 = vmatpush2.bf16.msra.mxu0 %v3137
    %4045 = vmatprep.subr.bf16.mxu0 %v3134
    %4046 = vmatpush2.bf16.msra.mxu0 %v3133
    %4047 = vmatprep.subr.bf16.mxu0 %v3130
    %4048 = vmatpush2.bf16.msra.mxu0 %v3129
    %4049 = vmatprep.mubr.bf16.mxu0 %v1278
    %4050 = vmatmul.mubr.bf16.gmra.mxu0 %v1277
    %v4051 = vpop.f32.mrf.mxu0
    %v4052 = vadd.f32 %v4011, %v4051
    %v4053 = vpop.f32.mrf.mxu0
    %v4054 = vadd.f32 %v4013, %v4053
    %v4055 = vpop.f32.mrf.mxu0
    %v4056 = vpop.f32.mrf.mxu0
    %4057 = vdwg.mxu0
    %4058 = vmatprep.subr.bf16.mxu0 %v3190
    %4059 = vmatpush1.bf16.msra.mxu0 %v3189
    %4060 = vmatprep.subr.bf16.mxu0 %v3186
    %4061 = vmatpush1.bf16.msra.mxu0 %v3185
    %4062 = vmatprep.subr.bf16.mxu0 %v3182
    %4063 = vmatpush1.bf16.msra.mxu0 %v3181
    %4064 = vmatprep.subr.bf16.mxu0 %v3178
    %4065 = vmatpush1.bf16.msra.mxu0 %v3177
    %4066 = vmatprep.subr.bf16.mxu0 %v3174
    %4067 = vmatpush1.bf16.msra.mxu0 %v3173
    %4068 = vmatprep.subr.bf16.mxu0 %v3170
    %4069 = vmatpush1.bf16.msra.mxu0 %v3169
    %4070 = vmatprep.subr.bf16.mxu0 %v3166
    %4071 = vmatpush1.bf16.msra.mxu0 %v3165
    %4072 = vmatprep.subr.bf16.mxu0 %v3162
    %4073 = vmatpush1.bf16.msra.mxu0 %v3161
    %4074 = vmatprep.subr.bf16.mxu0 %v3222
    %4075 = vmatpush2.bf16.msra.mxu0 %v3221
    %4076 = vmatprep.subr.bf16.mxu0 %v3218
    %4077 = vmatpush2.bf16.msra.mxu0 %v3217
    %4078 = vmatprep.subr.bf16.mxu0 %v3214
    %4079 = vmatpush2.bf16.msra.mxu0 %v3213
    %4080 = vmatprep.subr.bf16.mxu0 %v3210
    %4081 = vmatpush2.bf16.msra.mxu0 %v3209
    %4082 = vmatprep.subr.bf16.mxu0 %v3206
    %4083 = vmatpush2.bf16.msra.mxu0 %v3205
    %4084 = vmatprep.subr.bf16.mxu0 %v3202
    %4085 = vmatpush2.bf16.msra.mxu0 %v3201
    %4086 = vmatprep.subr.bf16.mxu0 %v3198
    %4087 = vmatpush2.bf16.msra.mxu0 %v3197
    %4088 = vmatprep.subr.bf16.mxu0 %v3194
    %4089 = vmatpush2.bf16.msra.mxu0 %v3193
    %4090 = vmatprep.mubr.bf16.mxu0 %v1280
    %4091 = vmatmul.mubr.bf16.gmra.mxu0 %v1279
    %v4092 = vpop.f32.mrf.mxu0
    %v4093 = vadd.f32 %v4052, %v4092
    %v4094 = vpop.f32.mrf.mxu0
    %v4095 = vadd.f32 %v4054, %v4094
    %v4096 = vpop.f32.mrf.mxu0
    %v4097 = vpop.f32.mrf.mxu0
    %4098 = vdwg.mxu0
    %vm4099 = vcmp.gt.f32.partialorder %v3847, 0.0
    %vm4100 = vcmp.gt.f32.partialorder %v3849, 0.0
    %vm4101 = vcmp.gt.f32.partialorder %v4093, 0.0
    %vm4102 = vcmp.gt.f32.partialorder %v4095, 0.0
    %v4103 = vmul.f32 %v3847, 0.01
    %v4104 = vmul.f32 %v3849, 0.01
    %v4105 = vmul.f32 %v4093, 0.01
    %v4106 = vmul.f32 %v4095, 0.01
    %v4107 = vsel %vm4099, %v3847, %v4103
    %v4108 = vsel %vm4100, %v3849, %v4104
    %v4109 = vsel %vm4101, %v4093, %v4105
    %v4110 = vsel %vm4102, %v4095, %v4106
    %4111 = vst [vmem:[%s7] sm:$0xff] %v4107
    %4112 = vst [vmem:[%s7 + $0x8] sm:$0xff] %v4108
    %4113 = vst [vmem:[%s7 + $0x10] sm:$0xff] %v4109
    %4114 = vst [vmem:[%s7 + $0x18] sm:$0xff] %v4110
    // Predicated region
    $region54: #{forward.3} parent=1 // pred_check
      _
    $region55: #{forward.3} parent=1 // pred_check_branch
      %4116 = sbr.rel (0) target = $region57
    $region56: #{forward.3} parent=1 // pred_region
      _
    $region57: #{forward.3} parent=1 // pred_fallthru
      _
    // Predicated region
    $region58: #{forward.3} parent=1 // pred_check
      _
    $region59: #{forward.3} parent=1 // pred_check_branch
      %4118 = sbr.rel (0) target = $region61
    $region60: #{forward.3} parent=1 // pred_region
      _
    $region61: #{forward.3} parent=1 // pred_fallthru
      _
    %4119 = vsyncpa [#allocation3], 1
    %4120 = vsyncpa [#allocation5], 1
    %4121 = vsyncpa [#allocation8], 1
    %4122 = vsyncpa [#allocation11], 1

</llo_original>
